<compile_context>
chip_gen: v7x
topology: tpu7x:2x2x1
jax: 0.10.0
libtpu: 0.0.40
codegen_flags: <defaults>
</compile_context>

<pallas_src>
import jax
import jax.numpy as jnp
from jax import lax
from jax.experimental import pallas as pl
from jax.experimental.pallas import tpu as pltpu

KSIZE = 7
PAD = KSIZE // 2


def cbam_pallas(x_nchw, fc1_w, fc1_b, fc2_w, fc2_b, conv_w_flat, conv_b):
    """CBAM forward.

    x_nchw : (B, C, H, W) float32
    fc1_w  : (HID, C)   -- torch Linear(C, C//r).weight layout
    fc1_b  : (HID,)
    fc2_w  : (C, HID)   -- torch Linear(C//r, C).weight layout
    fc2_b  : (C,)
    conv_w_flat : (2*7*7,) -- flattened torch Conv2d(2,1,7).weight (1,2,7,7)
    conv_b : (1,)
    """
    B, C, H, W = x_nchw.shape
    HW = H * W
    HID = fc1_w.shape[0]

    # Free reshapes / tiny host-side index tables (no transposes, no HBM copies).
    x_flat = x_nchw.reshape(B, C, HW)
    b1_col = fc1_b.reshape(HID, 1)
    b2_col = fc2_b.reshape(C, 1)
    pos = jnp.arange(HW, dtype=jnp.int32)
    row_idx = (pos // W).reshape(1, HW)
    col_idx = (pos % W).reshape(1, HW)

    def kernel(x_ref, w1_ref, b1_ref, w2_ref, b2_ref, convw_ref, convb_ref,
               row_ref, col_ref, o_ref):
        x2 = x_ref[0]                                        # (C, HW) f32

        # ---------------- Channel attention ----------------
        avg = jnp.mean(x2, axis=1, keepdims=True)            # (C, 1)
        mx = jnp.max(x2, axis=1, keepdims=True)              # (C, 1)
        # stacked [avg | max] -> (C, 2) without concatenate
        lane2 = lax.broadcasted_iota(jnp.int32, (C, 2), 1)
        pooled = jnp.where(lane2 == 0, avg, mx)              # (C, 2)

        h = jnp.dot(w1_ref[...], pooled,
                    preferred_element_type=jnp.float32) + b1_ref[...]   # (HID, 2)
        h = jnp.maximum(h, 0.0)
        o = jnp.dot(w2_ref[...], h,
                    preferred_element_type=jnp.float32) + b2_ref[...]   # (C, 2)
        ch_w = jax.nn.sigmoid(jnp.sum(o, axis=1, keepdims=True))        # (C, 1)
        x_ca = x2 * ch_w                                     # (C, HW)

        # ---------------- Spatial attention -----------------
        s_avg = jnp.mean(x_ca, axis=0, keepdims=True)        # (1, HW)
        s_max = jnp.max(x_ca, axis=0, keepdims=True)         # (1, HW)

        row = row_ref[...]                                   # (1, HW) int32
        col = col_ref[...]                                   # (1, HW) int32

        acc = jnp.zeros((1, HW), jnp.float32) + convb_ref[0]
        for dh in range(KSIZE):
            oh = dh - PAD
            for dw in range(KSIZE):
                ow = dw - PAD
                d = oh * W + ow
                shift = (-d) % HW                            # static, non-negative
                if shift:
                    sa = pltpu.roll(s_avg, shift=shift, axis=1)
                    sm = pltpu.roll(s_max, shift=shift, axis=1)
                else:
                    sa, sm = s_avg, s_max
                w_a = convw_ref[dh * KSIZE + dw]                     # avg-channel tap
                w_m = convw_ref[KSIZE * KSIZE + dh * KSIZE + dw]     # max-channel tap
                term = w_a * sa + w_m * sm
                # zero-padding mask: only emit the comparisons that can fail
                conds = []
                if oh < 0:
                    conds.append(row >= -oh)
                if oh > 0:
                    conds.append(row < H - oh)
                if ow < 0:
                    conds.append(col >= -ow)
                if ow > 0:
                    conds.append(col < W - ow)
                if conds:
                    m = conds[0]
                    for cnd in conds[1:]:
                        m = m & cnd
                    term = jnp.where(m, term, 0.0)
                acc = acc + term

        sp_w = jax.nn.sigmoid(acc)                           # (1, HW)
        o_ref[0] = (x_ca * sp_w).astype(o_ref.dtype)         # lane-dense store

    out_flat = pl.pallas_call(
        kernel,
        out_shape=jax.ShapeDtypeStruct((B, C, HW), jnp.float32),
        grid_spec=pltpu.PrefetchScalarGridSpec(
            num_scalar_prefetch=0,
            grid=(B,),
            in_specs=[
                pl.BlockSpec((1, C, HW), lambda b: (b, 0, 0)),          # x
                pl.BlockSpec((HID, C), lambda b: (0, 0)),               # fc1.weight
                pl.BlockSpec((HID, 1), lambda b: (0, 0)),               # fc1.bias
                pl.BlockSpec((C, HID), lambda b: (0, 0)),               # fc2.weight
                pl.BlockSpec((C, 1), lambda b: (0, 0)),                 # fc2.bias
                pl.BlockSpec(memory_space=pltpu.MemorySpace.SMEM),      # conv weights (flat)
                pl.BlockSpec(memory_space=pltpu.MemorySpace.SMEM),      # conv bias
                pl.BlockSpec((1, HW), lambda b: (0, 0)),                # row index
                pl.BlockSpec((1, HW), lambda b: (0, 0)),                # col index
            ],
            out_specs=pl.BlockSpec((1, C, HW), lambda b: (b, 0, 0)),
        ),
        compiler_params=pltpu.CompilerParams(
            dimension_semantics=("parallel",)),                         # shard B on v7x
    )(x_flat, fc1_w, b1_col, fc2_w, b2_col, conv_w_flat, conv_b, row_idx, col_idx)

    return out_flat.reshape(B, C, H, W)


def cbam_ref(x_nchw, fc1_w, fc1_b, fc2_w, fc2_b, conv_w_flat, conv_b):
    """Pure-JAX reference matching the PyTorch forward (NCHW)."""
    avg = jnp.mean(x_nchw, axis=(2, 3))                      # (B, C)
    mx = jnp.max(x_nchw, axis=(2, 3))                        # (B, C)

    def mlp(v):
        return jnp.maximum(v @ fc1_w.T + fc1_b, 0.0) @ fc2_w.T + fc2_b

    ch_w = jax.nn.sigmoid(mlp(avg) + mlp(mx))                # (B, C)
    x_ca = x_nchw * ch_w[:, :, None, None]

    s_avg = jnp.mean(x_ca, axis=1, keepdims=True)
    s_max = jnp.max(x_ca, axis=1, keepdims=True)
    comb = jnp.concatenate([s_avg, s_max], axis=1)           # (B, 2, H, W)
    conv_w = conv_w_flat.reshape(1, 2, KSIZE, KSIZE)
    conv = lax.conv_general_dilated(
        comb, conv_w, window_strides=(1, 1), padding=[(PAD, PAD), (PAD, PAD)],
        dimension_numbers=("NCHW", "OIHW", "NCHW"))
    sp_w = jax.nn.sigmoid(conv + conv_b.reshape(1, 1, 1, 1))
    return x_ca * sp_w


if __name__ == "__main__":
    # reduction_ratio=16 requires C >= 16; use C=32 -> hidden=2.
    B, C, H, W = 2, 32, 16, 16
    REDUCTION = 16
    HID = C // REDUCTION

    key = jax.random.PRNGKey(0)
    ks = jax.random.split(key, 7)
    x = jax.random.normal(ks[0], (B, C, H, W), jnp.float32)
    fc1_w = jax.random.normal(ks[1], (HID, C), jnp.float32) * 0.2    # Linear(C, C//16).weight
    fc1_b = jax.random.normal(ks[2], (HID,), jnp.float32) * 0.1
    fc2_w = jax.random.normal(ks[3], (C, HID), jnp.float32) * 0.2    # Linear(C//16, C).weight
    fc2_b = jax.random.normal(ks[4], (C,), jnp.float32) * 0.1
    conv_w = jax.random.normal(ks[5], (2 * KSIZE * KSIZE,), jnp.float32) * 0.1  # Conv2d(2,1,7)
    conv_b = jax.random.normal(ks[6], (1,), jnp.float32) * 0.1

    out = cbam_pallas(x, fc1_w, fc1_b, fc2_w, fc2_b, conv_w, conv_b)
    out = jax.block_until_ready(out)

    ref = cbam_ref(x, fc1_w, fc1_b, fc2_w, fc2_b, conv_w, conv_b)
    max_err = float(jnp.max(jnp.abs(out - ref)))
    assert out.shape == (B, C, H, W) and max_err < 1e-3, f"mismatch: {max_err}"
    print("KERNEL_OK")
</pallas_src>

<mosaic_0001>
module attributes {stable_mosaic.version = 11 : i64} {
  func.func @kernel(%arg0: i32, %arg1: memref<1x32x256xf32, #tpu.memory_space<vmem>>, %arg2: memref<2x32xf32, #tpu.memory_space<vmem>>, %arg3: memref<2x1xf32, #tpu.memory_space<vmem>>, %arg4: memref<32x2xf32, #tpu.memory_space<vmem>>, %arg5: memref<32x1xf32, #tpu.memory_space<vmem>>, %arg6: memref<98xf32, #tpu.memory_space<smem>>, %arg7: memref<1xf32, #tpu.memory_space<smem>>, %arg8: memref<1x256xi32, #tpu.memory_space<vmem>>, %arg9: memref<1x256xi32, #tpu.memory_space<vmem>>, %arg10: memref<1x32x256xf32, #tpu.memory_space<vmem>>) attributes {dimension_semantics = [#tpu.dimension_semantics<parallel>], iteration_bounds = array<i64: 2>, scalar_prefetch = 0 : i64, scratch_operands = 0 : i64, tpu.core_type = #tpu.core_type<tc>, window_params = [{transform_indices = @transform_0, window_bounds = array<i64: 1, 32, 256>}, {pipeline_mode = #tpu.pipeline_mode<synchronous>, transform_indices = @transform_1, window_bounds = array<i64: 2, 32>}, {pipeline_mode = #tpu.pipeline_mode<synchronous>, transform_indices = @transform_2, window_bounds = array<i64: 2, 1>}, {pipeline_mode = #tpu.pipeline_mode<synchronous>, transform_indices = @transform_3, window_bounds = array<i64: 32, 2>}, {pipeline_mode = #tpu.pipeline_mode<synchronous>, transform_indices = @transform_4, window_bounds = array<i64: 32, 1>}, {transform_indices = @transform_5, window_bounds = array<i64: 98>}, {transform_indices = @transform_6, window_bounds = array<i64: 1>}, {pipeline_mode = #tpu.pipeline_mode<synchronous>, transform_indices = @transform_7, window_bounds = array<i64: 1, 256>}, {pipeline_mode = #tpu.pipeline_mode<synchronous>, transform_indices = @transform_8, window_bounds = array<i64: 1, 256>}, {transform_indices = @transform_9, window_bounds = array<i64: 1, 32, 256>}]} {
    %c0 = arith.constant 0 : index
    %c0_0 = arith.constant 0 : index
    %c0_1 = arith.constant 0 : index
    %0 = vector.load %arg1[%c0, %c0_0, %c0_1] : memref<1x32x256xf32, #tpu.memory_space<vmem>>, vector<1x32x256xf32>
    %1 = vector.shape_cast %0 : vector<1x32x256xf32> to vector<32x256xf32>
    %cst = arith.constant dense<0.000000e+00> : vector<32xf32>
    %2 = vector.multi_reduction <add>, %1, %cst [1] : vector<32x256xf32> to vector<32xf32>
    %3 = vector.shape_cast %2 : vector<32xf32> to vector<32x1xf32>
    %cst_2 = arith.constant 2.560000e+02 : f32
    %4 = vector.broadcast %cst_2 : f32 to vector<32x1xf32>
    %5 = arith.divf %3, %4 : vector<32x1xf32>
    %cst_3 = arith.constant dense<0xFF800000> : vector<32xf32>
    %6 = vector.multi_reduction <maximumf>, %1, %cst_3 [1] : vector<32x256xf32> to vector<32xf32>
    %7 = vector.shape_cast %6 : vector<32xf32> to vector<32x1xf32>
    %8 = tpu.iota {dimensions = array<i32: 1>} : vector<32x2xi32>
    %c0_i32 = arith.constant 0 : i32
    %9 = vector.broadcast %c0_i32 : i32 to vector<32x2xi32>
    %10 = arith.cmpi eq, %8, %9 : vector<32x2xi32>
    %11 = vector.shape_cast %5 : vector<32x1xf32> to vector<32x1xf32>
    %12 = vector.broadcast %11 : vector<32x1xf32> to vector<32x2xf32>
    %13 = vector.shape_cast %7 : vector<32x1xf32> to vector<32x1xf32>
    %14 = vector.broadcast %13 : vector<32x1xf32> to vector<32x2xf32>
    %15 = arith.select %10, %12, %14 : vector<32x2xi1>, vector<32x2xf32>
    %c0_4 = arith.constant 0 : index
    %c0_5 = arith.constant 0 : index
    %16 = vector.load %arg2[%c0_4, %c0_5] : memref<2x32xf32, #tpu.memory_space<vmem>>, vector<2x32xf32>
    %cst_6 = arith.constant dense<0.000000e+00> : vector<2x2xf32>
    %17 = tpu.matmul %16, %15, %cst_6 {dimension_numbers = #tpu.dot_dimension_numbers<[1], [0], [0], [1], [0, 0, 1, 1], [], []>} : vector<2x32xf32>, vector<32x2xf32>, vector<2x2xf32> -> vector<2x2xf32>
    %c0_7 = arith.constant 0 : index
    %c0_8 = arith.constant 0 : index
    %18 = vector.load %arg3[%c0_7, %c0_8] : memref<2x1xf32, #tpu.memory_space<vmem>>, vector<2x1xf32>
    %19 = vector.broadcast %18 : vector<2x1xf32> to vector<2x2xf32>
    %20 = arith.addf %17, %19 : vector<2x2xf32>
    %cst_9 = arith.constant 0.000000e+00 : f32
    %21 = vector.broadcast %cst_9 : f32 to vector<2x2xf32>
    %22 = arith.maximumf %20, %21 : vector<2x2xf32>
    %c0_10 = arith.constant 0 : index
    %c0_11 = arith.constant 0 : index
    %23 = vector.load %arg4[%c0_10, %c0_11] : memref<32x2xf32, #tpu.memory_space<vmem>>, vector<32x2xf32>
    %cst_12 = arith.constant dense<0.000000e+00> : vector<32x2xf32>
    %24 = tpu.matmul %23, %22, %cst_12 {dimension_numbers = #tpu.dot_dimension_numbers<[1], [0], [0], [1], [0, 0, 1, 1], [], []>} : vector<32x2xf32>, vector<2x2xf32>, vector<32x2xf32> -> vector<32x2xf32>
    %c0_13 = arith.constant 0 : index
    %c0_14 = arith.constant 0 : index
    %25 = vector.load %arg5[%c0_13, %c0_14] : memref<32x1xf32, #tpu.memory_space<vmem>>, vector<32x1xf32>
    %26 = vector.broadcast %25 : vector<32x1xf32> to vector<32x2xf32>
    %27 = arith.addf %24, %26 : vector<32x2xf32>
    %cst_15 = arith.constant dense<0.000000e+00> : vector<32xf32>
    %28 = vector.multi_reduction <add>, %27, %cst_15 [1] : vector<32x2xf32> to vector<32xf32>
    %29 = vector.shape_cast %28 : vector<32xf32> to vector<32x1xf32>
    %30 = arith.negf %29 : vector<32x1xf32>
    %31 = math.exp %30 : vector<32x1xf32>
    %cst_16 = arith.constant 1.000000e+00 : f32
    %32 = vector.broadcast %cst_16 : f32 to vector<32x1xf32>
    %33 = arith.addf %32, %31 : vector<32x1xf32>
    %34 = arith.divf %32, %33 : vector<32x1xf32>
    %35 = vector.broadcast %34 : vector<32x1xf32> to vector<32x256xf32>
    %36 = arith.mulf %1, %35 : vector<32x256xf32>
    %cst_17 = arith.constant dense<0.000000e+00> : vector<256xf32>
    %37 = vector.multi_reduction <add>, %36, %cst_17 [0] : vector<32x256xf32> to vector<256xf32>
    %38 = vector.shape_cast %37 : vector<256xf32> to vector<1x256xf32>
    %cst_18 = arith.constant 3.200000e+01 : f32
    %39 = vector.broadcast %cst_18 : f32 to vector<1x256xf32>
    %40 = arith.divf %38, %39 : vector<1x256xf32>
    %cst_19 = arith.constant dense<0xFF800000> : vector<256xf32>
    %41 = vector.multi_reduction <maximumf>, %36, %cst_19 [0] : vector<32x256xf32> to vector<256xf32>
    %42 = vector.shape_cast %41 : vector<256xf32> to vector<1x256xf32>
    %c0_20 = arith.constant 0 : index
    %c0_21 = arith.constant 0 : index
    %43 = vector.load %arg8[%c0_20, %c0_21] : memref<1x256xi32, #tpu.memory_space<vmem>>, vector<1x256xi32>
    %c0_22 = arith.constant 0 : index
    %c0_23 = arith.constant 0 : index
    %44 = vector.load %arg9[%c0_22, %c0_23] : memref<1x256xi32, #tpu.memory_space<vmem>>, vector<1x256xi32>
    %cst_24 = arith.constant 0.000000e+00 : f32
    %45 = vector.broadcast %cst_24 : f32 to vector<1x256xf32>
    %c0_25 = arith.constant 0 : index
    %46 = memref.load %arg7[%c0_25] : memref<1xf32, #tpu.memory_space<smem>>
    %47 = vector.broadcast %46 : f32 to vector<1x256xf32>
    %48 = arith.addf %45, %47 : vector<1x256xf32>
    %c51_i32 = arith.constant 51 : i32
    %49 = tpu.dynamic_rotate %40 by %c51_i32 dim 1 : vector<1x256xf32>, i32 -> vector<1x256xf32>
    %c51_i32_26 = arith.constant 51 : i32
    %50 = tpu.dynamic_rotate %42 by %c51_i32_26 dim 1 : vector<1x256xf32>, i32 -> vector<1x256xf32>
    %c0_27 = arith.constant 0 : index
    %51 = memref.load %arg6[%c0_27] : memref<98xf32, #tpu.memory_space<smem>>
    %c49 = arith.constant 49 : index
    %52 = memref.load %arg6[%c49] : memref<98xf32, #tpu.memory_space<smem>>
    %53 = vector.broadcast %51 : f32 to vector<1x256xf32>
    %54 = arith.mulf %53, %49 : vector<1x256xf32>
    %55 = vector.broadcast %52 : f32 to vector<1x256xf32>
    %56 = arith.mulf %55, %50 : vector<1x256xf32>
    %57 = arith.addf %54, %56 : vector<1x256xf32>
    %c3_i32 = arith.constant 3 : i32
    %58 = vector.broadcast %c3_i32 : i32 to vector<1x256xi32>
    %59 = arith.cmpi sge, %43, %58 : vector<1x256xi32>
    %c3_i32_28 = arith.constant 3 : i32
    %60 = vector.broadcast %c3_i32_28 : i32 to vector<1x256xi32>
    %61 = arith.cmpi sge, %44, %60 : vector<1x256xi32>
    %62 = arith.andi %59, %61 : vector<1x256xi1>
    %cst_29 = arith.constant 0.000000e+00 : f32
    %63 = vector.broadcast %cst_29 : f32 to vector<1x256xf32>
    %64 = arith.select %62, %57, %63 : vector<1x256xi1>, vector<1x256xf32>
    %65 = arith.addf %48, %64 : vector<1x256xf32>
    %c50_i32 = arith.constant 50 : i32
    %66 = tpu.dynamic_rotate %40 by %c50_i32 dim 1 : vector<1x256xf32>, i32 -> vector<1x256xf32>
    %c50_i32_30 = arith.constant 50 : i32
    %67 = tpu.dynamic_rotate %42 by %c50_i32_30 dim 1 : vector<1x256xf32>, i32 -> vector<1x256xf32>
    %c1 = arith.constant 1 : index
    %68 = memref.load %arg6[%c1] : memref<98xf32, #tpu.memory_space<smem>>
    %c50 = arith.constant 50 : index
    %69 = memref.load %arg6[%c50] : memref<98xf32, #tpu.memory_space<smem>>
    %70 = vector.broadcast %68 : f32 to vector<1x256xf32>
    %71 = arith.mulf %70, %66 : vector<1x256xf32>
    %72 = vector.broadcast %69 : f32 to vector<1x256xf32>
    %73 = arith.mulf %72, %67 : vector<1x256xf32>
    %74 = arith.addf %71, %73 : vector<1x256xf32>
    %c3_i32_31 = arith.constant 3 : i32
    %75 = vector.broadcast %c3_i32_31 : i32 to vector<1x256xi32>
    %76 = arith.cmpi sge, %43, %75 : vector<1x256xi32>
    %c2_i32 = arith.constant 2 : i32
    %77 = vector.broadcast %c2_i32 : i32 to vector<1x256xi32>
    %78 = arith.cmpi sge, %44, %77 : vector<1x256xi32>
    %79 = arith.andi %76, %78 : vector<1x256xi1>
    %cst_32 = arith.constant 0.000000e+00 : f32
    %80 = vector.broadcast %cst_32 : f32 to vector<1x256xf32>
    %81 = arith.select %79, %74, %80 : vector<1x256xi1>, vector<1x256xf32>
    %82 = arith.addf %65, %81 : vector<1x256xf32>
    %c49_i32 = arith.constant 49 : i32
    %83 = tpu.dynamic_rotate %40 by %c49_i32 dim 1 : vector<1x256xf32>, i32 -> vector<1x256xf32>
    %c49_i32_33 = arith.constant 49 : i32
    %84 = tpu.dynamic_rotate %42 by %c49_i32_33 dim 1 : vector<1x256xf32>, i32 -> vector<1x256xf32>
    %c2 = arith.constant 2 : index
    %85 = memref.load %arg6[%c2] : memref<98xf32, #tpu.memory_space<smem>>
    %c51 = arith.constant 51 : index
    %86 = memref.load %arg6[%c51] : memref<98xf32, #tpu.memory_space<smem>>
    %87 = vector.broadcast %85 : f32 to vector<1x256xf32>
    %88 = arith.mulf %87, %83 : vector<1x256xf32>
    %89 = vector.broadcast %86 : f32 to vector<1x256xf32>
    %90 = arith.mulf %89, %84 : vector<1x256xf32>
    %91 = arith.addf %88, %90 : vector<1x256xf32>
    %c3_i32_34 = arith.constant 3 : i32
    %92 = vector.broadcast %c3_i32_34 : i32 to vector<1x256xi32>
    %93 = arith.cmpi sge, %43, %92 : vector<1x256xi32>
    %c1_i32 = arith.constant 1 : i32
    %94 = vector.broadcast %c1_i32 : i32 to vector<1x256xi32>
    %95 = arith.cmpi sge, %44, %94 : vector<1x256xi32>
    %96 = arith.andi %93, %95 : vector<1x256xi1>
    %cst_35 = arith.constant 0.000000e+00 : f32
    %97 = vector.broadcast %cst_35 : f32 to vector<1x256xf32>
    %98 = arith.select %96, %91, %97 : vector<1x256xi1>, vector<1x256xf32>
    %99 = arith.addf %82, %98 : vector<1x256xf32>
    %c48_i32 = arith.constant 48 : i32
    %100 = tpu.dynamic_rotate %40 by %c48_i32 dim 1 : vector<1x256xf32>, i32 -> vector<1x256xf32>
    %c48_i32_36 = arith.constant 48 : i32
    %101 = tpu.dynamic_rotate %42 by %c48_i32_36 dim 1 : vector<1x256xf32>, i32 -> vector<1x256xf32>
    %c3 = arith.constant 3 : index
    %102 = memref.load %arg6[%c3] : memref<98xf32, #tpu.memory_space<smem>>
    %c52 = arith.constant 52 : index
    %103 = memref.load %arg6[%c52] : memref<98xf32, #tpu.memory_space<smem>>
    %104 = vector.broadcast %102 : f32 to vector<1x256xf32>
    %105 = arith.mulf %104, %100 : vector<1x256xf32>
    %106 = vector.broadcast %103 : f32 to vector<1x256xf32>
    %107 = arith.mulf %106, %101 : vector<1x256xf32>
    %108 = arith.addf %105, %107 : vector<1x256xf32>
    %c3_i32_37 = arith.constant 3 : i32
    %109 = vector.broadcast %c3_i32_37 : i32 to vector<1x256xi32>
    %110 = arith.cmpi sge, %43, %109 : vector<1x256xi32>
    %cst_38 = arith.constant 0.000000e+00 : f32
    %111 = vector.broadcast %cst_38 : f32 to vector<1x256xf32>
    %112 = arith.select %110, %108, %111 : vector<1x256xi1>, vector<1x256xf32>
    %113 = arith.addf %99, %112 : vector<1x256xf32>
    %c47_i32 = arith.constant 47 : i32
    %114 = tpu.dynamic_rotate %40 by %c47_i32 dim 1 : vector<1x256xf32>, i32 -> vector<1x256xf32>
    %c47_i32_39 = arith.constant 47 : i32
    %115 = tpu.dynamic_rotate %42 by %c47_i32_39 dim 1 : vector<1x256xf32>, i32 -> vector<1x256xf32>
    %c4 = arith.constant 4 : index
    %116 = memref.load %arg6[%c4] : memref<98xf32, #tpu.memory_space<smem>>
    %c53 = arith.constant 53 : index
    %117 = memref.load %arg6[%c53] : memref<98xf32, #tpu.memory_space<smem>>
    %118 = vector.broadcast %116 : f32 to vector<1x256xf32>
    %119 = arith.mulf %118, %114 : vector<1x256xf32>
    %120 = vector.broadcast %117 : f32 to vector<1x256xf32>
    %121 = arith.mulf %120, %115 : vector<1x256xf32>
    %122 = arith.addf %119, %121 : vector<1x256xf32>
    %c3_i32_40 = arith.constant 3 : i32
    %123 = vector.broadcast %c3_i32_40 : i32 to vector<1x256xi32>
    %124 = arith.cmpi sge, %43, %123 : vector<1x256xi32>
    %c15_i32 = arith.constant 15 : i32
    %125 = vector.broadcast %c15_i32 : i32 to vector<1x256xi32>
    %126 = arith.cmpi slt, %44, %125 : vector<1x256xi32>
    %127 = arith.andi %124, %126 : vector<1x256xi1>
    %cst_41 = arith.constant 0.000000e+00 : f32
    %128 = vector.broadcast %cst_41 : f32 to vector<1x256xf32>
    %129 = arith.select %127, %122, %128 : vector<1x256xi1>, vector<1x256xf32>
    %130 = arith.addf %113, %129 : vector<1x256xf32>
    %c46_i32 = arith.constant 46 : i32
    %131 = tpu.dynamic_rotate %40 by %c46_i32 dim 1 : vector<1x256xf32>, i32 -> vector<1x256xf32>
    %c46_i32_42 = arith.constant 46 : i32
    %132 = tpu.dynamic_rotate %42 by %c46_i32_42 dim 1 : vector<1x256xf32>, i32 -> vector<1x256xf32>
    %c5 = arith.constant 5 : index
    %133 = memref.load %arg6[%c5] : memref<98xf32, #tpu.memory_space<smem>>
    %c54 = arith.constant 54 : index
    %134 = memref.load %arg6[%c54] : memref<98xf32, #tpu.memory_space<smem>>
    %135 = vector.broadcast %133 : f32 to vector<1x256xf32>
    %136 = arith.mulf %135, %131 : vector<1x256xf32>
    %137 = vector.broadcast %134 : f32 to vector<1x256xf32>
    %138 = arith.mulf %137, %132 : vector<1x256xf32>
    %139 = arith.addf %136, %138 : vector<1x256xf32>
    %c3_i32_43 = arith.constant 3 : i32
    %140 = vector.broadcast %c3_i32_43 : i32 to vector<1x256xi32>
    %141 = arith.cmpi sge, %43, %140 : vector<1x256xi32>
    %c14_i32 = arith.constant 14 : i32
    %142 = vector.broadcast %c14_i32 : i32 to vector<1x256xi32>
    %143 = arith.cmpi slt, %44, %142 : vector<1x256xi32>
    %144 = arith.andi %141, %143 : vector<1x256xi1>
    %cst_44 = arith.constant 0.000000e+00 : f32
    %145 = vector.broadcast %cst_44 : f32 to vector<1x256xf32>
    %146 = arith.select %144, %139, %145 : vector<1x256xi1>, vector<1x256xf32>
    %147 = arith.addf %130, %146 : vector<1x256xf32>
    %c45_i32 = arith.constant 45 : i32
    %148 = tpu.dynamic_rotate %40 by %c45_i32 dim 1 : vector<1x256xf32>, i32 -> vector<1x256xf32>
    %c45_i32_45 = arith.constant 45 : i32
    %149 = tpu.dynamic_rotate %42 by %c45_i32_45 dim 1 : vector<1x256xf32>, i32 -> vector<1x256xf32>
    %c6 = arith.constant 6 : index
    %150 = memref.load %arg6[%c6] : memref<98xf32, #tpu.memory_space<smem>>
    %c55 = arith.constant 55 : index
    %151 = memref.load %arg6[%c55] : memref<98xf32, #tpu.memory_space<smem>>
    %152 = vector.broadcast %150 : f32 to vector<1x256xf32>
    %153 = arith.mulf %152, %148 : vector<1x256xf32>
    %154 = vector.broadcast %151 : f32 to vector<1x256xf32>
    %155 = arith.mulf %154, %149 : vector<1x256xf32>
    %156 = arith.addf %153, %155 : vector<1x256xf32>
    %c3_i32_46 = arith.constant 3 : i32
    %157 = vector.broadcast %c3_i32_46 : i32 to vector<1x256xi32>
    %158 = arith.cmpi sge, %43, %157 : vector<1x256xi32>
    %c13_i32 = arith.constant 13 : i32
    %159 = vector.broadcast %c13_i32 : i32 to vector<1x256xi32>
    %160 = arith.cmpi slt, %44, %159 : vector<1x256xi32>
    %161 = arith.andi %158, %160 : vector<1x256xi1>
    %cst_47 = arith.constant 0.000000e+00 : f32
    %162 = vector.broadcast %cst_47 : f32 to vector<1x256xf32>
    %163 = arith.select %161, %156, %162 : vector<1x256xi1>, vector<1x256xf32>
    %164 = arith.addf %147, %163 : vector<1x256xf32>
    %c35_i32 = arith.constant 35 : i32
    %165 = tpu.dynamic_rotate %40 by %c35_i32 dim 1 : vector<1x256xf32>, i32 -> vector<1x256xf32>
    %c35_i32_48 = arith.constant 35 : i32
    %166 = tpu.dynamic_rotate %42 by %c35_i32_48 dim 1 : vector<1x256xf32>, i32 -> vector<1x256xf32>
    %c7 = arith.constant 7 : index
    %167 = memref.load %arg6[%c7] : memref<98xf32, #tpu.memory_space<smem>>
    %c56 = arith.constant 56 : index
    %168 = memref.load %arg6[%c56] : memref<98xf32, #tpu.memory_space<smem>>
    %169 = vector.broadcast %167 : f32 to vector<1x256xf32>
    %170 = arith.mulf %169, %165 : vector<1x256xf32>
    %171 = vector.broadcast %168 : f32 to vector<1x256xf32>
    %172 = arith.mulf %171, %166 : vector<1x256xf32>
    %173 = arith.addf %170, %172 : vector<1x256xf32>
    %c2_i32_49 = arith.constant 2 : i32
    %174 = vector.broadcast %c2_i32_49 : i32 to vector<1x256xi32>
    %175 = arith.cmpi sge, %43, %174 : vector<1x256xi32>
    %c3_i32_50 = arith.constant 3 : i32
    %176 = vector.broadcast %c3_i32_50 : i32 to vector<1x256xi32>
    %177 = arith.cmpi sge, %44, %176 : vector<1x256xi32>
    %178 = arith.andi %175, %177 : vector<1x256xi1>
    %cst_51 = arith.constant 0.000000e+00 : f32
    %179 = vector.broadcast %cst_51 : f32 to vector<1x256xf32>
    %180 = arith.select %178, %173, %179 : vector<1x256xi1>, vector<1x256xf32>
    %181 = arith.addf %164, %180 : vector<1x256xf32>
    %c34_i32 = arith.constant 34 : i32
    %182 = tpu.dynamic_rotate %40 by %c34_i32 dim 1 : vector<1x256xf32>, i32 -> vector<1x256xf32>
    %c34_i32_52 = arith.constant 34 : i32
    %183 = tpu.dynamic_rotate %42 by %c34_i32_52 dim 1 : vector<1x256xf32>, i32 -> vector<1x256xf32>
    %c8 = arith.constant 8 : index
    %184 = memref.load %arg6[%c8] : memref<98xf32, #tpu.memory_space<smem>>
    %c57 = arith.constant 57 : index
    %185 = memref.load %arg6[%c57] : memref<98xf32, #tpu.memory_space<smem>>
    %186 = vector.broadcast %184 : f32 to vector<1x256xf32>
    %187 = arith.mulf %186, %182 : vector<1x256xf32>
    %188 = vector.broadcast %185 : f32 to vector<1x256xf32>
    %189 = arith.mulf %188, %183 : vector<1x256xf32>
    %190 = arith.addf %187, %189 : vector<1x256xf32>
    %c2_i32_53 = arith.constant 2 : i32
    %191 = vector.broadcast %c2_i32_53 : i32 to vector<1x256xi32>
    %192 = arith.cmpi sge, %43, %191 : vector<1x256xi32>
    %c2_i32_54 = arith.constant 2 : i32
    %193 = vector.broadcast %c2_i32_54 : i32 to vector<1x256xi32>
    %194 = arith.cmpi sge, %44, %193 : vector<1x256xi32>
    %195 = arith.andi %192, %194 : vector<1x256xi1>
    %cst_55 = arith.constant 0.000000e+00 : f32
    %196 = vector.broadcast %cst_55 : f32 to vector<1x256xf32>
    %197 = arith.select %195, %190, %196 : vector<1x256xi1>, vector<1x256xf32>
    %198 = arith.addf %181, %197 : vector<1x256xf32>
    %c33_i32 = arith.constant 33 : i32
    %199 = tpu.dynamic_rotate %40 by %c33_i32 dim 1 : vector<1x256xf32>, i32 -> vector<1x256xf32>
    %c33_i32_56 = arith.constant 33 : i32
    %200 = tpu.dynamic_rotate %42 by %c33_i32_56 dim 1 : vector<1x256xf32>, i32 -> vector<1x256xf32>
    %c9 = arith.constant 9 : index
    %201 = memref.load %arg6[%c9] : memref<98xf32, #tpu.memory_space<smem>>
    %c58 = arith.constant 58 : index
    %202 = memref.load %arg6[%c58] : memref<98xf32, #tpu.memory_space<smem>>
    %203 = vector.broadcast %201 : f32 to vector<1x256xf32>
    %204 = arith.mulf %203, %199 : vector<1x256xf32>
    %205 = vector.broadcast %202 : f32 to vector<1x256xf32>
    %206 = arith.mulf %205, %200 : vector<1x256xf32>
    %207 = arith.addf %204, %206 : vector<1x256xf32>
    %c2_i32_57 = arith.constant 2 : i32
    %208 = vector.broadcast %c2_i32_57 : i32 to vector<1x256xi32>
    %209 = arith.cmpi sge, %43, %208 : vector<1x256xi32>
    %c1_i32_58 = arith.constant 1 : i32
    %210 = vector.broadcast %c1_i32_58 : i32 to vector<1x256xi32>
    %211 = arith.cmpi sge, %44, %210 : vector<1x256xi32>
    %212 = arith.andi %209, %211 : vector<1x256xi1>
    %cst_59 = arith.constant 0.000000e+00 : f32
    %213 = vector.broadcast %cst_59 : f32 to vector<1x256xf32>
    %214 = arith.select %212, %207, %213 : vector<1x256xi1>, vector<1x256xf32>
    %215 = arith.addf %198, %214 : vector<1x256xf32>
    %c32_i32 = arith.constant 32 : i32
    %216 = tpu.dynamic_rotate %40 by %c32_i32 dim 1 : vector<1x256xf32>, i32 -> vector<1x256xf32>
    %c32_i32_60 = arith.constant 32 : i32
    %217 = tpu.dynamic_rotate %42 by %c32_i32_60 dim 1 : vector<1x256xf32>, i32 -> vector<1x256xf32>
    %c10 = arith.constant 10 : index
    %218 = memref.load %arg6[%c10] : memref<98xf32, #tpu.memory_space<smem>>
    %c59 = arith.constant 59 : index
    %219 = memref.load %arg6[%c59] : memref<98xf32, #tpu.memory_space<smem>>
    %220 = vector.broadcast %218 : f32 to vector<1x256xf32>
    %221 = arith.mulf %220, %216 : vector<1x256xf32>
    %222 = vector.broadcast %219 : f32 to vector<1x256xf32>
    %223 = arith.mulf %222, %217 : vector<1x256xf32>
    %224 = arith.addf %221, %223 : vector<1x256xf32>
    %c2_i32_61 = arith.constant 2 : i32
    %225 = vector.broadcast %c2_i32_61 : i32 to vector<1x256xi32>
    %226 = arith.cmpi sge, %43, %225 : vector<1x256xi32>
    %cst_62 = arith.constant 0.000000e+00 : f32
    %227 = vector.broadcast %cst_62 : f32 to vector<1x256xf32>
    %228 = arith.select %226, %224, %227 : vector<1x256xi1>, vector<1x256xf32>
    %229 = arith.addf %215, %228 : vector<1x256xf32>
    %c31_i32 = arith.constant 31 : i32
    %230 = tpu.dynamic_rotate %40 by %c31_i32 dim 1 : vector<1x256xf32>, i32 -> vector<1x256xf32>
    %c31_i32_63 = arith.constant 31 : i32
    %231 = tpu.dynamic_rotate %42 by %c31_i32_63 dim 1 : vector<1x256xf32>, i32 -> vector<1x256xf32>
    %c11 = arith.constant 11 : index
    %232 = memref.load %arg6[%c11] : memref<98xf32, #tpu.memory_space<smem>>
    %c60 = arith.constant 60 : index
    %233 = memref.load %arg6[%c60] : memref<98xf32, #tpu.memory_space<smem>>
    %234 = vector.broadcast %232 : f32 to vector<1x256xf32>
    %235 = arith.mulf %234, %230 : vector<1x256xf32>
    %236 = vector.broadcast %233 : f32 to vector<1x256xf32>
    %237 = arith.mulf %236, %231 : vector<1x256xf32>
    %238 = arith.addf %235, %237 : vector<1x256xf32>
    %c2_i32_64 = arith.constant 2 : i32
    %239 = vector.broadcast %c2_i32_64 : i32 to vector<1x256xi32>
    %240 = arith.cmpi sge, %43, %239 : vector<1x256xi32>
    %c15_i32_65 = arith.constant 15 : i32
    %241 = vector.broadcast %c15_i32_65 : i32 to vector<1x256xi32>
    %242 = arith.cmpi slt, %44, %241 : vector<1x256xi32>
    %243 = arith.andi %240, %242 : vector<1x256xi1>
    %cst_66 = arith.constant 0.000000e+00 : f32
    %244 = vector.broadcast %cst_66 : f32 to vector<1x256xf32>
    %245 = arith.select %243, %238, %244 : vector<1x256xi1>, vector<1x256xf32>
    %246 = arith.addf %229, %245 : vector<1x256xf32>
    %c30_i32 = arith.constant 30 : i32
    %247 = tpu.dynamic_rotate %40 by %c30_i32 dim 1 : vector<1x256xf32>, i32 -> vector<1x256xf32>
    %c30_i32_67 = arith.constant 30 : i32
    %248 = tpu.dynamic_rotate %42 by %c30_i32_67 dim 1 : vector<1x256xf32>, i32 -> vector<1x256xf32>
    %c12 = arith.constant 12 : index
    %249 = memref.load %arg6[%c12] : memref<98xf32, #tpu.memory_space<smem>>
    %c61 = arith.constant 61 : index
    %250 = memref.load %arg6[%c61] : memref<98xf32, #tpu.memory_space<smem>>
    %251 = vector.broadcast %249 : f32 to vector<1x256xf32>
    %252 = arith.mulf %251, %247 : vector<1x256xf32>
    %253 = vector.broadcast %250 : f32 to vector<1x256xf32>
    %254 = arith.mulf %253, %248 : vector<1x256xf32>
    %255 = arith.addf %252, %254 : vector<1x256xf32>
    %c2_i32_68 = arith.constant 2 : i32
    %256 = vector.broadcast %c2_i32_68 : i32 to vector<1x256xi32>
    %257 = arith.cmpi sge, %43, %256 : vector<1x256xi32>
    %c14_i32_69 = arith.constant 14 : i32
    %258 = vector.broadcast %c14_i32_69 : i32 to vector<1x256xi32>
    %259 = arith.cmpi slt, %44, %258 : vector<1x256xi32>
    %260 = arith.andi %257, %259 : vector<1x256xi1>
    %cst_70 = arith.constant 0.000000e+00 : f32
    %261 = vector.broadcast %cst_70 : f32 to vector<1x256xf32>
    %262 = arith.select %260, %255, %261 : vector<1x256xi1>, vector<1x256xf32>
    %263 = arith.addf %246, %262 : vector<1x256xf32>
    %c29_i32 = arith.constant 29 : i32
    %264 = tpu.dynamic_rotate %40 by %c29_i32 dim 1 : vector<1x256xf32>, i32 -> vector<1x256xf32>
    %c29_i32_71 = arith.constant 29 : i32
    %265 = tpu.dynamic_rotate %42 by %c29_i32_71 dim 1 : vector<1x256xf32>, i32 -> vector<1x256xf32>
    %c13 = arith.constant 13 : index
    %266 = memref.load %arg6[%c13] : memref<98xf32, #tpu.memory_space<smem>>
    %c62 = arith.constant 62 : index
    %267 = memref.load %arg6[%c62] : memref<98xf32, #tpu.memory_space<smem>>
    %268 = vector.broadcast %266 : f32 to vector<1x256xf32>
    %269 = arith.mulf %268, %264 : vector<1x256xf32>
    %270 = vector.broadcast %267 : f32 to vector<1x256xf32>
    %271 = arith.mulf %270, %265 : vector<1x256xf32>
    %272 = arith.addf %269, %271 : vector<1x256xf32>
    %c2_i32_72 = arith.constant 2 : i32
    %273 = vector.broadcast %c2_i32_72 : i32 to vector<1x256xi32>
    %274 = arith.cmpi sge, %43, %273 : vector<1x256xi32>
    %c13_i32_73 = arith.constant 13 : i32
    %275 = vector.broadcast %c13_i32_73 : i32 to vector<1x256xi32>
    %276 = arith.cmpi slt, %44, %275 : vector<1x256xi32>
    %277 = arith.andi %274, %276 : vector<1x256xi1>
    %cst_74 = arith.constant 0.000000e+00 : f32
    %278 = vector.broadcast %cst_74 : f32 to vector<1x256xf32>
    %279 = arith.select %277, %272, %278 : vector<1x256xi1>, vector<1x256xf32>
    %280 = arith.addf %263, %279 : vector<1x256xf32>
    %c19_i32 = arith.constant 19 : i32
    %281 = tpu.dynamic_rotate %40 by %c19_i32 dim 1 : vector<1x256xf32>, i32 -> vector<1x256xf32>
    %c19_i32_75 = arith.constant 19 : i32
    %282 = tpu.dynamic_rotate %42 by %c19_i32_75 dim 1 : vector<1x256xf32>, i32 -> vector<1x256xf32>
    %c14 = arith.constant 14 : index
    %283 = memref.load %arg6[%c14] : memref<98xf32, #tpu.memory_space<smem>>
    %c63 = arith.constant 63 : index
    %284 = memref.load %arg6[%c63] : memref<98xf32, #tpu.memory_space<smem>>
    %285 = vector.broadcast %283 : f32 to vector<1x256xf32>
    %286 = arith.mulf %285, %281 : vector<1x256xf32>
    %287 = vector.broadcast %284 : f32 to vector<1x256xf32>
    %288 = arith.mulf %287, %282 : vector<1x256xf32>
    %289 = arith.addf %286, %288 : vector<1x256xf32>
    %c1_i32_76 = arith.constant 1 : i32
    %290 = vector.broadcast %c1_i32_76 : i32 to vector<1x256xi32>
    %291 = arith.cmpi sge, %43, %290 : vector<1x256xi32>
    %c3_i32_77 = arith.constant 3 : i32
    %292 = vector.broadcast %c3_i32_77 : i32 to vector<1x256xi32>
    %293 = arith.cmpi sge, %44, %292 : vector<1x256xi32>
    %294 = arith.andi %291, %293 : vector<1x256xi1>
    %cst_78 = arith.constant 0.000000e+00 : f32
    %295 = vector.broadcast %cst_78 : f32 to vector<1x256xf32>
    %296 = arith.select %294, %289, %295 : vector<1x256xi1>, vector<1x256xf32>
    %297 = arith.addf %280, %296 : vector<1x256xf32>
    %c18_i32 = arith.constant 18 : i32
    %298 = tpu.dynamic_rotate %40 by %c18_i32 dim 1 : vector<1x256xf32>, i32 -> vector<1x256xf32>
    %c18_i32_79 = arith.constant 18 : i32
    %299 = tpu.dynamic_rotate %42 by %c18_i32_79 dim 1 : vector<1x256xf32>, i32 -> vector<1x256xf32>
    %c15 = arith.constant 15 : index
    %300 = memref.load %arg6[%c15] : memref<98xf32, #tpu.memory_space<smem>>
    %c64 = arith.constant 64 : index
    %301 = memref.load %arg6[%c64] : memref<98xf32, #tpu.memory_space<smem>>
    %302 = vector.broadcast %300 : f32 to vector<1x256xf32>
    %303 = arith.mulf %302, %298 : vector<1x256xf32>
    %304 = vector.broadcast %301 : f32 to vector<1x256xf32>
    %305 = arith.mulf %304, %299 : vector<1x256xf32>
    %306 = arith.addf %303, %305 : vector<1x256xf32>
    %c1_i32_80 = arith.constant 1 : i32
    %307 = vector.broadcast %c1_i32_80 : i32 to vector<1x256xi32>
    %308 = arith.cmpi sge, %43, %307 : vector<1x256xi32>
    %c2_i32_81 = arith.constant 2 : i32
    %309 = vector.broadcast %c2_i32_81 : i32 to vector<1x256xi32>
    %310 = arith.cmpi sge, %44, %309 : vector<1x256xi32>
    %311 = arith.andi %308, %310 : vector<1x256xi1>
    %cst_82 = arith.constant 0.000000e+00 : f32
    %312 = vector.broadcast %cst_82 : f32 to vector<1x256xf32>
    %313 = arith.select %311, %306, %312 : vector<1x256xi1>, vector<1x256xf32>
    %314 = arith.addf %297, %313 : vector<1x256xf32>
    %c17_i32 = arith.constant 17 : i32
    %315 = tpu.dynamic_rotate %40 by %c17_i32 dim 1 : vector<1x256xf32>, i32 -> vector<1x256xf32>
    %c17_i32_83 = arith.constant 17 : i32
    %316 = tpu.dynamic_rotate %42 by %c17_i32_83 dim 1 : vector<1x256xf32>, i32 -> vector<1x256xf32>
    %c16 = arith.constant 16 : index
    %317 = memref.load %arg6[%c16] : memref<98xf32, #tpu.memory_space<smem>>
    %c65 = arith.constant 65 : index
    %318 = memref.load %arg6[%c65] : memref<98xf32, #tpu.memory_space<smem>>
    %319 = vector.broadcast %317 : f32 to vector<1x256xf32>
    %320 = arith.mulf %319, %315 : vector<1x256xf32>
    %321 = vector.broadcast %318 : f32 to vector<1x256xf32>
    %322 = arith.mulf %321, %316 : vector<1x256xf32>
    %323 = arith.addf %320, %322 : vector<1x256xf32>
    %c1_i32_84 = arith.constant 1 : i32
    %324 = vector.broadcast %c1_i32_84 : i32 to vector<1x256xi32>
    %325 = arith.cmpi sge, %43, %324 : vector<1x256xi32>
    %c1_i32_85 = arith.constant 1 : i32
    %326 = vector.broadcast %c1_i32_85 : i32 to vector<1x256xi32>
    %327 = arith.cmpi sge, %44, %326 : vector<1x256xi32>
    %328 = arith.andi %325, %327 : vector<1x256xi1>
    %cst_86 = arith.constant 0.000000e+00 : f32
    %329 = vector.broadcast %cst_86 : f32 to vector<1x256xf32>
    %330 = arith.select %328, %323, %329 : vector<1x256xi1>, vector<1x256xf32>
    %331 = arith.addf %314, %330 : vector<1x256xf32>
    %c16_i32 = arith.constant 16 : i32
    %332 = tpu.dynamic_rotate %40 by %c16_i32 dim 1 : vector<1x256xf32>, i32 -> vector<1x256xf32>
    %c16_i32_87 = arith.constant 16 : i32
    %333 = tpu.dynamic_rotate %42 by %c16_i32_87 dim 1 : vector<1x256xf32>, i32 -> vector<1x256xf32>
    %c17 = arith.constant 17 : index
    %334 = memref.load %arg6[%c17] : memref<98xf32, #tpu.memory_space<smem>>
    %c66 = arith.constant 66 : index
    %335 = memref.load %arg6[%c66] : memref<98xf32, #tpu.memory_space<smem>>
    %336 = vector.broadcast %334 : f32 to vector<1x256xf32>
    %337 = arith.mulf %336, %332 : vector<1x256xf32>
    %338 = vector.broadcast %335 : f32 to vector<1x256xf32>
    %339 = arith.mulf %338, %333 : vector<1x256xf32>
    %340 = arith.addf %337, %339 : vector<1x256xf32>
    %c1_i32_88 = arith.constant 1 : i32
    %341 = vector.broadcast %c1_i32_88 : i32 to vector<1x256xi32>
    %342 = arith.cmpi sge, %43, %341 : vector<1x256xi32>
    %cst_89 = arith.constant 0.000000e+00 : f32
    %343 = vector.broadcast %cst_89 : f32 to vector<1x256xf32>
    %344 = arith.select %342, %340, %343 : vector<1x256xi1>, vector<1x256xf32>
    %345 = arith.addf %331, %344 : vector<1x256xf32>
    %c15_i32_90 = arith.constant 15 : i32
    %346 = tpu.dynamic_rotate %40 by %c15_i32_90 dim 1 : vector<1x256xf32>, i32 -> vector<1x256xf32>
    %c15_i32_91 = arith.constant 15 : i32
    %347 = tpu.dynamic_rotate %42 by %c15_i32_91 dim 1 : vector<1x256xf32>, i32 -> vector<1x256xf32>
    %c18 = arith.constant 18 : index
    %348 = memref.load %arg6[%c18] : memref<98xf32, #tpu.memory_space<smem>>
    %c67 = arith.constant 67 : index
    %349 = memref.load %arg6[%c67] : memref<98xf32, #tpu.memory_space<smem>>
    %350 = vector.broadcast %348 : f32 to vector<1x256xf32>
    %351 = arith.mulf %350, %346 : vector<1x256xf32>
    %352 = vector.broadcast %349 : f32 to vector<1x256xf32>
    %353 = arith.mulf %352, %347 : vector<1x256xf32>
    %354 = arith.addf %351, %353 : vector<1x256xf32>
    %c1_i32_92 = arith.constant 1 : i32
    %355 = vector.broadcast %c1_i32_92 : i32 to vector<1x256xi32>
    %356 = arith.cmpi sge, %43, %355 : vector<1x256xi32>
    %c15_i32_93 = arith.constant 15 : i32
    %357 = vector.broadcast %c15_i32_93 : i32 to vector<1x256xi32>
    %358 = arith.cmpi slt, %44, %357 : vector<1x256xi32>
    %359 = arith.andi %356, %358 : vector<1x256xi1>
    %cst_94 = arith.constant 0.000000e+00 : f32
    %360 = vector.broadcast %cst_94 : f32 to vector<1x256xf32>
    %361 = arith.select %359, %354, %360 : vector<1x256xi1>, vector<1x256xf32>
    %362 = arith.addf %345, %361 : vector<1x256xf32>
    %c14_i32_95 = arith.constant 14 : i32
    %363 = tpu.dynamic_rotate %40 by %c14_i32_95 dim 1 : vector<1x256xf32>, i32 -> vector<1x256xf32>
    %c14_i32_96 = arith.constant 14 : i32
    %364 = tpu.dynamic_rotate %42 by %c14_i32_96 dim 1 : vector<1x256xf32>, i32 -> vector<1x256xf32>
    %c19 = arith.constant 19 : index
    %365 = memref.load %arg6[%c19] : memref<98xf32, #tpu.memory_space<smem>>
    %c68 = arith.constant 68 : index
    %366 = memref.load %arg6[%c68] : memref<98xf32, #tpu.memory_space<smem>>
    %367 = vector.broadcast %365 : f32 to vector<1x256xf32>
    %368 = arith.mulf %367, %363 : vector<1x256xf32>
    %369 = vector.broadcast %366 : f32 to vector<1x256xf32>
    %370 = arith.mulf %369, %364 : vector<1x256xf32>
    %371 = arith.addf %368, %370 : vector<1x256xf32>
    %c1_i32_97 = arith.constant 1 : i32
    %372 = vector.broadcast %c1_i32_97 : i32 to vector<1x256xi32>
    %373 = arith.cmpi sge, %43, %372 : vector<1x256xi32>
    %c14_i32_98 = arith.constant 14 : i32
    %374 = vector.broadcast %c14_i32_98 : i32 to vector<1x256xi32>
    %375 = arith.cmpi slt, %44, %374 : vector<1x256xi32>
    %376 = arith.andi %373, %375 : vector<1x256xi1>
    %cst_99 = arith.constant 0.000000e+00 : f32
    %377 = vector.broadcast %cst_99 : f32 to vector<1x256xf32>
    %378 = arith.select %376, %371, %377 : vector<1x256xi1>, vector<1x256xf32>
    %379 = arith.addf %362, %378 : vector<1x256xf32>
    %c13_i32_100 = arith.constant 13 : i32
    %380 = tpu.dynamic_rotate %40 by %c13_i32_100 dim 1 : vector<1x256xf32>, i32 -> vector<1x256xf32>
    %c13_i32_101 = arith.constant 13 : i32
    %381 = tpu.dynamic_rotate %42 by %c13_i32_101 dim 1 : vector<1x256xf32>, i32 -> vector<1x256xf32>
    %c20 = arith.constant 20 : index
    %382 = memref.load %arg6[%c20] : memref<98xf32, #tpu.memory_space<smem>>
    %c69 = arith.constant 69 : index
    %383 = memref.load %arg6[%c69] : memref<98xf32, #tpu.memory_space<smem>>
    %384 = vector.broadcast %382 : f32 to vector<1x256xf32>
    %385 = arith.mulf %384, %380 : vector<1x256xf32>
    %386 = vector.broadcast %383 : f32 to vector<1x256xf32>
    %387 = arith.mulf %386, %381 : vector<1x256xf32>
    %388 = arith.addf %385, %387 : vector<1x256xf32>
    %c1_i32_102 = arith.constant 1 : i32
    %389 = vector.broadcast %c1_i32_102 : i32 to vector<1x256xi32>
    %390 = arith.cmpi sge, %43, %389 : vector<1x256xi32>
    %c13_i32_103 = arith.constant 13 : i32
    %391 = vector.broadcast %c13_i32_103 : i32 to vector<1x256xi32>
    %392 = arith.cmpi slt, %44, %391 : vector<1x256xi32>
    %393 = arith.andi %390, %392 : vector<1x256xi1>
    %cst_104 = arith.constant 0.000000e+00 : f32
    %394 = vector.broadcast %cst_104 : f32 to vector<1x256xf32>
    %395 = arith.select %393, %388, %394 : vector<1x256xi1>, vector<1x256xf32>
    %396 = arith.addf %379, %395 : vector<1x256xf32>
    %c3_i32_105 = arith.constant 3 : i32
    %397 = tpu.dynamic_rotate %40 by %c3_i32_105 dim 1 : vector<1x256xf32>, i32 -> vector<1x256xf32>
    %c3_i32_106 = arith.constant 3 : i32
    %398 = tpu.dynamic_rotate %42 by %c3_i32_106 dim 1 : vector<1x256xf32>, i32 -> vector<1x256xf32>
    %c21 = arith.constant 21 : index
    %399 = memref.load %arg6[%c21] : memref<98xf32, #tpu.memory_space<smem>>
    %c70 = arith.constant 70 : index
    %400 = memref.load %arg6[%c70] : memref<98xf32, #tpu.memory_space<smem>>
    %401 = vector.broadcast %399 : f32 to vector<1x256xf32>
    %402 = arith.mulf %401, %397 : vector<1x256xf32>
    %403 = vector.broadcast %400 : f32 to vector<1x256xf32>
    %404 = arith.mulf %403, %398 : vector<1x256xf32>
    %405 = arith.addf %402, %404 : vector<1x256xf32>
    %c3_i32_107 = arith.constant 3 : i32
    %406 = vector.broadcast %c3_i32_107 : i32 to vector<1x256xi32>
    %407 = arith.cmpi sge, %44, %406 : vector<1x256xi32>
    %cst_108 = arith.constant 0.000000e+00 : f32
    %408 = vector.broadcast %cst_108 : f32 to vector<1x256xf32>
    %409 = arith.select %407, %405, %408 : vector<1x256xi1>, vector<1x256xf32>
    %410 = arith.addf %396, %409 : vector<1x256xf32>
    %c2_i32_109 = arith.constant 2 : i32
    %411 = tpu.dynamic_rotate %40 by %c2_i32_109 dim 1 : vector<1x256xf32>, i32 -> vector<1x256xf32>
    %c2_i32_110 = arith.constant 2 : i32
    %412 = tpu.dynamic_rotate %42 by %c2_i32_110 dim 1 : vector<1x256xf32>, i32 -> vector<1x256xf32>
    %c22 = arith.constant 22 : index
    %413 = memref.load %arg6[%c22] : memref<98xf32, #tpu.memory_space<smem>>
    %c71 = arith.constant 71 : index
    %414 = memref.load %arg6[%c71] : memref<98xf32, #tpu.memory_space<smem>>
    %415 = vector.broadcast %413 : f32 to vector<1x256xf32>
    %416 = arith.mulf %415, %411 : vector<1x256xf32>
    %417 = vector.broadcast %414 : f32 to vector<1x256xf32>
    %418 = arith.mulf %417, %412 : vector<1x256xf32>
    %419 = arith.addf %416, %418 : vector<1x256xf32>
    %c2_i32_111 = arith.constant 2 : i32
    %420 = vector.broadcast %c2_i32_111 : i32 to vector<1x256xi32>
    %421 = arith.cmpi sge, %44, %420 : vector<1x256xi32>
    %cst_112 = arith.constant 0.000000e+00 : f32
    %422 = vector.broadcast %cst_112 : f32 to vector<1x256xf32>
    %423 = arith.select %421, %419, %422 : vector<1x256xi1>, vector<1x256xf32>
    %424 = arith.addf %410, %423 : vector<1x256xf32>
    %c1_i32_113 = arith.constant 1 : i32
    %425 = tpu.dynamic_rotate %40 by %c1_i32_113 dim 1 : vector<1x256xf32>, i32 -> vector<1x256xf32>
    %c1_i32_114 = arith.constant 1 : i32
    %426 = tpu.dynamic_rotate %42 by %c1_i32_114 dim 1 : vector<1x256xf32>, i32 -> vector<1x256xf32>
    %c23 = arith.constant 23 : index
    %427 = memref.load %arg6[%c23] : memref<98xf32, #tpu.memory_space<smem>>
    %c72 = arith.constant 72 : index
    %428 = memref.load %arg6[%c72] : memref<98xf32, #tpu.memory_space<smem>>
    %429 = vector.broadcast %427 : f32 to vector<1x256xf32>
    %430 = arith.mulf %429, %425 : vector<1x256xf32>
    %431 = vector.broadcast %428 : f32 to vector<1x256xf32>
    %432 = arith.mulf %431, %426 : vector<1x256xf32>
    %433 = arith.addf %430, %432 : vector<1x256xf32>
    %c1_i32_115 = arith.constant 1 : i32
    %434 = vector.broadcast %c1_i32_115 : i32 to vector<1x256xi32>
    %435 = arith.cmpi sge, %44, %434 : vector<1x256xi32>
    %cst_116 = arith.constant 0.000000e+00 : f32
    %436 = vector.broadcast %cst_116 : f32 to vector<1x256xf32>
    %437 = arith.select %435, %433, %436 : vector<1x256xi1>, vector<1x256xf32>
    %438 = arith.addf %424, %437 : vector<1x256xf32>
    %c24 = arith.constant 24 : index
    %439 = memref.load %arg6[%c24] : memref<98xf32, #tpu.memory_space<smem>>
    %c73 = arith.constant 73 : index
    %440 = memref.load %arg6[%c73] : memref<98xf32, #tpu.memory_space<smem>>
    %441 = vector.broadcast %439 : f32 to vector<1x256xf32>
    %442 = arith.mulf %441, %40 : vector<1x256xf32>
    %443 = vector.broadcast %440 : f32 to vector<1x256xf32>
    %444 = arith.mulf %443, %42 : vector<1x256xf32>
    %445 = arith.addf %442, %444 : vector<1x256xf32>
    %446 = arith.addf %438, %445 : vector<1x256xf32>
    %c255_i32 = arith.constant 255 : i32
    %447 = tpu.dynamic_rotate %40 by %c255_i32 dim 1 : vector<1x256xf32>, i32 -> vector<1x256xf32>
    %c255_i32_117 = arith.constant 255 : i32
    %448 = tpu.dynamic_rotate %42 by %c255_i32_117 dim 1 : vector<1x256xf32>, i32 -> vector<1x256xf32>
    %c25 = arith.constant 25 : index
    %449 = memref.load %arg6[%c25] : memref<98xf32, #tpu.memory_space<smem>>
    %c74 = arith.constant 74 : index
    %450 = memref.load %arg6[%c74] : memref<98xf32, #tpu.memory_space<smem>>
    %451 = vector.broadcast %449 : f32 to vector<1x256xf32>
    %452 = arith.mulf %451, %447 : vector<1x256xf32>
    %453 = vector.broadcast %450 : f32 to vector<1x256xf32>
    %454 = arith.mulf %453, %448 : vector<1x256xf32>
    %455 = arith.addf %452, %454 : vector<1x256xf32>
    %c15_i32_118 = arith.constant 15 : i32
    %456 = vector.broadcast %c15_i32_118 : i32 to vector<1x256xi32>
    %457 = arith.cmpi slt, %44, %456 : vector<1x256xi32>
    %cst_119 = arith.constant 0.000000e+00 : f32
    %458 = vector.broadcast %cst_119 : f32 to vector<1x256xf32>
    %459 = arith.select %457, %455, %458 : vector<1x256xi1>, vector<1x256xf32>
    %460 = arith.addf %446, %459 : vector<1x256xf32>
    %c254_i32 = arith.constant 254 : i32
    %461 = tpu.dynamic_rotate %40 by %c254_i32 dim 1 : vector<1x256xf32>, i32 -> vector<1x256xf32>
    %c254_i32_120 = arith.constant 254 : i32
    %462 = tpu.dynamic_rotate %42 by %c254_i32_120 dim 1 : vector<1x256xf32>, i32 -> vector<1x256xf32>
    %c26 = arith.constant 26 : index
    %463 = memref.load %arg6[%c26] : memref<98xf32, #tpu.memory_space<smem>>
    %c75 = arith.constant 75 : index
    %464 = memref.load %arg6[%c75] : memref<98xf32, #tpu.memory_space<smem>>
    %465 = vector.broadcast %463 : f32 to vector<1x256xf32>
    %466 = arith.mulf %465, %461 : vector<1x256xf32>
    %467 = vector.broadcast %464 : f32 to vector<1x256xf32>
    %468 = arith.mulf %467, %462 : vector<1x256xf32>
    %469 = arith.addf %466, %468 : vector<1x256xf32>
    %c14_i32_121 = arith.constant 14 : i32
    %470 = vector.broadcast %c14_i32_121 : i32 to vector<1x256xi32>
    %471 = arith.cmpi slt, %44, %470 : vector<1x256xi32>
    %cst_122 = arith.constant 0.000000e+00 : f32
    %472 = vector.broadcast %cst_122 : f32 to vector<1x256xf32>
    %473 = arith.select %471, %469, %472 : vector<1x256xi1>, vector<1x256xf32>
    %474 = arith.addf %460, %473 : vector<1x256xf32>
    %c253_i32 = arith.constant 253 : i32
    %475 = tpu.dynamic_rotate %40 by %c253_i32 dim 1 : vector<1x256xf32>, i32 -> vector<1x256xf32>
    %c253_i32_123 = arith.constant 253 : i32
    %476 = tpu.dynamic_rotate %42 by %c253_i32_123 dim 1 : vector<1x256xf32>, i32 -> vector<1x256xf32>
    %c27 = arith.constant 27 : index
    %477 = memref.load %arg6[%c27] : memref<98xf32, #tpu.memory_space<smem>>
    %c76 = arith.constant 76 : index
    %478 = memref.load %arg6[%c76] : memref<98xf32, #tpu.memory_space<smem>>
    %479 = vector.broadcast %477 : f32 to vector<1x256xf32>
    %480 = arith.mulf %479, %475 : vector<1x256xf32>
    %481 = vector.broadcast %478 : f32 to vector<1x256xf32>
    %482 = arith.mulf %481, %476 : vector<1x256xf32>
    %483 = arith.addf %480, %482 : vector<1x256xf32>
    %c13_i32_124 = arith.constant 13 : i32
    %484 = vector.broadcast %c13_i32_124 : i32 to vector<1x256xi32>
    %485 = arith.cmpi slt, %44, %484 : vector<1x256xi32>
    %cst_125 = arith.constant 0.000000e+00 : f32
    %486 = vector.broadcast %cst_125 : f32 to vector<1x256xf32>
    %487 = arith.select %485, %483, %486 : vector<1x256xi1>, vector<1x256xf32>
    %488 = arith.addf %474, %487 : vector<1x256xf32>
    %c243_i32 = arith.constant 243 : i32
    %489 = tpu.dynamic_rotate %40 by %c243_i32 dim 1 : vector<1x256xf32>, i32 -> vector<1x256xf32>
    %c243_i32_126 = arith.constant 243 : i32
    %490 = tpu.dynamic_rotate %42 by %c243_i32_126 dim 1 : vector<1x256xf32>, i32 -> vector<1x256xf32>
    %c28 = arith.constant 28 : index
    %491 = memref.load %arg6[%c28] : memref<98xf32, #tpu.memory_space<smem>>
    %c77 = arith.constant 77 : index
    %492 = memref.load %arg6[%c77] : memref<98xf32, #tpu.memory_space<smem>>
    %493 = vector.broadcast %491 : f32 to vector<1x256xf32>
    %494 = arith.mulf %493, %489 : vector<1x256xf32>
    %495 = vector.broadcast %492 : f32 to vector<1x256xf32>
    %496 = arith.mulf %495, %490 : vector<1x256xf32>
    %497 = arith.addf %494, %496 : vector<1x256xf32>
    %c15_i32_127 = arith.constant 15 : i32
    %498 = vector.broadcast %c15_i32_127 : i32 to vector<1x256xi32>
    %499 = arith.cmpi slt, %43, %498 : vector<1x256xi32>
    %c3_i32_128 = arith.constant 3 : i32
    %500 = vector.broadcast %c3_i32_128 : i32 to vector<1x256xi32>
    %501 = arith.cmpi sge, %44, %500 : vector<1x256xi32>
    %502 = arith.andi %499, %501 : vector<1x256xi1>
    %cst_129 = arith.constant 0.000000e+00 : f32
    %503 = vector.broadcast %cst_129 : f32 to vector<1x256xf32>
    %504 = arith.select %502, %497, %503 : vector<1x256xi1>, vector<1x256xf32>
    %505 = arith.addf %488, %504 : vector<1x256xf32>
    %c242_i32 = arith.constant 242 : i32
    %506 = tpu.dynamic_rotate %40 by %c242_i32 dim 1 : vector<1x256xf32>, i32 -> vector<1x256xf32>
    %c242_i32_130 = arith.constant 242 : i32
    %507 = tpu.dynamic_rotate %42 by %c242_i32_130 dim 1 : vector<1x256xf32>, i32 -> vector<1x256xf32>
    %c29 = arith.constant 29 : index
    %508 = memref.load %arg6[%c29] : memref<98xf32, #tpu.memory_space<smem>>
    %c78 = arith.constant 78 : index
    %509 = memref.load %arg6[%c78] : memref<98xf32, #tpu.memory_space<smem>>
    %510 = vector.broadcast %508 : f32 to vector<1x256xf32>
    %511 = arith.mulf %510, %506 : vector<1x256xf32>
    %512 = vector.broadcast %509 : f32 to vector<1x256xf32>
    %513 = arith.mulf %512, %507 : vector<1x256xf32>
    %514 = arith.addf %511, %513 : vector<1x256xf32>
    %c15_i32_131 = arith.constant 15 : i32
    %515 = vector.broadcast %c15_i32_131 : i32 to vector<1x256xi32>
    %516 = arith.cmpi slt, %43, %515 : vector<1x256xi32>
    %c2_i32_132 = arith.constant 2 : i32
    %517 = vector.broadcast %c2_i32_132 : i32 to vector<1x256xi32>
    %518 = arith.cmpi sge, %44, %517 : vector<1x256xi32>
    %519 = arith.andi %516, %518 : vector<1x256xi1>
    %cst_133 = arith.constant 0.000000e+00 : f32
    %520 = vector.broadcast %cst_133 : f32 to vector<1x256xf32>
    %521 = arith.select %519, %514, %520 : vector<1x256xi1>, vector<1x256xf32>
    %522 = arith.addf %505, %521 : vector<1x256xf32>
    %c241_i32 = arith.constant 241 : i32
    %523 = tpu.dynamic_rotate %40 by %c241_i32 dim 1 : vector<1x256xf32>, i32 -> vector<1x256xf32>
    %c241_i32_134 = arith.constant 241 : i32
    %524 = tpu.dynamic_rotate %42 by %c241_i32_134 dim 1 : vector<1x256xf32>, i32 -> vector<1x256xf32>
    %c30 = arith.constant 30 : index
    %525 = memref.load %arg6[%c30] : memref<98xf32, #tpu.memory_space<smem>>
    %c79 = arith.constant 79 : index
    %526 = memref.load %arg6[%c79] : memref<98xf32, #tpu.memory_space<smem>>
    %527 = vector.broadcast %525 : f32 to vector<1x256xf32>
    %528 = arith.mulf %527, %523 : vector<1x256xf32>
    %529 = vector.broadcast %526 : f32 to vector<1x256xf32>
    %530 = arith.mulf %529, %524 : vector<1x256xf32>
    %531 = arith.addf %528, %530 : vector<1x256xf32>
    %c15_i32_135 = arith.constant 15 : i32
    %532 = vector.broadcast %c15_i32_135 : i32 to vector<1x256xi32>
    %533 = arith.cmpi slt, %43, %532 : vector<1x256xi32>
    %c1_i32_136 = arith.constant 1 : i32
    %534 = vector.broadcast %c1_i32_136 : i32 to vector<1x256xi32>
    %535 = arith.cmpi sge, %44, %534 : vector<1x256xi32>
    %536 = arith.andi %533, %535 : vector<1x256xi1>
    %cst_137 = arith.constant 0.000000e+00 : f32
    %537 = vector.broadcast %cst_137 : f32 to vector<1x256xf32>
    %538 = arith.select %536, %531, %537 : vector<1x256xi1>, vector<1x256xf32>
    %539 = arith.addf %522, %538 : vector<1x256xf32>
    %c240_i32 = arith.constant 240 : i32
    %540 = tpu.dynamic_rotate %40 by %c240_i32 dim 1 : vector<1x256xf32>, i32 -> vector<1x256xf32>
    %c240_i32_138 = arith.constant 240 : i32
    %541 = tpu.dynamic_rotate %42 by %c240_i32_138 dim 1 : vector<1x256xf32>, i32 -> vector<1x256xf32>
    %c31 = arith.constant 31 : index
    %542 = memref.load %arg6[%c31] : memref<98xf32, #tpu.memory_space<smem>>
    %c80 = arith.constant 80 : index
    %543 = memref.load %arg6[%c80] : memref<98xf32, #tpu.memory_space<smem>>
    %544 = vector.broadcast %542 : f32 to vector<1x256xf32>
    %545 = arith.mulf %544, %540 : vector<1x256xf32>
    %546 = vector.broadcast %543 : f32 to vector<1x256xf32>
    %547 = arith.mulf %546, %541 : vector<1x256xf32>
    %548 = arith.addf %545, %547 : vector<1x256xf32>
    %c15_i32_139 = arith.constant 15 : i32
    %549 = vector.broadcast %c15_i32_139 : i32 to vector<1x256xi32>
    %550 = arith.cmpi slt, %43, %549 : vector<1x256xi32>
    %cst_140 = arith.constant 0.000000e+00 : f32
    %551 = vector.broadcast %cst_140 : f32 to vector<1x256xf32>
    %552 = arith.select %550, %548, %551 : vector<1x256xi1>, vector<1x256xf32>
    %553 = arith.addf %539, %552 : vector<1x256xf32>
    %c239_i32 = arith.constant 239 : i32
    %554 = tpu.dynamic_rotate %40 by %c239_i32 dim 1 : vector<1x256xf32>, i32 -> vector<1x256xf32>
    %c239_i32_141 = arith.constant 239 : i32
    %555 = tpu.dynamic_rotate %42 by %c239_i32_141 dim 1 : vector<1x256xf32>, i32 -> vector<1x256xf32>
    %c32 = arith.constant 32 : index
    %556 = memref.load %arg6[%c32] : memref<98xf32, #tpu.memory_space<smem>>
    %c81 = arith.constant 81 : index
    %557 = memref.load %arg6[%c81] : memref<98xf32, #tpu.memory_space<smem>>
    %558 = vector.broadcast %556 : f32 to vector<1x256xf32>
    %559 = arith.mulf %558, %554 : vector<1x256xf32>
    %560 = vector.broadcast %557 : f32 to vector<1x256xf32>
    %561 = arith.mulf %560, %555 : vector<1x256xf32>
    %562 = arith.addf %559, %561 : vector<1x256xf32>
    %c15_i32_142 = arith.constant 15 : i32
    %563 = vector.broadcast %c15_i32_142 : i32 to vector<1x256xi32>
    %564 = arith.cmpi slt, %43, %563 : vector<1x256xi32>
    %c15_i32_143 = arith.constant 15 : i32
    %565 = vector.broadcast %c15_i32_143 : i32 to vector<1x256xi32>
    %566 = arith.cmpi slt, %44, %565 : vector<1x256xi32>
    %567 = arith.andi %564, %566 : vector<1x256xi1>
    %cst_144 = arith.constant 0.000000e+00 : f32
    %568 = vector.broadcast %cst_144 : f32 to vector<1x256xf32>
    %569 = arith.select %567, %562, %568 : vector<1x256xi1>, vector<1x256xf32>
    %570 = arith.addf %553, %569 : vector<1x256xf32>
    %c238_i32 = arith.constant 238 : i32
    %571 = tpu.dynamic_rotate %40 by %c238_i32 dim 1 : vector<1x256xf32>, i32 -> vector<1x256xf32>
    %c238_i32_145 = arith.constant 238 : i32
    %572 = tpu.dynamic_rotate %42 by %c238_i32_145 dim 1 : vector<1x256xf32>, i32 -> vector<1x256xf32>
    %c33 = arith.constant 33 : index
    %573 = memref.load %arg6[%c33] : memref<98xf32, #tpu.memory_space<smem>>
    %c82 = arith.constant 82 : index
    %574 = memref.load %arg6[%c82] : memref<98xf32, #tpu.memory_space<smem>>
    %575 = vector.broadcast %573 : f32 to vector<1x256xf32>
    %576 = arith.mulf %575, %571 : vector<1x256xf32>
    %577 = vector.broadcast %574 : f32 to vector<1x256xf32>
    %578 = arith.mulf %577, %572 : vector<1x256xf32>
    %579 = arith.addf %576, %578 : vector<1x256xf32>
    %c15_i32_146 = arith.constant 15 : i32
    %580 = vector.broadcast %c15_i32_146 : i32 to vector<1x256xi32>
    %581 = arith.cmpi slt, %43, %580 : vector<1x256xi32>
    %c14_i32_147 = arith.constant 14 : i32
    %582 = vector.broadcast %c14_i32_147 : i32 to vector<1x256xi32>
    %583 = arith.cmpi slt, %44, %582 : vector<1x256xi32>
    %584 = arith.andi %581, %583 : vector<1x256xi1>
    %cst_148 = arith.constant 0.000000e+00 : f32
    %585 = vector.broadcast %cst_148 : f32 to vector<1x256xf32>
    %586 = arith.select %584, %579, %585 : vector<1x256xi1>, vector<1x256xf32>
    %587 = arith.addf %570, %586 : vector<1x256xf32>
    %c237_i32 = arith.constant 237 : i32
    %588 = tpu.dynamic_rotate %40 by %c237_i32 dim 1 : vector<1x256xf32>, i32 -> vector<1x256xf32>
    %c237_i32_149 = arith.constant 237 : i32
    %589 = tpu.dynamic_rotate %42 by %c237_i32_149 dim 1 : vector<1x256xf32>, i32 -> vector<1x256xf32>
    %c34 = arith.constant 34 : index
    %590 = memref.load %arg6[%c34] : memref<98xf32, #tpu.memory_space<smem>>
    %c83 = arith.constant 83 : index
    %591 = memref.load %arg6[%c83] : memref<98xf32, #tpu.memory_space<smem>>
    %592 = vector.broadcast %590 : f32 to vector<1x256xf32>
    %593 = arith.mulf %592, %588 : vector<1x256xf32>
    %594 = vector.broadcast %591 : f32 to vector<1x256xf32>
    %595 = arith.mulf %594, %589 : vector<1x256xf32>
    %596 = arith.addf %593, %595 : vector<1x256xf32>
    %c15_i32_150 = arith.constant 15 : i32
    %597 = vector.broadcast %c15_i32_150 : i32 to vector<1x256xi32>
    %598 = arith.cmpi slt, %43, %597 : vector<1x256xi32>
    %c13_i32_151 = arith.constant 13 : i32
    %599 = vector.broadcast %c13_i32_151 : i32 to vector<1x256xi32>
    %600 = arith.cmpi slt, %44, %599 : vector<1x256xi32>
    %601 = arith.andi %598, %600 : vector<1x256xi1>
    %cst_152 = arith.constant 0.000000e+00 : f32
    %602 = vector.broadcast %cst_152 : f32 to vector<1x256xf32>
    %603 = arith.select %601, %596, %602 : vector<1x256xi1>, vector<1x256xf32>
    %604 = arith.addf %587, %603 : vector<1x256xf32>
    %c227_i32 = arith.constant 227 : i32
    %605 = tpu.dynamic_rotate %40 by %c227_i32 dim 1 : vector<1x256xf32>, i32 -> vector<1x256xf32>
    %c227_i32_153 = arith.constant 227 : i32
    %606 = tpu.dynamic_rotate %42 by %c227_i32_153 dim 1 : vector<1x256xf32>, i32 -> vector<1x256xf32>
    %c35 = arith.constant 35 : index
    %607 = memref.load %arg6[%c35] : memref<98xf32, #tpu.memory_space<smem>>
    %c84 = arith.constant 84 : index
    %608 = memref.load %arg6[%c84] : memref<98xf32, #tpu.memory_space<smem>>
    %609 = vector.broadcast %607 : f32 to vector<1x256xf32>
    %610 = arith.mulf %609, %605 : vector<1x256xf32>
    %611 = vector.broadcast %608 : f32 to vector<1x256xf32>
    %612 = arith.mulf %611, %606 : vector<1x256xf32>
    %613 = arith.addf %610, %612 : vector<1x256xf32>
    %c14_i32_154 = arith.constant 14 : i32
    %614 = vector.broadcast %c14_i32_154 : i32 to vector<1x256xi32>
    %615 = arith.cmpi slt, %43, %614 : vector<1x256xi32>
    %c3_i32_155 = arith.constant 3 : i32
    %616 = vector.broadcast %c3_i32_155 : i32 to vector<1x256xi32>
    %617 = arith.cmpi sge, %44, %616 : vector<1x256xi32>
    %618 = arith.andi %615, %617 : vector<1x256xi1>
    %cst_156 = arith.constant 0.000000e+00 : f32
    %619 = vector.broadcast %cst_156 : f32 to vector<1x256xf32>
    %620 = arith.select %618, %613, %619 : vector<1x256xi1>, vector<1x256xf32>
    %621 = arith.addf %604, %620 : vector<1x256xf32>
    %c226_i32 = arith.constant 226 : i32
    %622 = tpu.dynamic_rotate %40 by %c226_i32 dim 1 : vector<1x256xf32>, i32 -> vector<1x256xf32>
    %c226_i32_157 = arith.constant 226 : i32
    %623 = tpu.dynamic_rotate %42 by %c226_i32_157 dim 1 : vector<1x256xf32>, i32 -> vector<1x256xf32>
    %c36 = arith.constant 36 : index
    %624 = memref.load %arg6[%c36] : memref<98xf32, #tpu.memory_space<smem>>
    %c85 = arith.constant 85 : index
    %625 = memref.load %arg6[%c85] : memref<98xf32, #tpu.memory_space<smem>>
    %626 = vector.broadcast %624 : f32 to vector<1x256xf32>
    %627 = arith.mulf %626, %622 : vector<1x256xf32>
    %628 = vector.broadcast %625 : f32 to vector<1x256xf32>
    %629 = arith.mulf %628, %623 : vector<1x256xf32>
    %630 = arith.addf %627, %629 : vector<1x256xf32>
    %c14_i32_158 = arith.constant 14 : i32
    %631 = vector.broadcast %c14_i32_158 : i32 to vector<1x256xi32>
    %632 = arith.cmpi slt, %43, %631 : vector<1x256xi32>
    %c2_i32_159 = arith.constant 2 : i32
    %633 = vector.broadcast %c2_i32_159 : i32 to vector<1x256xi32>
    %634 = arith.cmpi sge, %44, %633 : vector<1x256xi32>
    %635 = arith.andi %632, %634 : vector<1x256xi1>
    %cst_160 = arith.constant 0.000000e+00 : f32
    %636 = vector.broadcast %cst_160 : f32 to vector<1x256xf32>
    %637 = arith.select %635, %630, %636 : vector<1x256xi1>, vector<1x256xf32>
    %638 = arith.addf %621, %637 : vector<1x256xf32>
    %c225_i32 = arith.constant 225 : i32
    %639 = tpu.dynamic_rotate %40 by %c225_i32 dim 1 : vector<1x256xf32>, i32 -> vector<1x256xf32>
    %c225_i32_161 = arith.constant 225 : i32
    %640 = tpu.dynamic_rotate %42 by %c225_i32_161 dim 1 : vector<1x256xf32>, i32 -> vector<1x256xf32>
    %c37 = arith.constant 37 : index
    %641 = memref.load %arg6[%c37] : memref<98xf32, #tpu.memory_space<smem>>
    %c86 = arith.constant 86 : index
    %642 = memref.load %arg6[%c86] : memref<98xf32, #tpu.memory_space<smem>>
    %643 = vector.broadcast %641 : f32 to vector<1x256xf32>
    %644 = arith.mulf %643, %639 : vector<1x256xf32>
    %645 = vector.broadcast %642 : f32 to vector<1x256xf32>
    %646 = arith.mulf %645, %640 : vector<1x256xf32>
    %647 = arith.addf %644, %646 : vector<1x256xf32>
    %c14_i32_162 = arith.constant 14 : i32
    %648 = vector.broadcast %c14_i32_162 : i32 to vector<1x256xi32>
    %649 = arith.cmpi slt, %43, %648 : vector<1x256xi32>
    %c1_i32_163 = arith.constant 1 : i32
    %650 = vector.broadcast %c1_i32_163 : i32 to vector<1x256xi32>
    %651 = arith.cmpi sge, %44, %650 : vector<1x256xi32>
    %652 = arith.andi %649, %651 : vector<1x256xi1>
    %cst_164 = arith.constant 0.000000e+00 : f32
    %653 = vector.broadcast %cst_164 : f32 to vector<1x256xf32>
    %654 = arith.select %652, %647, %653 : vector<1x256xi1>, vector<1x256xf32>
    %655 = arith.addf %638, %654 : vector<1x256xf32>
    %c224_i32 = arith.constant 224 : i32
    %656 = tpu.dynamic_rotate %40 by %c224_i32 dim 1 : vector<1x256xf32>, i32 -> vector<1x256xf32>
    %c224_i32_165 = arith.constant 224 : i32
    %657 = tpu.dynamic_rotate %42 by %c224_i32_165 dim 1 : vector<1x256xf32>, i32 -> vector<1x256xf32>
    %c38 = arith.constant 38 : index
    %658 = memref.load %arg6[%c38] : memref<98xf32, #tpu.memory_space<smem>>
    %c87 = arith.constant 87 : index
    %659 = memref.load %arg6[%c87] : memref<98xf32, #tpu.memory_space<smem>>
    %660 = vector.broadcast %658 : f32 to vector<1x256xf32>
    %661 = arith.mulf %660, %656 : vector<1x256xf32>
    %662 = vector.broadcast %659 : f32 to vector<1x256xf32>
    %663 = arith.mulf %662, %657 : vector<1x256xf32>
    %664 = arith.addf %661, %663 : vector<1x256xf32>
    %c14_i32_166 = arith.constant 14 : i32
    %665 = vector.broadcast %c14_i32_166 : i32 to vector<1x256xi32>
    %666 = arith.cmpi slt, %43, %665 : vector<1x256xi32>
    %cst_167 = arith.constant 0.000000e+00 : f32
    %667 = vector.broadcast %cst_167 : f32 to vector<1x256xf32>
    %668 = arith.select %666, %664, %667 : vector<1x256xi1>, vector<1x256xf32>
    %669 = arith.addf %655, %668 : vector<1x256xf32>
    %c223_i32 = arith.constant 223 : i32
    %670 = tpu.dynamic_rotate %40 by %c223_i32 dim 1 : vector<1x256xf32>, i32 -> vector<1x256xf32>
    %c223_i32_168 = arith.constant 223 : i32
    %671 = tpu.dynamic_rotate %42 by %c223_i32_168 dim 1 : vector<1x256xf32>, i32 -> vector<1x256xf32>
    %c39 = arith.constant 39 : index
    %672 = memref.load %arg6[%c39] : memref<98xf32, #tpu.memory_space<smem>>
    %c88 = arith.constant 88 : index
    %673 = memref.load %arg6[%c88] : memref<98xf32, #tpu.memory_space<smem>>
    %674 = vector.broadcast %672 : f32 to vector<1x256xf32>
    %675 = arith.mulf %674, %670 : vector<1x256xf32>
    %676 = vector.broadcast %673 : f32 to vector<1x256xf32>
    %677 = arith.mulf %676, %671 : vector<1x256xf32>
    %678 = arith.addf %675, %677 : vector<1x256xf32>
    %c14_i32_169 = arith.constant 14 : i32
    %679 = vector.broadcast %c14_i32_169 : i32 to vector<1x256xi32>
    %680 = arith.cmpi slt, %43, %679 : vector<1x256xi32>
    %c15_i32_170 = arith.constant 15 : i32
    %681 = vector.broadcast %c15_i32_170 : i32 to vector<1x256xi32>
    %682 = arith.cmpi slt, %44, %681 : vector<1x256xi32>
    %683 = arith.andi %680, %682 : vector<1x256xi1>
    %cst_171 = arith.constant 0.000000e+00 : f32
    %684 = vector.broadcast %cst_171 : f32 to vector<1x256xf32>
    %685 = arith.select %683, %678, %684 : vector<1x256xi1>, vector<1x256xf32>
    %686 = arith.addf %669, %685 : vector<1x256xf32>
    %c222_i32 = arith.constant 222 : i32
    %687 = tpu.dynamic_rotate %40 by %c222_i32 dim 1 : vector<1x256xf32>, i32 -> vector<1x256xf32>
    %c222_i32_172 = arith.constant 222 : i32
    %688 = tpu.dynamic_rotate %42 by %c222_i32_172 dim 1 : vector<1x256xf32>, i32 -> vector<1x256xf32>
    %c40 = arith.constant 40 : index
    %689 = memref.load %arg6[%c40] : memref<98xf32, #tpu.memory_space<smem>>
    %c89 = arith.constant 89 : index
    %690 = memref.load %arg6[%c89] : memref<98xf32, #tpu.memory_space<smem>>
    %691 = vector.broadcast %689 : f32 to vector<1x256xf32>
    %692 = arith.mulf %691, %687 : vector<1x256xf32>
    %693 = vector.broadcast %690 : f32 to vector<1x256xf32>
    %694 = arith.mulf %693, %688 : vector<1x256xf32>
    %695 = arith.addf %692, %694 : vector<1x256xf32>
    %c14_i32_173 = arith.constant 14 : i32
    %696 = vector.broadcast %c14_i32_173 : i32 to vector<1x256xi32>
    %697 = arith.cmpi slt, %43, %696 : vector<1x256xi32>
    %c14_i32_174 = arith.constant 14 : i32
    %698 = vector.broadcast %c14_i32_174 : i32 to vector<1x256xi32>
    %699 = arith.cmpi slt, %44, %698 : vector<1x256xi32>
    %700 = arith.andi %697, %699 : vector<1x256xi1>
    %cst_175 = arith.constant 0.000000e+00 : f32
    %701 = vector.broadcast %cst_175 : f32 to vector<1x256xf32>
    %702 = arith.select %700, %695, %701 : vector<1x256xi1>, vector<1x256xf32>
    %703 = arith.addf %686, %702 : vector<1x256xf32>
    %c221_i32 = arith.constant 221 : i32
    %704 = tpu.dynamic_rotate %40 by %c221_i32 dim 1 : vector<1x256xf32>, i32 -> vector<1x256xf32>
    %c221_i32_176 = arith.constant 221 : i32
    %705 = tpu.dynamic_rotate %42 by %c221_i32_176 dim 1 : vector<1x256xf32>, i32 -> vector<1x256xf32>
    %c41 = arith.constant 41 : index
    %706 = memref.load %arg6[%c41] : memref<98xf32, #tpu.memory_space<smem>>
    %c90 = arith.constant 90 : index
    %707 = memref.load %arg6[%c90] : memref<98xf32, #tpu.memory_space<smem>>
    %708 = vector.broadcast %706 : f32 to vector<1x256xf32>
    %709 = arith.mulf %708, %704 : vector<1x256xf32>
    %710 = vector.broadcast %707 : f32 to vector<1x256xf32>
    %711 = arith.mulf %710, %705 : vector<1x256xf32>
    %712 = arith.addf %709, %711 : vector<1x256xf32>
    %c14_i32_177 = arith.constant 14 : i32
    %713 = vector.broadcast %c14_i32_177 : i32 to vector<1x256xi32>
    %714 = arith.cmpi slt, %43, %713 : vector<1x256xi32>
    %c13_i32_178 = arith.constant 13 : i32
    %715 = vector.broadcast %c13_i32_178 : i32 to vector<1x256xi32>
    %716 = arith.cmpi slt, %44, %715 : vector<1x256xi32>
    %717 = arith.andi %714, %716 : vector<1x256xi1>
    %cst_179 = arith.constant 0.000000e+00 : f32
    %718 = vector.broadcast %cst_179 : f32 to vector<1x256xf32>
    %719 = arith.select %717, %712, %718 : vector<1x256xi1>, vector<1x256xf32>
    %720 = arith.addf %703, %719 : vector<1x256xf32>
    %c211_i32 = arith.constant 211 : i32
    %721 = tpu.dynamic_rotate %40 by %c211_i32 dim 1 : vector<1x256xf32>, i32 -> vector<1x256xf32>
    %c211_i32_180 = arith.constant 211 : i32
    %722 = tpu.dynamic_rotate %42 by %c211_i32_180 dim 1 : vector<1x256xf32>, i32 -> vector<1x256xf32>
    %c42 = arith.constant 42 : index
    %723 = memref.load %arg6[%c42] : memref<98xf32, #tpu.memory_space<smem>>
    %c91 = arith.constant 91 : index
    %724 = memref.load %arg6[%c91] : memref<98xf32, #tpu.memory_space<smem>>
    %725 = vector.broadcast %723 : f32 to vector<1x256xf32>
    %726 = arith.mulf %725, %721 : vector<1x256xf32>
    %727 = vector.broadcast %724 : f32 to vector<1x256xf32>
    %728 = arith.mulf %727, %722 : vector<1x256xf32>
    %729 = arith.addf %726, %728 : vector<1x256xf32>
    %c13_i32_181 = arith.constant 13 : i32
    %730 = vector.broadcast %c13_i32_181 : i32 to vector<1x256xi32>
    %731 = arith.cmpi slt, %43, %730 : vector<1x256xi32>
    %c3_i32_182 = arith.constant 3 : i32
    %732 = vector.broadcast %c3_i32_182 : i32 to vector<1x256xi32>
    %733 = arith.cmpi sge, %44, %732 : vector<1x256xi32>
    %734 = arith.andi %731, %733 : vector<1x256xi1>
    %cst_183 = arith.constant 0.000000e+00 : f32
    %735 = vector.broadcast %cst_183 : f32 to vector<1x256xf32>
    %736 = arith.select %734, %729, %735 : vector<1x256xi1>, vector<1x256xf32>
    %737 = arith.addf %720, %736 : vector<1x256xf32>
    %c210_i32 = arith.constant 210 : i32
    %738 = tpu.dynamic_rotate %40 by %c210_i32 dim 1 : vector<1x256xf32>, i32 -> vector<1x256xf32>
    %c210_i32_184 = arith.constant 210 : i32
    %739 = tpu.dynamic_rotate %42 by %c210_i32_184 dim 1 : vector<1x256xf32>, i32 -> vector<1x256xf32>
    %c43 = arith.constant 43 : index
    %740 = memref.load %arg6[%c43] : memref<98xf32, #tpu.memory_space<smem>>
    %c92 = arith.constant 92 : index
    %741 = memref.load %arg6[%c92] : memref<98xf32, #tpu.memory_space<smem>>
    %742 = vector.broadcast %740 : f32 to vector<1x256xf32>
    %743 = arith.mulf %742, %738 : vector<1x256xf32>
    %744 = vector.broadcast %741 : f32 to vector<1x256xf32>
    %745 = arith.mulf %744, %739 : vector<1x256xf32>
    %746 = arith.addf %743, %745 : vector<1x256xf32>
    %c13_i32_185 = arith.constant 13 : i32
    %747 = vector.broadcast %c13_i32_185 : i32 to vector<1x256xi32>
    %748 = arith.cmpi slt, %43, %747 : vector<1x256xi32>
    %c2_i32_186 = arith.constant 2 : i32
    %749 = vector.broadcast %c2_i32_186 : i32 to vector<1x256xi32>
    %750 = arith.cmpi sge, %44, %749 : vector<1x256xi32>
    %751 = arith.andi %748, %750 : vector<1x256xi1>
    %cst_187 = arith.constant 0.000000e+00 : f32
    %752 = vector.broadcast %cst_187 : f32 to vector<1x256xf32>
    %753 = arith.select %751, %746, %752 : vector<1x256xi1>, vector<1x256xf32>
    %754 = arith.addf %737, %753 : vector<1x256xf32>
    %c209_i32 = arith.constant 209 : i32
    %755 = tpu.dynamic_rotate %40 by %c209_i32 dim 1 : vector<1x256xf32>, i32 -> vector<1x256xf32>
    %c209_i32_188 = arith.constant 209 : i32
    %756 = tpu.dynamic_rotate %42 by %c209_i32_188 dim 1 : vector<1x256xf32>, i32 -> vector<1x256xf32>
    %c44 = arith.constant 44 : index
    %757 = memref.load %arg6[%c44] : memref<98xf32, #tpu.memory_space<smem>>
    %c93 = arith.constant 93 : index
    %758 = memref.load %arg6[%c93] : memref<98xf32, #tpu.memory_space<smem>>
    %759 = vector.broadcast %757 : f32 to vector<1x256xf32>
    %760 = arith.mulf %759, %755 : vector<1x256xf32>
    %761 = vector.broadcast %758 : f32 to vector<1x256xf32>
    %762 = arith.mulf %761, %756 : vector<1x256xf32>
    %763 = arith.addf %760, %762 : vector<1x256xf32>
    %c13_i32_189 = arith.constant 13 : i32
    %764 = vector.broadcast %c13_i32_189 : i32 to vector<1x256xi32>
    %765 = arith.cmpi slt, %43, %764 : vector<1x256xi32>
    %c1_i32_190 = arith.constant 1 : i32
    %766 = vector.broadcast %c1_i32_190 : i32 to vector<1x256xi32>
    %767 = arith.cmpi sge, %44, %766 : vector<1x256xi32>
    %768 = arith.andi %765, %767 : vector<1x256xi1>
    %cst_191 = arith.constant 0.000000e+00 : f32
    %769 = vector.broadcast %cst_191 : f32 to vector<1x256xf32>
    %770 = arith.select %768, %763, %769 : vector<1x256xi1>, vector<1x256xf32>
    %771 = arith.addf %754, %770 : vector<1x256xf32>
    %c208_i32 = arith.constant 208 : i32
    %772 = tpu.dynamic_rotate %40 by %c208_i32 dim 1 : vector<1x256xf32>, i32 -> vector<1x256xf32>
    %c208_i32_192 = arith.constant 208 : i32
    %773 = tpu.dynamic_rotate %42 by %c208_i32_192 dim 1 : vector<1x256xf32>, i32 -> vector<1x256xf32>
    %c45 = arith.constant 45 : index
    %774 = memref.load %arg6[%c45] : memref<98xf32, #tpu.memory_space<smem>>
    %c94 = arith.constant 94 : index
    %775 = memref.load %arg6[%c94] : memref<98xf32, #tpu.memory_space<smem>>
    %776 = vector.broadcast %774 : f32 to vector<1x256xf32>
    %777 = arith.mulf %776, %772 : vector<1x256xf32>
    %778 = vector.broadcast %775 : f32 to vector<1x256xf32>
    %779 = arith.mulf %778, %773 : vector<1x256xf32>
    %780 = arith.addf %777, %779 : vector<1x256xf32>
    %c13_i32_193 = arith.constant 13 : i32
    %781 = vector.broadcast %c13_i32_193 : i32 to vector<1x256xi32>
    %782 = arith.cmpi slt, %43, %781 : vector<1x256xi32>
    %cst_194 = arith.constant 0.000000e+00 : f32
    %783 = vector.broadcast %cst_194 : f32 to vector<1x256xf32>
    %784 = arith.select %782, %780, %783 : vector<1x256xi1>, vector<1x256xf32>
    %785 = arith.addf %771, %784 : vector<1x256xf32>
    %c207_i32 = arith.constant 207 : i32
    %786 = tpu.dynamic_rotate %40 by %c207_i32 dim 1 : vector<1x256xf32>, i32 -> vector<1x256xf32>
    %c207_i32_195 = arith.constant 207 : i32
    %787 = tpu.dynamic_rotate %42 by %c207_i32_195 dim 1 : vector<1x256xf32>, i32 -> vector<1x256xf32>
    %c46 = arith.constant 46 : index
    %788 = memref.load %arg6[%c46] : memref<98xf32, #tpu.memory_space<smem>>
    %c95 = arith.constant 95 : index
    %789 = memref.load %arg6[%c95] : memref<98xf32, #tpu.memory_space<smem>>
    %790 = vector.broadcast %788 : f32 to vector<1x256xf32>
    %791 = arith.mulf %790, %786 : vector<1x256xf32>
    %792 = vector.broadcast %789 : f32 to vector<1x256xf32>
    %793 = arith.mulf %792, %787 : vector<1x256xf32>
    %794 = arith.addf %791, %793 : vector<1x256xf32>
    %c13_i32_196 = arith.constant 13 : i32
    %795 = vector.broadcast %c13_i32_196 : i32 to vector<1x256xi32>
    %796 = arith.cmpi slt, %43, %795 : vector<1x256xi32>
    %c15_i32_197 = arith.constant 15 : i32
    %797 = vector.broadcast %c15_i32_197 : i32 to vector<1x256xi32>
    %798 = arith.cmpi slt, %44, %797 : vector<1x256xi32>
    %799 = arith.andi %796, %798 : vector<1x256xi1>
    %cst_198 = arith.constant 0.000000e+00 : f32
    %800 = vector.broadcast %cst_198 : f32 to vector<1x256xf32>
    %801 = arith.select %799, %794, %800 : vector<1x256xi1>, vector<1x256xf32>
    %802 = arith.addf %785, %801 : vector<1x256xf32>
    %c206_i32 = arith.constant 206 : i32
    %803 = tpu.dynamic_rotate %40 by %c206_i32 dim 1 : vector<1x256xf32>, i32 -> vector<1x256xf32>
    %c206_i32_199 = arith.constant 206 : i32
    %804 = tpu.dynamic_rotate %42 by %c206_i32_199 dim 1 : vector<1x256xf32>, i32 -> vector<1x256xf32>
    %c47 = arith.constant 47 : index
    %805 = memref.load %arg6[%c47] : memref<98xf32, #tpu.memory_space<smem>>
    %c96 = arith.constant 96 : index
    %806 = memref.load %arg6[%c96] : memref<98xf32, #tpu.memory_space<smem>>
    %807 = vector.broadcast %805 : f32 to vector<1x256xf32>
    %808 = arith.mulf %807, %803 : vector<1x256xf32>
    %809 = vector.broadcast %806 : f32 to vector<1x256xf32>
    %810 = arith.mulf %809, %804 : vector<1x256xf32>
    %811 = arith.addf %808, %810 : vector<1x256xf32>
    %c13_i32_200 = arith.constant 13 : i32
    %812 = vector.broadcast %c13_i32_200 : i32 to vector<1x256xi32>
    %813 = arith.cmpi slt, %43, %812 : vector<1x256xi32>
    %c14_i32_201 = arith.constant 14 : i32
    %814 = vector.broadcast %c14_i32_201 : i32 to vector<1x256xi32>
    %815 = arith.cmpi slt, %44, %814 : vector<1x256xi32>
    %816 = arith.andi %813, %815 : vector<1x256xi1>
    %cst_202 = arith.constant 0.000000e+00 : f32
    %817 = vector.broadcast %cst_202 : f32 to vector<1x256xf32>
    %818 = arith.select %816, %811, %817 : vector<1x256xi1>, vector<1x256xf32>
    %819 = arith.addf %802, %818 : vector<1x256xf32>
    %c205_i32 = arith.constant 205 : i32
    %820 = tpu.dynamic_rotate %40 by %c205_i32 dim 1 : vector<1x256xf32>, i32 -> vector<1x256xf32>
    %c205_i32_203 = arith.constant 205 : i32
    %821 = tpu.dynamic_rotate %42 by %c205_i32_203 dim 1 : vector<1x256xf32>, i32 -> vector<1x256xf32>
    %c48 = arith.constant 48 : index
    %822 = memref.load %arg6[%c48] : memref<98xf32, #tpu.memory_space<smem>>
    %c97 = arith.constant 97 : index
    %823 = memref.load %arg6[%c97] : memref<98xf32, #tpu.memory_space<smem>>
    %824 = vector.broadcast %822 : f32 to vector<1x256xf32>
    %825 = arith.mulf %824, %820 : vector<1x256xf32>
    %826 = vector.broadcast %823 : f32 to vector<1x256xf32>
    %827 = arith.mulf %826, %821 : vector<1x256xf32>
    %828 = arith.addf %825, %827 : vector<1x256xf32>
    %c13_i32_204 = arith.constant 13 : i32
    %829 = vector.broadcast %c13_i32_204 : i32 to vector<1x256xi32>
    %830 = arith.cmpi slt, %43, %829 : vector<1x256xi32>
    %c13_i32_205 = arith.constant 13 : i32
    %831 = vector.broadcast %c13_i32_205 : i32 to vector<1x256xi32>
    %832 = arith.cmpi slt, %44, %831 : vector<1x256xi32>
    %833 = arith.andi %830, %832 : vector<1x256xi1>
    %cst_206 = arith.constant 0.000000e+00 : f32
    %834 = vector.broadcast %cst_206 : f32 to vector<1x256xf32>
    %835 = arith.select %833, %828, %834 : vector<1x256xi1>, vector<1x256xf32>
    %836 = arith.addf %819, %835 : vector<1x256xf32>
    %837 = arith.negf %836 : vector<1x256xf32>
    %838 = math.exp %837 : vector<1x256xf32>
    %cst_207 = arith.constant 1.000000e+00 : f32
    %839 = vector.broadcast %cst_207 : f32 to vector<1x256xf32>
    %840 = arith.addf %839, %838 : vector<1x256xf32>
    %841 = arith.divf %839, %840 : vector<1x256xf32>
    %842 = vector.broadcast %841 : vector<1x256xf32> to vector<32x256xf32>
    %843 = arith.mulf %36, %842 : vector<32x256xf32>
    %c0_208 = arith.constant 0 : index
    %c0_209 = arith.constant 0 : index
    %c0_210 = arith.constant 0 : index
    %844 = vector.load %arg10[%c0_208, %c0_209, %c0_210] : memref<1x32x256xf32, #tpu.memory_space<vmem>>, vector<1x32x256xf32>
    %845 = vector.shape_cast %844 : vector<1x32x256xf32> to vector<32x256xf32>
    %846 = vector.shape_cast %843 : vector<32x256xf32> to vector<1x32x256xf32>
    tpu.vector_store %arg10[%c0_208, %c0_209, %c0_210], %846 {strides = array<i32>} : memref<1x32x256xf32, #tpu.memory_space<vmem>>, vector<1x32x256xf32>,
    return
  }
  func.func @transform_0(%arg0: i32) -> (i32, i32, i32) {
    %c0_i32 = arith.constant 0 : i32
    %c0_i32_0 = arith.constant 0 : i32
    %c0_i32_1 = arith.constant 0 : i32
    return %arg0, %c0_i32, %c0_i32_0 : i32, i32, i32
  }
  func.func @transform_1(%arg0: i32) -> (i32, i32) {
    %c0_i32 = arith.constant 0 : i32
    %c0_i32_0 = arith.constant 0 : i32
    %c0_i32_1 = arith.constant 0 : i32
    return %c0_i32, %c0_i32_0 : i32, i32
  }
  func.func @transform_2(%arg0: i32) -> (i32, i32) {
    %c0_i32 = arith.constant 0 : i32
    %c0_i32_0 = arith.constant 0 : i32
    %c0_i32_1 = arith.constant 0 : i32
    return %c0_i32, %c0_i32_0 : i32, i32
  }
  func.func @transform_3(%arg0: i32) -> (i32, i32) {
    %c0_i32 = arith.constant 0 : i32
    %c0_i32_0 = arith.constant 0 : i32
    %c0_i32_1 = arith.constant 0 : i32
    return %c0_i32, %c0_i32_0 : i32, i32
  }
  func.func @transform_4(%arg0: i32) -> (i32, i32) {
    %c0_i32 = arith.constant 0 : i32
    %c0_i32_0 = arith.constant 0 : i32
    %c0_i32_1 = arith.constant 0 : i32
    return %c0_i32, %c0_i32_0 : i32, i32
  }
  func.func @transform_5(%arg0: i32) -> i32 {
    %c0_i32 = arith.constant 0 : i32
    %c0_i32_0 = arith.constant 0 : i32
    return %c0_i32 : i32
  }
  func.func @transform_6(%arg0: i32) -> i32 {
    %c0_i32 = arith.constant 0 : i32
    %c0_i32_0 = arith.constant 0 : i32
    return %c0_i32 : i32
  }
  func.func @transform_7(%arg0: i32) -> (i32, i32) {
    %c0_i32 = arith.constant 0 : i32
    %c0_i32_0 = arith.constant 0 : i32
    %c0_i32_1 = arith.constant 0 : i32
    return %c0_i32, %c0_i32_0 : i32, i32
  }
  func.func @transform_8(%arg0: i32) -> (i32, i32) {
    %c0_i32 = arith.constant 0 : i32
    %c0_i32_0 = arith.constant 0 : i32
    %c0_i32_1 = arith.constant 0 : i32
    return %c0_i32, %c0_i32_0 : i32, i32
  }
  func.func @transform_9(%arg0: i32) -> (i32, i32, i32) {
    %c0_i32 = arith.constant 0 : i32
    %c0_i32_0 = arith.constant 0 : i32
    %c0_i32_1 = arith.constant 0 : i32
    return %arg0, %c0_i32, %c0_i32_0 : i32, i32, i32
  }
}

</mosaic_0001>

<llo_original>
// kernel: tpu_custom_call.1
$region0: #{tpu_custom_call.1}
  #allocation0 [shape = 'u32[]', space=smem, size = 0x4, offset = 0x4, fixed_abs, tag = 'smem constant byte address 0x4 - core index']
  #allocation1 [shape = 'u32[144,128]{1,0:T(1,128)}', space=vmem, size = 0x12000, scoped, tag = 'internal scratch']
  #allocation2 [shape = 'f32[1]{0:T(128)S(6)}', space=smem, size = 0x200, scoped, tag = 'scoped memory for tpu_custom_call.1']
  %s0 = inlined_call_operand.hbm [shape: f32[2,32,256], index: 0, kind: input, shape index: {}]
  %s1 = inlined_call_operand.vmem [shape: f32[2,32], index: 1, kind: input, shape index: {}]
  %s2 = inlined_call_operand.vmem [shape: f32[2,1], index: 2, kind: input, shape index: {}]
  %s3 = inlined_call_operand.vmem [shape: f32[32,2], index: 3, kind: input, shape index: {}]
  %s4 = inlined_call_operand.vmem [shape: f32[32,1], index: 4, kind: input, shape index: {}]
  %s5 = inlined_call_operand.vmem [shape: f32[98], index: 5, kind: input, shape index: {}]
  %s6 = inlined_call_operand.<no memory space> [shape: f32[1], index: 6, kind: input, shape index: {}]
  %s7 = inlined_call_operand.vmem [shape: s32[1,256], index: 7, kind: input, shape index: {}]
  %s8 = inlined_call_operand.vmem [shape: s32[1,256], index: 8, kind: input, shape index: {}]
  %s9 = inlined_call_operand.hbm [shape: f32[2,32,256], index: 9, kind: output, shape index: {}]
  %s10 = sld [smem:[#allocation0]]
  $region77: #{tpu_custom_call.1} parent=0
    _
  %s12 = ssub.s32 1, %s10
  %s13 = scalar_select 0, %s12, %s10
  %14 = sst [smem:[#allocation2]] %s6
  $region1: #{tpu_custom_call.1} parent=0
    #allocation3 [shape = 'u8[65536]{0}', space=vmem, size = 0x10000, scoped, tag = 'input window, operand 0']
    #allocation4 [shape = 's32[2]{0}', space=sflag, size = 0x8, scoped, tag = 'scoped memory for tpu_custom_call.1']
    #allocation5 [shape = 's32[2]{0}', space=sflag, size = 0x8, scoped, tag = 'scoped memory for tpu_custom_call.1']
    #allocation6 [shape = 's32[2]{0}', space=sflag, size = 0x8, scoped, tag = 'scoped memory for tpu_custom_call.1']
    #allocation7 [shape = 'u8[512]{0}', space=smem, size = 0x200, scoped, tag = 'input window, operand 5, single buffered']
    #allocation8 [shape = 'u8[65536]{0}', space=vmem, size = 0x10000, scoped, tag = 'output window, operand 0']
    %15 = vsyncpa [#allocation4], 0
    %s16 = scalar_lea.sflag [#allocation4], 1
    %17 = vsyncpa %s16, 0
    %18 = vsyncpa [#allocation6], 0
    %19 = vsyncpa [#allocation5], 0
    %s20 = scalar_lea.sflag [#allocation5], 1
    %21 = vsyncpa %s20, 0
    loop: start=0, step=1, limit=4
    $region2: #{tpu_custom_call.1} parent=1 // loop_pre_header
      _
    $region3: #{tpu_custom_call.1} parent=1 // loop_header
      %s23 = sphi 0, %s27
      %p24 = scmp.ge.s32.totalorder %s23, 4
      %s33 = sphi 0, %s35
      %s36 = sphi 0, %s33
      %s37 = sphi 0, %s36
      %s53 = sphi 0, %s37
      %s57 = sphi 0, %s57
      %s59 = sphi 0, %s57
      %s60 = sphi 0, %s59
      %s74 = sphi 0, %s60
      %s78 = sphi 0, %s78
      %s80 = sphi 0, %s78
      %s81 = sphi 0, %s80
      %s95 = sphi 0, %s81
      %s99 = sphi 0, %s99
      %s101 = sphi 0, %s99
      %s102 = sphi 0, %s101
      %s116 = sphi 0, %s102
      %s120 = sphi 0, %s120
      %s122 = sphi 0, %s120
      %s123 = sphi 0, %s122
      %s137 = sphi 0, %s123
      %s141 = sphi 0, %s141
      %s143 = sphi 0, %s141
      %s144 = sphi 0, %s143
      %s158 = sphi 0, %s144
      %s162 = sphi 0, %s162
      %s164 = sphi 0, %s162
      %s165 = sphi 0, %s164
      %s179 = sphi 0, %s165
      %s183 = sphi 0, %s183
      %s185 = sphi 0, %s183
      %s186 = sphi 0, %s185
      %s200 = sphi 0, %s186
      %s204 = sphi 0, %s204
      %s206 = sphi 0, %s204
      %s207 = sphi 0, %s206
      %s221 = sphi 0, %s207
      %s227 = sphi 0, %s229
      %s230 = sphi 0, %s227
      %s231 = sphi 0, %s230
      %s247 = sphi 0, %s231
    $region4: #{tpu_custom_call.1} parent=1 // loop_header_branch
      %26 = sbr.rel (%p24) target = $region8
    $region5: #{tpu_custom_call.1} parent=1 // loop_body
      %s28 = ssub.s32 %s23, 1
      %s29 = ssub.s32 %s23, 2
      %s30 = sadd.s32 %s23, 1
      %s31 = ssub.s32 %s23, %s30
      %p32 = scmp.eq.s32.totalorder %s31, 0
      %s34 = sadd.s32 %s33, 1
      %s35 = scalar_select %p32, %s33, %s34
      %p38 = pneg %p32
      %p39 = scmp.eq.s32.totalorder %s23, 1
      %p40 = por %p38, %p39
      %p41 = scmp.ne.s32.totalorder %s33, %s36
      %p42 = scmp.eq.s32.totalorder %s23, 0
      %p43 = por %p41, %p42
      %p44 = scmp.ne.s32.totalorder %s33, %s36
      %p45 = scmp.eq.s32.totalorder %s28, 1
      %p46 = por %p44, %p45
      %p47 = scmp.ne.s32.totalorder %s36, %s37
      %p48 = scmp.eq.s32.totalorder %s28, 0
      %p49 = por %p47, %p48
      %p50 = scmp.ne.s32.totalorder %s36, %s37
      %p51 = scmp.eq.s32.totalorder %s29, 1
      %p52 = por %p50, %p51
      %p54 = scmp.ne.s32.totalorder %s37, %s53
      %p55 = scmp.eq.s32.totalorder %s29, 0
      %p56 = por %p54, %p55
      %s58 = sadd.s32 %s57, 1
      %p61 = scmp.eq.s32.totalorder %s23, 1
      %p62 = scmp.ne.s32.totalorder %s57, %s59
      %p63 = scmp.eq.s32.totalorder %s23, 0
      %p64 = por %p62, %p63
      %p65 = scmp.ne.s32.totalorder %s57, %s59
      %p66 = scmp.eq.s32.totalorder %s28, 1
      %p67 = por %p65, %p66
      %p68 = scmp.ne.s32.totalorder %s59, %s60
      %p69 = scmp.eq.s32.totalorder %s28, 0
      %p70 = por %p68, %p69
      %p71 = scmp.ne.s32.totalorder %s59, %s60
      %p72 = scmp.eq.s32.totalorder %s29, 1
      %p73 = por %p71, %p72
      %p75 = scmp.ne.s32.totalorder %s60, %s74
      %p76 = scmp.eq.s32.totalorder %s29, 0
      %p77 = por %p75, %p76
      %s79 = sadd.s32 %s78, 1
      %p82 = scmp.eq.s32.totalorder %s23, 1
      %p83 = scmp.ne.s32.totalorder %s78, %s80
      %p84 = scmp.eq.s32.totalorder %s23, 0
      %p85 = por %p83, %p84
      %p86 = scmp.ne.s32.totalorder %s78, %s80
      %p87 = scmp.eq.s32.totalorder %s28, 1
      %p88 = por %p86, %p87
      %p89 = scmp.ne.s32.totalorder %s80, %s81
      %p90 = scmp.eq.s32.totalorder %s28, 0
      %p91 = por %p89, %p90
      %p92 = scmp.ne.s32.totalorder %s80, %s81
      %p93 = scmp.eq.s32.totalorder %s29, 1
      %p94 = por %p92, %p93
      %p96 = scmp.ne.s32.totalorder %s81, %s95
      %p97 = scmp.eq.s32.totalorder %s29, 0
      %p98 = por %p96, %p97
      %s100 = sadd.s32 %s99, 1
      %p103 = scmp.eq.s32.totalorder %s23, 1
      %p104 = scmp.ne.s32.totalorder %s99, %s101
      %p105 = scmp.eq.s32.totalorder %s23, 0
      %p106 = por %p104, %p105
      %p107 = scmp.ne.s32.totalorder %s99, %s101
      %p108 = scmp.eq.s32.totalorder %s28, 1
      %p109 = por %p107, %p108
      %p110 = scmp.ne.s32.totalorder %s101, %s102
      %p111 = scmp.eq.s32.totalorder %s28, 0
      %p112 = por %p110, %p111
      %p113 = scmp.ne.s32.totalorder %s101, %s102
      %p114 = scmp.eq.s32.totalorder %s29, 1
      %p115 = por %p113, %p114
      %p117 = scmp.ne.s32.totalorder %s102, %s116
      %p118 = scmp.eq.s32.totalorder %s29, 0
      %p119 = por %p117, %p118
      %s121 = sadd.s32 %s120, 1
      %p124 = scmp.eq.s32.totalorder %s23, 1
      %p125 = scmp.ne.s32.totalorder %s120, %s122
      %p126 = scmp.eq.s32.totalorder %s23, 0
      %p127 = por %p125, %p126
      %p128 = scmp.ne.s32.totalorder %s120, %s122
      %p129 = scmp.eq.s32.totalorder %s28, 1
      %p130 = por %p128, %p129
      %p131 = scmp.ne.s32.totalorder %s122, %s123
      %p132 = scmp.eq.s32.totalorder %s28, 0
      %p133 = por %p131, %p132
      %p134 = scmp.ne.s32.totalorder %s122, %s123
      %p135 = scmp.eq.s32.totalorder %s29, 1
      %p136 = por %p134, %p135
      %p138 = scmp.ne.s32.totalorder %s123, %s137
      %p139 = scmp.eq.s32.totalorder %s29, 0
      %p140 = por %p138, %p139
      %s142 = sadd.s32 %s141, 1
      %p145 = scmp.eq.s32.totalorder %s23, 1
      %p146 = scmp.ne.s32.totalorder %s141, %s143
      %p147 = scmp.eq.s32.totalorder %s23, 0
      %p148 = por %p146, %p147
      %p149 = scmp.ne.s32.totalorder %s141, %s143
      %p150 = scmp.eq.s32.totalorder %s28, 1
      %p151 = por %p149, %p150
      %p152 = scmp.ne.s32.totalorder %s143, %s144
      %p153 = scmp.eq.s32.totalorder %s28, 0
      %p154 = por %p152, %p153
      %p155 = scmp.ne.s32.totalorder %s143, %s144
      %p156 = scmp.eq.s32.totalorder %s29, 1
      %p157 = por %p155, %p156
      %p159 = scmp.ne.s32.totalorder %s144, %s158
      %p160 = scmp.eq.s32.totalorder %s29, 0
      %p161 = por %p159, %p160
      %s163 = sadd.s32 %s162, 1
      %p166 = scmp.eq.s32.totalorder %s23, 1
      %p167 = scmp.ne.s32.totalorder %s162, %s164
      %p168 = scmp.eq.s32.totalorder %s23, 0
      %p169 = por %p167, %p168
      %p170 = scmp.ne.s32.totalorder %s162, %s164
      %p171 = scmp.eq.s32.totalorder %s28, 1
      %p172 = por %p170, %p171
      %p173 = scmp.ne.s32.totalorder %s164, %s165
      %p174 = scmp.eq.s32.totalorder %s28, 0
      %p175 = por %p173, %p174
      %p176 = scmp.ne.s32.totalorder %s164, %s165
      %p177 = scmp.eq.s32.totalorder %s29, 1
      %p178 = por %p176, %p177
      %p180 = scmp.ne.s32.totalorder %s165, %s179
      %p181 = scmp.eq.s32.totalorder %s29, 0
      %p182 = por %p180, %p181
      %s184 = sadd.s32 %s183, 1
      %p187 = scmp.eq.s32.totalorder %s23, 1
      %p188 = scmp.ne.s32.totalorder %s183, %s185
      %p189 = scmp.eq.s32.totalorder %s23, 0
      %p190 = por %p188, %p189
      %p191 = scmp.ne.s32.totalorder %s183, %s185
      %p192 = scmp.eq.s32.totalorder %s28, 1
      %p193 = por %p191, %p192
      %p194 = scmp.ne.s32.totalorder %s185, %s186
      %p195 = scmp.eq.s32.totalorder %s28, 0
      %p196 = por %p194, %p195
      %p197 = scmp.ne.s32.totalorder %s185, %s186
      %p198 = scmp.eq.s32.totalorder %s29, 1
      %p199 = por %p197, %p198
      %p201 = scmp.ne.s32.totalorder %s186, %s200
      %p202 = scmp.eq.s32.totalorder %s29, 0
      %p203 = por %p201, %p202
      %s205 = sadd.s32 %s204, 1
      %p208 = scmp.eq.s32.totalorder %s23, 1
      %p209 = scmp.ne.s32.totalorder %s204, %s206
      %p210 = scmp.eq.s32.totalorder %s23, 0
      %p211 = por %p209, %p210
      %p212 = scmp.ne.s32.totalorder %s204, %s206
      %p213 = scmp.eq.s32.totalorder %s28, 1
      %p214 = por %p212, %p213
      %p215 = scmp.ne.s32.totalorder %s206, %s207
      %p216 = scmp.eq.s32.totalorder %s28, 0
      %p217 = por %p215, %p216
      %p218 = scmp.ne.s32.totalorder %s206, %s207
      %p219 = scmp.eq.s32.totalorder %s29, 1
      %p220 = por %p218, %p219
      %p222 = scmp.ne.s32.totalorder %s207, %s221
      %p223 = scmp.eq.s32.totalorder %s29, 0
      %p224 = por %p222, %p223
      %s225 = ssub.s32 %s23, %s30
      %p226 = scmp.eq.s32.totalorder %s225, 0
      %s228 = sadd.s32 %s227, 1
      %s229 = scalar_select %p226, %s227, %s228
      %p232 = pneg %p226
      %p233 = scmp.eq.s32.totalorder %s23, 1
      %p234 = por %p232, %p233
      %p235 = scmp.ne.s32.totalorder %s227, %s230
      %p236 = scmp.eq.s32.totalorder %s23, 0
      %p237 = por %p235, %p236
      %p238 = scmp.ne.s32.totalorder %s227, %s230
      %p239 = scmp.eq.s32.totalorder %s28, 1
      %p240 = por %p238, %p239
      %p241 = scmp.ne.s32.totalorder %s230, %s231
      %p242 = scmp.eq.s32.totalorder %s28, 0
      %p243 = por %p241, %p242
      %p244 = scmp.ne.s32.totalorder %s230, %s231
      %p245 = scmp.eq.s32.totalorder %s29, 1
      %p246 = por %p244, %p245
      %p248 = scmp.ne.s32.totalorder %s231, %s247
      %p249 = scmp.eq.s32.totalorder %s29, 0
      %p250 = por %p248, %p249
      %p251 = scmp.le.s32.totalorder 1, %s23
      %p252 = scmp.lt.s32.totalorder %s23, 3
      %p253 = pnand %p251, %p252
      %p254 = pneg %p253
      // Predicated region
      $region9: #{tpu_custom_call.1} parent=5 // pred_check
        _
      $region10: #{tpu_custom_call.1} parent=5 // pred_check_branch
        %256 = sbr.rel (%p253) target = $region12
      $region11: #{tpu_custom_call.1} parent=5 // pred_region
        %s257 = ssub.s32 %s23, 1
        // Predicated region
        $region13: #{tpu_custom_call.1} parent=11 // pred_check
          %p258 = pneg %p70
        $region14: #{tpu_custom_call.1} parent=11 // pred_check_branch
          %260 = sbr.rel (%p258) target = $region16
        $region15: #{tpu_custom_call.1} parent=11 // pred_region
          _
        $region16: #{tpu_custom_call.1} parent=11 // pred_fallthru
          _
        // Predicated region
        $region17: #{tpu_custom_call.1} parent=11 // pred_check
          %p261 = pneg %p91
        $region18: #{tpu_custom_call.1} parent=11 // pred_check_branch
          %263 = sbr.rel (%p261) target = $region20
        $region19: #{tpu_custom_call.1} parent=11 // pred_region
          _
        $region20: #{tpu_custom_call.1} parent=11 // pred_fallthru
          _
        // Predicated region
        $region21: #{tpu_custom_call.1} parent=11 // pred_check
          %p264 = pneg %p112
        $region22: #{tpu_custom_call.1} parent=11 // pred_check_branch
          %266 = sbr.rel (%p264) target = $region24
        $region23: #{tpu_custom_call.1} parent=11 // pred_region
          _
        $region24: #{tpu_custom_call.1} parent=11 // pred_fallthru
          _
        // Predicated region
        $region25: #{tpu_custom_call.1} parent=11 // pred_check
          %p267 = pneg %p133
        $region26: #{tpu_custom_call.1} parent=11 // pred_check_branch
          %269 = sbr.rel (%p267) target = $region28
        $region27: #{tpu_custom_call.1} parent=11 // pred_region
          _
        $region28: #{tpu_custom_call.1} parent=11 // pred_fallthru
          _
        // Predicated region
        $region29: #{tpu_custom_call.1} parent=11 // pred_check
          %p270 = pneg %p154
        $region30: #{tpu_custom_call.1} parent=11 // pred_check_branch
          %272 = sbr.rel (%p270) target = $region32
        $region31: #{tpu_custom_call.1} parent=11 // pred_region
          %s274 = ssub.s32 16, 16
          %275 = vsyncadd [#allocation6], %s274
          %s277 = sshll.u32 %s5, 4
          %s278 = int_to_ptr.vmem [resolvable:$true] %s277
          %280 = dma.vmem_to_smem %s278, 16, [#allocation7], [#allocation6]
        $region32: #{tpu_custom_call.1} parent=11 // pred_fallthru
          _
        // Predicated region
        $region33: #{tpu_custom_call.1} parent=11 // pred_check
          %p281 = pneg %p175
        $region34: #{tpu_custom_call.1} parent=11 // pred_check_branch
          %283 = sbr.rel (%p281) target = $region36
        $region35: #{tpu_custom_call.1} parent=11 // pred_region
          _
        $region36: #{tpu_custom_call.1} parent=11 // pred_fallthru
          _
        // Predicated region
        $region37: #{tpu_custom_call.1} parent=11 // pred_check
          %p284 = pneg %p196
        $region38: #{tpu_custom_call.1} parent=11 // pred_check_branch
          %286 = sbr.rel (%p284) target = $region40
        $region39: #{tpu_custom_call.1} parent=11 // pred_region
          _
        $region40: #{tpu_custom_call.1} parent=11 // pred_fallthru
          _
        // Predicated region
        $region41: #{tpu_custom_call.1} parent=11 // pred_check
          %p287 = pneg %p217
        $region42: #{tpu_custom_call.1} parent=11 // pred_check_branch
          %289 = sbr.rel (%p287) target = $region44
        $region43: #{tpu_custom_call.1} parent=11 // pred_region
          _
        $region44: #{tpu_custom_call.1} parent=11 // pred_fallthru
          _
      $region12: #{tpu_custom_call.1} parent=5 // pred_fallthru
        _
      %p290 = scmp.lt.s32.totalorder %s23, 2
      // Predicated region
      $region45: #{tpu_custom_call.1} parent=5 // pred_check
        %p291 = pneg %p290
      $region46: #{tpu_custom_call.1} parent=5 // pred_check_branch
        %293 = sbr.rel (%p291) target = $region48
      $region47: #{tpu_custom_call.1} parent=5 // pred_region
        // Predicated region
        $region49: #{tpu_custom_call.1} parent=47 // pred_check
          %p294 = pneg %p43
        $region50: #{tpu_custom_call.1} parent=47 // pred_check_branch
          %296 = sbr.rel (%p294) target = $region52
        $region51: #{tpu_custom_call.1} parent=47 // pred_region
          %s297 = sand.u32 %s33, 1
          %s298 = scalar_lea.sflag [#allocation4], %s297
          %s299 = sand.u32 %s33, 1
          %s300 = smul.addr %s299, 64
          %s301 = scalar_lea.vmem [#allocation3], %s300
          %s303 = ssub.s32 1024, 1024
          %304 = vsyncadd %s298, %s303
          %s305 = smul.addr %s23, 8
          %s306 = smul.addr %s305, 128
          %s307 = scalar_lea.hbm %s0, %s306
          %s308 = sshll.u32 %s301, 4
          %s309 = int_to_ptr.vmem [resolvable:$true] %s308
          %314 = dma.hbm_to_vmem [thread:$0]  %s307, 1024, %s309, %s298, 256, 256, 16
        $region52: #{tpu_custom_call.1} parent=47 // pred_fallthru
          _
      $region48: #{tpu_custom_call.1} parent=5 // pred_fallthru
        _
      %p315 = scmp.le.s32.totalorder 1, %s23
      %p316 = scmp.lt.s32.totalorder %s23, 3
      %p317 = pnand %p315, %p316
      %p318 = pneg %p317
      // Predicated region
      $region53: #{tpu_custom_call.1} parent=5 // pred_check
        _
      $region54: #{tpu_custom_call.1} parent=5 // pred_check_branch
        %320 = sbr.rel (%p317) target = $region56
      $region55: #{tpu_custom_call.1} parent=5 // pred_region
        %s321 = ssub.s32 %s23, 1
        %s322 = sand.u32 %s36, 1
        %s323 = scalar_lea.sflag [#allocation4], %s322
        %s324 = sand.u32 %s36, 1
        %s325 = smul.addr %s324, 64
        %s326 = scalar_lea.vmem [#allocation3], %s325
        // Predicated region
        $region57: #{tpu_custom_call.1} parent=55 // pred_check
          %p327 = pneg %p49
        $region58: #{tpu_custom_call.1} parent=55 // pred_check_branch
          %329 = sbr.rel (%p327) target = $region60
        $region59: #{tpu_custom_call.1} parent=55 // pred_region
          %330 = dma.done %s323, 1024
        $region60: #{tpu_custom_call.1} parent=55 // pred_fallthru
          _
        // Predicated region
        $region61: #{tpu_custom_call.1} parent=55 // pred_check
          %p331 = pneg %p154
        $region62: #{tpu_custom_call.1} parent=55 // pred_check_branch
          %333 = sbr.rel (%p331) target = $region64
        $region63: #{tpu_custom_call.1} parent=55 // pred_region
          %334 = dma.done [#allocation6], 16
        $region64: #{tpu_custom_call.1} parent=55 // pred_fallthru
          _
        %335 = sfence
        %s336 = sand.u32 %s36, 1
        %s337 = scalar_lea.sflag [#allocation4], %s336
        %s338 = sand.u32 %s36, 1
        %s339 = smul.addr %s338, 64
        %s340 = scalar_lea.vmem [#allocation3], %s339
        %p341 = pneg %p49
        %p342 = pneg %p46
        %p343 = pneg %p70
        %p344 = pneg %p67
        %p345 = pneg %p91
        %p346 = pneg %p88
        %p347 = pneg %p112
        %p348 = pneg %p109
        %p349 = pneg %p133
        %p350 = pneg %p130
        %p351 = pneg %p154
        %p352 = pneg %p151
        %p353 = pneg %p175
        %p354 = pneg %p172
        %p355 = pneg %p196
        %p356 = pneg %p193
        %p357 = pneg %p217
        %p358 = pneg %p214
        %p359 = pneg %p243
        %p360 = pneg %p240
        %s361 = sand.u32 %s230, 1
        %s362 = scalar_lea.sflag [#allocation5], %s361
        %s363 = sand.u32 %s230, 1
        %s364 = smul.addr %s363, 64
        %s365 = scalar_lea.vmem [#allocation8], %s364
        %v366 = vld [vmem:[%s326] sm:$0xff]
        %v367 = vld [vmem:[%s326 + $0x8] sm:$0xff]
        %v368 = vld [vmem:[%s326 + $0x10] sm:$0xff]
        %v369 = vld [vmem:[%s326 + $0x18] sm:$0xff]
        %v370 = vld [vmem:[%s326 + $0x20] sm:$0xff]
        %v371 = vld [vmem:[%s326 + $0x28] sm:$0xff]
        %v372 = vld [vmem:[%s326 + $0x30] sm:$0xff]
        %v373 = vld [vmem:[%s326 + $0x38] sm:$0xff]
        %v374 = vadd.f32 %v366, %v367
        %375 = vadd.xlane.f32.xlu0 %v374
        %v376 = vpop.xlane.xlu0 %375
        %v377 = vadd.f32 %v368, %v369
        %378 = vadd.xlane.f32.xlu0 %v377
        %v379 = vpop.xlane.xlu0 %378
        %v380 = vadd.f32 %v370, %v371
        %381 = vadd.xlane.f32.xlu0 %v380
        %v382 = vpop.xlane.xlu0 %381
        %v383 = vadd.f32 %v372, %v373
        %384 = vadd.xlane.f32.xlu0 %v383
        %v385 = vpop.xlane.xlu0 %384
        %v386 = vrcp.pop 256.0
        %v387 = vmul.f32 %v376, %v386
        %v388 = vmul.f32 %v379, %v386
        %v389 = vmul.f32 %v382, %v386
        %v390 = vmul.f32 %v385, %v386
        %v391 = vmax.f32 %v366, %v367
        %392 = vmax.xlane.f32.xlu0 %v391
        %v393 = vpop.xlane.xlu0 %392
        %v394 = vmax.f32 %v368, %v369
        %395 = vmax.xlane.f32.xlu0 %v394
        %v396 = vpop.xlane.xlu0 %395
        %v397 = vmax.f32 %v370, %v371
        %398 = vmax.xlane.f32.xlu0 %v397
        %v399 = vpop.xlane.xlu0 %398
        %v400 = vmax.f32 %v372, %v373
        %401 = vmax.xlane.f32.xlu0 %v400
        %v402 = vpop.xlane.xlu0 %401
        %v403 = vlaneseq
        %v404 = vand.u32 %v403, 127
        %vm405 = vcmp.eq.s32.totalorder %v404, 0
        %v406 = vsel %vm405, %v387, %v393
        %v407 = vsel %vm405, %v388, %v396
        %v408 = vsel %vm405, %v389, %v399
        %v409 = vsel %vm405, %v390, %v402
        %v410 = vld [vmem:[%s1] sm:$0x3]
        %v411 = vld [vmem:[%s2] sm:$0x3]
        %413 = vset.pattern.permute.xlu0 0
        %414 = vperm.xlu0 %413, %v411
        %v415 = vpop.permute.xlu0 %414
        %vm417 = vcmask 261120
        %v419 = vsel %vm417, %v410, 0
        %421 = vmatprep.subr.mxu0 0.0
        %422 = vmatpush1.msra.mxu0 %v406
        %423 = vmatprep.subr.mxu0 0.0
        %424 = vmatpush1.msra.mxu0 %v407
        %425 = vmatprep.subr.mxu0 0.0
        %426 = vmatpush1.msra.mxu0 %v408
        %427 = vmatprep.subr.mxu0 0.0
        %428 = vmatpush1.msra.mxu0 %v409
        %429 = vmatprep.subr.mxu0 0.0
        %430 = vmatpush1.msra.mxu0 0.0
        %431 = vmatprep.subr.mxu0 0.0
        %432 = vmatpush1.msra.mxu0 0.0
        %433 = vmatprep.subr.mxu0 0.0
        %434 = vmatpush1.msra.mxu0 0.0
        %435 = vmatprep.subr.mxu0 0.0
        %436 = vmatpush1.msra.mxu0 0.0
        %437 = vmatprep.subr.mxu0 0.0
        %438 = vmatpush1.msra.mxu0 0.0
        %439 = vmatprep.subr.mxu0 0.0
        %440 = vmatpush1.msra.mxu0 0.0
        %441 = vmatprep.subr.mxu0 0.0
        %442 = vmatpush1.msra.mxu0 0.0
        %443 = vmatprep.subr.mxu0 0.0
        %444 = vmatpush1.msra.mxu0 0.0
        %445 = vmatprep.subr.mxu0 0.0
        %446 = vmatpush1.msra.mxu0 0.0
        %447 = vmatprep.subr.mxu0 0.0
        %448 = vmatpush1.msra.mxu0 0.0
        %449 = vmatprep.subr.mxu0 0.0
        %450 = vmatpush1.msra.mxu0 0.0
        %451 = vmatprep.subr.mxu0 0.0
        %452 = vmatpush1.msra.mxu0 0.0
        %453 = vmatprep.subr.mxu0 0.0
        %454 = vmatpush1.msra.mxu0 0.0
        %455 = vmatprep.subr.mxu0 0.0
        %456 = vmatpush1.msra.mxu0 0.0
        %457 = vmatprep.subr.mxu0 0.0
        %458 = vmatpush1.msra.mxu0 0.0
        %459 = vmatprep.subr.mxu0 0.0
        %460 = vmatpush1.msra.mxu0 0.0
        %461 = vmatprep.subr.mxu0 0.0
        %462 = vmatpush1.msra.mxu0 0.0
        %463 = vmatprep.subr.mxu0 0.0
        %464 = vmatpush1.msra.mxu0 0.0
        %465 = vmatprep.subr.mxu0 0.0
        %466 = vmatpush1.msra.mxu0 0.0
        %467 = vmatprep.subr.mxu0 0.0
        %468 = vmatpush1.msra.mxu0 0.0
        %469 = vmatprep.subr.mxu0 0.0
        %470 = vmatpush1.msra.mxu0 0.0
        %471 = vmatprep.subr.mxu0 0.0
        %472 = vmatpush1.msra.mxu0 0.0
        %473 = vmatprep.subr.mxu0 0.0
        %474 = vmatpush1.msra.mxu0 0.0
        %475 = vmatprep.subr.mxu0 0.0
        %476 = vmatpush1.msra.mxu0 0.0
        %477 = vmatprep.subr.mxu0 0.0
        %478 = vmatpush1.msra.mxu0 0.0
        %479 = vmatprep.subr.mxu0 0.0
        %480 = vmatpush1.msra.mxu0 0.0
        %481 = vmatprep.subr.mxu0 0.0
        %482 = vmatpush1.msra.mxu0 0.0
        %483 = vmatprep.subr.mxu0 0.0
        %484 = vmatpush1.msra.mxu0 0.0
        %485 = vmatprep.mubr.f32.mxu0 0.0
        %486 = vmatmul.mubr.f32.gmra.mrb[0].mxu0 %v419
        %v487 = vpop.f32.mrb[0].mxu0
        %v488 = vadd.f32 %v415, %v487
        %v489 = vpop.f32.mrb[0].mxu0
        %490 = vdwg.mxu0
        %v491 = vmax.f32 %v488, 0.0
        %v492 = vld [vmem:[%s3] sm:$0xff]
        %v493 = vld [vmem:[%s3 + $0x8] sm:$0xff]
        %v494 = vld [vmem:[%s3 + $0x10] sm:$0xff]
        %v495 = vld [vmem:[%s3 + $0x18] sm:$0xff]
        %v496 = vld [vmem:[%s4] sm:$0xff]
        %v497 = vld [vmem:[%s4 + $0x8] sm:$0xff]
        %v498 = vld [vmem:[%s4 + $0x10] sm:$0xff]
        %v499 = vld [vmem:[%s4 + $0x18] sm:$0xff]
        %501 = vset.pattern.permute.xlu0 0
        %502 = vperm.xlu0 %501, %v496
        %v503 = vpop.permute.xlu0 %502
        %506 = vset.pattern.permute.xlu0 0
        %507 = vperm.xlu0 %506, %v497
        %v508 = vpop.permute.xlu0 %507
        %511 = vset.pattern.permute.xlu0 0
        %512 = vperm.xlu0 %511, %v498
        %v513 = vpop.permute.xlu0 %512
        %516 = vset.pattern.permute.xlu0 0
        %517 = vperm.xlu0 %516, %v499
        %v518 = vpop.permute.xlu0 %517
        %vm520 = vcmask 15360
        %v522 = vsel %vm520, %v492, 0
        %v525 = vsel %vm520, %v493, 0
        %v528 = vsel %vm520, %v494, 0
        %v531 = vsel %vm520, %v495, 0
        %vm533 = vcmask 1041408
        %v535 = vsel %vm533, %v491, 0
        %537 = vmatprep.subr.mxu0 0.0
        %538 = vmatpush1.msra.mxu0 %v535
        %539 = vmatprep.subr.mxu0 0.0
        %540 = vmatpush1.msra.mxu0 0.0
        %541 = vmatprep.subr.mxu0 0.0
        %542 = vmatpush1.msra.mxu0 0.0
        %543 = vmatprep.subr.mxu0 0.0
        %544 = vmatpush1.msra.mxu0 0.0
        %545 = vmatprep.subr.mxu0 0.0
        %546 = vmatpush1.msra.mxu0 0.0
        %547 = vmatprep.subr.mxu0 0.0
        %548 = vmatpush1.msra.mxu0 0.0
        %549 = vmatprep.subr.mxu0 0.0
        %550 = vmatpush1.msra.mxu0 0.0
        %551 = vmatprep.subr.mxu0 0.0
        %552 = vmatpush1.msra.mxu0 0.0
        %553 = vmatprep.subr.mxu0 0.0
        %554 = vmatpush1.msra.mxu0 0.0
        %555 = vmatprep.subr.mxu0 0.0
        %556 = vmatpush1.msra.mxu0 0.0
        %557 = vmatprep.subr.mxu0 0.0
        %558 = vmatpush1.msra.mxu0 0.0
        %559 = vmatprep.subr.mxu0 0.0
        %560 = vmatpush1.msra.mxu0 0.0
        %561 = vmatprep.subr.mxu0 0.0
        %562 = vmatpush1.msra.mxu0 0.0
        %563 = vmatprep.subr.mxu0 0.0
        %564 = vmatpush1.msra.mxu0 0.0
        %565 = vmatprep.subr.mxu0 0.0
        %566 = vmatpush1.msra.mxu0 0.0
        %567 = vmatprep.subr.mxu0 0.0
        %568 = vmatpush1.msra.mxu0 0.0
        %569 = vmatprep.subr.mxu0 0.0
        %570 = vmatpush1.msra.mxu0 0.0
        %571 = vmatprep.subr.mxu0 0.0
        %572 = vmatpush1.msra.mxu0 0.0
        %573 = vmatprep.subr.mxu0 0.0
        %574 = vmatpush1.msra.mxu0 0.0
        %575 = vmatprep.subr.mxu0 0.0
        %576 = vmatpush1.msra.mxu0 0.0
        %577 = vmatprep.subr.mxu0 0.0
        %578 = vmatpush1.msra.mxu0 0.0
        %579 = vmatprep.subr.mxu0 0.0
        %580 = vmatpush1.msra.mxu0 0.0
        %581 = vmatprep.subr.mxu0 0.0
        %582 = vmatpush1.msra.mxu0 0.0
        %583 = vmatprep.subr.mxu0 0.0
        %584 = vmatpush1.msra.mxu0 0.0
        %585 = vmatprep.subr.mxu0 0.0
        %586 = vmatpush1.msra.mxu0 0.0
        %587 = vmatprep.subr.mxu0 0.0
        %588 = vmatpush1.msra.mxu0 0.0
        %589 = vmatprep.subr.mxu0 0.0
        %590 = vmatpush1.msra.mxu0 0.0
        %591 = vmatprep.subr.mxu0 0.0
        %592 = vmatpush1.msra.mxu0 0.0
        %593 = vmatprep.subr.mxu0 0.0
        %594 = vmatpush1.msra.mxu0 0.0
        %595 = vmatprep.subr.mxu0 0.0
        %596 = vmatpush1.msra.mxu0 0.0
        %597 = vmatprep.subr.mxu0 0.0
        %598 = vmatpush1.msra.mxu0 0.0
        %599 = vmatprep.subr.mxu0 0.0
        %600 = vmatpush1.msra.mxu0 0.0
        %601 = vmatprep.mubr.f32.mxu0 0.0
        %602 = vmatmul.mubr.f32.gmra.mrb[0].mxu0 %v522
        %v603 = vpop.f32.mrb[0].mxu0
        %v604 = vadd.f32 %v503, %v603
        %v605 = vpop.f32.mrb[0].mxu0
        %606 = vmatprep.mubr.f32.mxu0 0.0
        %607 = vmatmul.mubr.f32.gmra.mrb[0].mxu0 %v525
        %v608 = vpop.f32.mrb[0].mxu0
        %v609 = vadd.f32 %v508, %v608
        %v610 = vpop.f32.mrb[0].mxu0
        %611 = vmatprep.mubr.f32.mxu0 0.0
        %612 = vmatmul.mubr.f32.gmra.mrb[0].mxu0 %v528
        %v613 = vpop.f32.mrb[0].mxu0
        %v614 = vadd.f32 %v513, %v613
        %v615 = vpop.f32.mrb[0].mxu0
        %616 = vmatprep.mubr.f32.mxu0 0.0
        %617 = vmatmul.mubr.f32.gmra.mrb[0].mxu0 %v531
        %v618 = vpop.f32.mrb[0].mxu0
        %v619 = vadd.f32 %v518, %v618
        %v620 = vpop.f32.mrb[0].mxu0
        %621 = vdwg.mxu0
        %v622 = vsel %vm520, %v604, 0.0
        %623 = vadd.xlane.f32.xlu0 %v622
        %v624 = vpop.xlane.xlu0 %623
        %v625 = vsel %vm520, %v609, 0.0
        %626 = vadd.xlane.f32.xlu0 %v625
        %v627 = vpop.xlane.xlu0 %626
        %v628 = vsel %vm520, %v614, 0.0
        %629 = vadd.xlane.f32.xlu0 %v628
        %v630 = vpop.xlane.xlu0 %629
        %v631 = vsel %vm520, %v619, 0.0
        %632 = vadd.xlane.f32.xlu0 %v631
        %v633 = vpop.xlane.xlu0 %632
        %v634 = vxor.u32 %v624, 2147483648
        %v635 = vxor.u32 %v627, 2147483648
        %v636 = vxor.u32 %v630, 2147483648
        %v637 = vxor.u32 %v633, 2147483648
        %v638 = vmul.f32 %v634, 1.442695
        %v639 = vpow.pop %v638
        %v640 = vmul.f32 %v635, 1.442695
        %v641 = vpow.pop %v640
        %v642 = vmul.f32 %v636, 1.442695
        %v643 = vpow.pop %v642
        %v644 = vmul.f32 %v637, 1.442695
        %v645 = vpow.pop %v644
        %v646 = vadd.f32 %v639, 1.0
        %v647 = vadd.f32 %v641, 1.0
        %v648 = vadd.f32 %v643, 1.0
        %v649 = vadd.f32 %v645, 1.0
        %v650 = vrcp.pop %v646
        %v651 = vmul.f32 1.0, %v650
        %v652 = vrcp.pop %v647
        %v653 = vmul.f32 1.0, %v652
        %v654 = vrcp.pop %v648
        %v655 = vmul.f32 1.0, %v654
        %v656 = vrcp.pop %v649
        %v657 = vmul.f32 1.0, %v656
        %v658 = vmul.f32 %v366, %v651
        %v659 = vmul.f32 %v367, %v651
        %v660 = vmul.f32 %v368, %v653
        %v661 = vmul.f32 %v369, %v653
        %v662 = vmul.f32 %v370, %v655
        %v663 = vmul.f32 %v371, %v655
        %v664 = vmul.f32 %v372, %v657
        %v665 = vmul.f32 %v373, %v657
        %v666 = vadd.f32 %v658, %v660
        %v667 = vadd.f32 %v666, %v662
        %v668 = vadd.f32 %v667, %v664
        %v669 = vrot.slane %v668, 4
        %v670 = vadd.f32 %v668, %v669
        %v671 = vrot.slane %v670, 2
        %v672 = vadd.f32 %v670, %v671
        %v673 = vrot.slane %v672, 1
        %v674 = vadd.f32 %v672, %v673
        %v675 = vadd.f32 %v659, %v661
        %v676 = vadd.f32 %v675, %v663
        %v677 = vadd.f32 %v676, %v665
        %v678 = vrot.slane %v677, 4
        %v679 = vadd.f32 %v677, %v678
        %v680 = vrot.slane %v679, 2
        %v681 = vadd.f32 %v679, %v680
        %v682 = vrot.slane %v681, 1
        %v683 = vadd.f32 %v681, %v682
        %v684 = vrcp.pop 32.0
        %v685 = vmul.f32 %v674, %v684
        %v686 = vmul.f32 %v683, %v684
        %v687 = vmax.f32 %v658, %v662
        %v688 = vmax.f32 %v660, %v664
        %v689 = vmax.f32 %v687, %v688
        %v690 = vrot.slane %v689, 4
        %v691 = vmax.f32 %v689, %v690
        %v692 = vrot.slane %v691, 2
        %v693 = vmax.f32 %v691, %v692
        %v694 = vrot.slane %v693, 1
        %v695 = vmax.f32 %v693, %v694
        %v696 = vmax.f32 %v659, %v663
        %v697 = vmax.f32 %v661, %v665
        %v698 = vmax.f32 %v696, %v697
        %v699 = vrot.slane %v698, 4
        %v700 = vmax.f32 %v698, %v699
        %v701 = vrot.slane %v700, 2
        %v702 = vmax.f32 %v700, %v701
        %v703 = vrot.slane %v702, 1
        %v704 = vmax.f32 %v702, %v703
        %v705 = vld [vmem:[%s7] sm:$0x3]
        %v706 = vld [vmem:[%s8] sm:$0x3]
        %s707 = sld [smem:[#allocation2]]
        %v708 = vstv %s707
        %v709 = vadd.f32 %v708, 0.0
        %710 = vrot.lane.b32.xlu0 %v685, 51
        %v711 = vpop.permute.xlu0 %710
        %712 = vrot.lane.b32.xlu0 %v686, 51
        %v713 = vpop.permute.xlu0 %712
        %vm714 = vcmp.lt.s32.totalorder %v404, 51
        %v715 = vsel %vm714, %v711, %v713
        %v716 = vsel %vm714, %v713, %v711
        %717 = vrot.lane.b32.xlu0 %v695, 51
        %v718 = vpop.permute.xlu0 %717
        %719 = vrot.lane.b32.xlu0 %v704, 51
        %v720 = vpop.permute.xlu0 %719
        %v721 = vsel %vm714, %v718, %v720
        %v722 = vsel %vm714, %v720, %v718
        %s723 = sld [smem:[#allocation7]]
        %s724 = sld [smem:[#allocation7 + $0x31]]
        %v725 = vstv %s723
        %v726 = vmul.f32 %v725, %v716
        %v727 = vmul.f32 %v725, %v715
        %v728 = vstv %s724
        %v729 = vmul.f32 %v728, %v722
        %v730 = vmul.f32 %v728, %v721
        %v731 = vadd.f32 %v726, %v729
        %v732 = vadd.f32 %v727, %v730
        %vm733 = vcmp.ge.s32.totalorder %v705, 3
        %vm734 = vcmp.ge.s32.totalorder %v706, 3
        %vm735 = vmand %vm733, %vm734
        %v738 = vcombine.low %v731, %v732
        %v740 = vunpack.c.l.s4 1966171168
        %v741 = vunpack.c.0.s8 %v740
        %v742 = vlaneseq
        %v743 = vshrl.u32 %v742, 7
        %v744 = vsub.s32 %v741, %v743
        %v745 = vrot.slane %v738, %v744
        %v747 = vunpack.c.l.s4 1966171168
        %v748 = vunpack.c.0.s8 %v747
        %v749 = vlaneseq
        %v750 = vshrl.u32 %v749, 7
        %v751 = vsub.s32 %v748, %v750
        %v752 = vrot.slane %v745, %v751
        %v754 = vsel %vm735, %v752, 0.0
        %v755 = vadd.f32 %v709, %v754
        %756 = vrot.lane.b32.xlu0 %v685, 50
        %v757 = vpop.permute.xlu0 %756
        %758 = vrot.lane.b32.xlu0 %v686, 50
        %v759 = vpop.permute.xlu0 %758
        %vm760 = vcmp.lt.s32.totalorder %v404, 50
        %v761 = vsel %vm760, %v757, %v759
        %v762 = vsel %vm760, %v759, %v757
        %763 = vrot.lane.b32.xlu0 %v695, 50
        %v764 = vpop.permute.xlu0 %763
        %765 = vrot.lane.b32.xlu0 %v704, 50
        %v766 = vpop.permute.xlu0 %765
        %v767 = vsel %vm760, %v764, %v766
        %v768 = vsel %vm760, %v766, %v764
        %s769 = sld [smem:[#allocation7 + $0x1]]
        %s770 = sld [smem:[#allocation7 + $0x32]]
        %v771 = vstv %s769
        %v772 = vmul.f32 %v771, %v762
        %v773 = vmul.f32 %v771, %v761
        %v774 = vstv %s770
        %v775 = vmul.f32 %v774, %v768
        %v776 = vmul.f32 %v774, %v767
        %v777 = vadd.f32 %v772, %v775
        %v778 = vadd.f32 %v773, %v776
        %vm779 = vcmp.ge.s32.totalorder %v706, 2
        %vm780 = vmand %vm733, %vm779
        %v783 = vcombine.low %v777, %v778
        %v785 = vunpack.c.l.s4 1966171168
        %v786 = vunpack.c.0.s8 %v785
        %v787 = vlaneseq
        %v788 = vshrl.u32 %v787, 7
        %v789 = vsub.s32 %v786, %v788
        %v790 = vrot.slane %v783, %v789
        %v792 = vunpack.c.l.s4 1966171168
        %v793 = vunpack.c.0.s8 %v792
        %v794 = vlaneseq
        %v795 = vshrl.u32 %v794, 7
        %v796 = vsub.s32 %v793, %v795
        %v797 = vrot.slane %v790, %v796
        %v799 = vsel %vm780, %v797, 0.0
        %v800 = vadd.f32 %v755, %v799
        %801 = vrot.lane.b32.xlu0 %v685, 49
        %v802 = vpop.permute.xlu0 %801
        %803 = vrot.lane.b32.xlu0 %v686, 49
        %v804 = vpop.permute.xlu0 %803
        %vm805 = vcmp.lt.s32.totalorder %v404, 49
        %v806 = vsel %vm805, %v802, %v804
        %v807 = vsel %vm805, %v804, %v802
        %808 = vrot.lane.b32.xlu0 %v695, 49
        %v809 = vpop.permute.xlu0 %808
        %810 = vrot.lane.b32.xlu0 %v704, 49
        %v811 = vpop.permute.xlu0 %810
        %v812 = vsel %vm805, %v809, %v811
        %v813 = vsel %vm805, %v811, %v809
        %s814 = sld [smem:[#allocation7 + $0x2]]
        %s815 = sld [smem:[#allocation7 + $0x33]]
        %v816 = vstv %s814
        %v817 = vmul.f32 %v816, %v807
        %v818 = vmul.f32 %v816, %v806
        %v819 = vstv %s815
        %v820 = vmul.f32 %v819, %v813
        %v821 = vmul.f32 %v819, %v812
        %v822 = vadd.f32 %v817, %v820
        %v823 = vadd.f32 %v818, %v821
        %vm824 = vcmp.ge.s32.totalorder %v706, 1
        %vm825 = vmand %vm733, %vm824
        %v828 = vcombine.low %v822, %v823
        %v830 = vunpack.c.l.s4 1966171168
        %v831 = vunpack.c.0.s8 %v830
        %v832 = vlaneseq
        %v833 = vshrl.u32 %v832, 7
        %v834 = vsub.s32 %v831, %v833
        %v835 = vrot.slane %v828, %v834
        %v837 = vunpack.c.l.s4 1966171168
        %v838 = vunpack.c.0.s8 %v837
        %v839 = vlaneseq
        %v840 = vshrl.u32 %v839, 7
        %v841 = vsub.s32 %v838, %v840
        %v842 = vrot.slane %v835, %v841
        %v844 = vsel %vm825, %v842, 0.0
        %v845 = vadd.f32 %v800, %v844
        %846 = vrot.lane.b32.xlu0 %v685, 48
        %v847 = vpop.permute.xlu0 %846
        %848 = vrot.lane.b32.xlu0 %v686, 48
        %v849 = vpop.permute.xlu0 %848
        %vm850 = vcmp.lt.s32.totalorder %v404, 48
        %v851 = vsel %vm850, %v847, %v849
        %v852 = vsel %vm850, %v849, %v847
        %853 = vrot.lane.b32.xlu0 %v695, 48
        %v854 = vpop.permute.xlu0 %853
        %855 = vrot.lane.b32.xlu0 %v704, 48
        %v856 = vpop.permute.xlu0 %855
        %v857 = vsel %vm850, %v854, %v856
        %v858 = vsel %vm850, %v856, %v854
        %s859 = sld [smem:[#allocation7 + $0x3]]
        %s860 = sld [smem:[#allocation7 + $0x34]]
        %v861 = vstv %s859
        %v862 = vmul.f32 %v861, %v852
        %v863 = vmul.f32 %v861, %v851
        %v864 = vstv %s860
        %v865 = vmul.f32 %v864, %v858
        %v866 = vmul.f32 %v864, %v857
        %v867 = vadd.f32 %v862, %v865
        %v868 = vadd.f32 %v863, %v866
        %v871 = vcombine.low %v867, %v868
        %v873 = vunpack.c.l.s4 1966171168
        %v874 = vunpack.c.0.s8 %v873
        %v875 = vlaneseq
        %v876 = vshrl.u32 %v875, 7
        %v877 = vsub.s32 %v874, %v876
        %v878 = vrot.slane %v871, %v877
        %v880 = vunpack.c.l.s4 1966171168
        %v881 = vunpack.c.0.s8 %v880
        %v882 = vlaneseq
        %v883 = vshrl.u32 %v882, 7
        %v884 = vsub.s32 %v881, %v883
        %v885 = vrot.slane %v878, %v884
        %v887 = vsel %vm733, %v885, 0.0
        %v888 = vadd.f32 %v845, %v887
        %889 = vrot.lane.b32.xlu0 %v685, 47
        %v890 = vpop.permute.xlu0 %889
        %891 = vrot.lane.b32.xlu0 %v686, 47
        %v892 = vpop.permute.xlu0 %891
        %vm893 = vcmp.lt.s32.totalorder %v404, 47
        %v894 = vsel %vm893, %v890, %v892
        %v895 = vsel %vm893, %v892, %v890
        %896 = vrot.lane.b32.xlu0 %v695, 47
        %v897 = vpop.permute.xlu0 %896
        %898 = vrot.lane.b32.xlu0 %v704, 47
        %v899 = vpop.permute.xlu0 %898
        %v900 = vsel %vm893, %v897, %v899
        %v901 = vsel %vm893, %v899, %v897
        %s902 = sld [smem:[#allocation7 + $0x4]]
        %s903 = sld [smem:[#allocation7 + $0x35]]
        %v904 = vstv %s902
        %v905 = vmul.f32 %v904, %v895
        %v906 = vmul.f32 %v904, %v894
        %v907 = vstv %s903
        %v908 = vmul.f32 %v907, %v901
        %v909 = vmul.f32 %v907, %v900
        %v910 = vadd.f32 %v905, %v908
        %v911 = vadd.f32 %v906, %v909
        %vm912 = vcmp.lt.s32.totalorder %v706, 15
        %vm913 = vmand %vm733, %vm912
        %v916 = vcombine.low %v910, %v911
        %v918 = vunpack.c.l.s4 1966171168
        %v919 = vunpack.c.0.s8 %v918
        %v920 = vlaneseq
        %v921 = vshrl.u32 %v920, 7
        %v922 = vsub.s32 %v919, %v921
        %v923 = vrot.slane %v916, %v922
        %v925 = vunpack.c.l.s4 1966171168
        %v926 = vunpack.c.0.s8 %v925
        %v927 = vlaneseq
        %v928 = vshrl.u32 %v927, 7
        %v929 = vsub.s32 %v926, %v928
        %v930 = vrot.slane %v923, %v929
        %v932 = vsel %vm913, %v930, 0.0
        %v933 = vadd.f32 %v888, %v932
        %934 = vrot.lane.b32.xlu0 %v685, 46
        %v935 = vpop.permute.xlu0 %934
        %936 = vrot.lane.b32.xlu0 %v686, 46
        %v937 = vpop.permute.xlu0 %936
        %vm938 = vcmp.lt.s32.totalorder %v404, 46
        %v939 = vsel %vm938, %v935, %v937
        %v940 = vsel %vm938, %v937, %v935
        %941 = vrot.lane.b32.xlu0 %v695, 46
        %v942 = vpop.permute.xlu0 %941
        %943 = vrot.lane.b32.xlu0 %v704, 46
        %v944 = vpop.permute.xlu0 %943
        %v945 = vsel %vm938, %v942, %v944
        %v946 = vsel %vm938, %v944, %v942
        %s947 = sld [smem:[#allocation7 + $0x5]]
        %s948 = sld [smem:[#allocation7 + $0x36]]
        %v949 = vstv %s947
        %v950 = vmul.f32 %v949, %v940
        %v951 = vmul.f32 %v949, %v939
        %v952 = vstv %s948
        %v953 = vmul.f32 %v952, %v946
        %v954 = vmul.f32 %v952, %v945
        %v955 = vadd.f32 %v950, %v953
        %v956 = vadd.f32 %v951, %v954
        %vm957 = vcmp.lt.s32.totalorder %v706, 14
        %vm958 = vmand %vm733, %vm957
        %v961 = vcombine.low %v955, %v956
        %v963 = vunpack.c.l.s4 1966171168
        %v964 = vunpack.c.0.s8 %v963
        %v965 = vlaneseq
        %v966 = vshrl.u32 %v965, 7
        %v967 = vsub.s32 %v964, %v966
        %v968 = vrot.slane %v961, %v967
        %v970 = vunpack.c.l.s4 1966171168
        %v971 = vunpack.c.0.s8 %v970
        %v972 = vlaneseq
        %v973 = vshrl.u32 %v972, 7
        %v974 = vsub.s32 %v971, %v973
        %v975 = vrot.slane %v968, %v974
        %v977 = vsel %vm958, %v975, 0.0
        %v978 = vadd.f32 %v933, %v977
        %979 = vrot.lane.b32.xlu0 %v685, 45
        %v980 = vpop.permute.xlu0 %979
        %981 = vrot.lane.b32.xlu0 %v686, 45
        %v982 = vpop.permute.xlu0 %981
        %vm983 = vcmp.lt.s32.totalorder %v404, 45
        %v984 = vsel %vm983, %v980, %v982
        %v985 = vsel %vm983, %v982, %v980
        %986 = vrot.lane.b32.xlu0 %v695, 45
        %v987 = vpop.permute.xlu0 %986
        %988 = vrot.lane.b32.xlu0 %v704, 45
        %v989 = vpop.permute.xlu0 %988
        %v990 = vsel %vm983, %v987, %v989
        %v991 = vsel %vm983, %v989, %v987
        %s992 = sld [smem:[#allocation7 + $0x6]]
        %s993 = sld [smem:[#allocation7 + $0x37]]
        %v994 = vstv %s992
        %v995 = vmul.f32 %v994, %v985
        %v996 = vmul.f32 %v994, %v984
        %v997 = vstv %s993
        %v998 = vmul.f32 %v997, %v991
        %v999 = vmul.f32 %v997, %v990
        %v1000 = vadd.f32 %v995, %v998
        %v1001 = vadd.f32 %v996, %v999
        %vm1002 = vcmp.lt.s32.totalorder %v706, 13
        %vm1003 = vmand %vm733, %vm1002
        %v1006 = vcombine.low %v1000, %v1001
        %v1008 = vunpack.c.l.s4 1966171168
        %v1009 = vunpack.c.0.s8 %v1008
        %v1010 = vlaneseq
        %v1011 = vshrl.u32 %v1010, 7
        %v1012 = vsub.s32 %v1009, %v1011
        %v1013 = vrot.slane %v1006, %v1012
        %v1015 = vunpack.c.l.s4 1966171168
        %v1016 = vunpack.c.0.s8 %v1015
        %v1017 = vlaneseq
        %v1018 = vshrl.u32 %v1017, 7
        %v1019 = vsub.s32 %v1016, %v1018
        %v1020 = vrot.slane %v1013, %v1019
        %v1022 = vsel %vm1003, %v1020, 0.0
        %v1023 = vadd.f32 %v978, %v1022
        %1024 = vrot.lane.b32.xlu0 %v685, 35
        %v1025 = vpop.permute.xlu0 %1024
        %1026 = vrot.lane.b32.xlu0 %v686, 35
        %v1027 = vpop.permute.xlu0 %1026
        %vm1028 = vcmp.lt.s32.totalorder %v404, 35
        %v1029 = vsel %vm1028, %v1025, %v1027
        %v1030 = vsel %vm1028, %v1027, %v1025
        %1031 = vrot.lane.b32.xlu0 %v695, 35
        %v1032 = vpop.permute.xlu0 %1031
        %1033 = vrot.lane.b32.xlu0 %v704, 35
        %v1034 = vpop.permute.xlu0 %1033
        %v1035 = vsel %vm1028, %v1032, %v1034
        %v1036 = vsel %vm1028, %v1034, %v1032
        %s1037 = sld [smem:[#allocation7 + $0x7]]
        %s1038 = sld [smem:[#allocation7 + $0x38]]
        %v1039 = vstv %s1037
        %v1040 = vmul.f32 %v1039, %v1030
        %v1041 = vmul.f32 %v1039, %v1029
        %v1042 = vstv %s1038
        %v1043 = vmul.f32 %v1042, %v1036
        %v1044 = vmul.f32 %v1042, %v1035
        %v1045 = vadd.f32 %v1040, %v1043
        %v1046 = vadd.f32 %v1041, %v1044
        %vm1047 = vcmp.ge.s32.totalorder %v705, 2
        %vm1048 = vmand %vm1047, %vm734
        %v1051 = vcombine.low %v1045, %v1046
        %v1053 = vunpack.c.l.s4 1966171168
        %v1054 = vunpack.c.0.s8 %v1053
        %v1055 = vlaneseq
        %v1056 = vshrl.u32 %v1055, 7
        %v1057 = vsub.s32 %v1054, %v1056
        %v1058 = vrot.slane %v1051, %v1057
        %v1060 = vunpack.c.l.s4 1966171168
        %v1061 = vunpack.c.0.s8 %v1060
        %v1062 = vlaneseq
        %v1063 = vshrl.u32 %v1062, 7
        %v1064 = vsub.s32 %v1061, %v1063
        %v1065 = vrot.slane %v1058, %v1064
        %v1067 = vsel %vm1048, %v1065, 0.0
        %v1068 = vadd.f32 %v1023, %v1067
        %1069 = vrot.lane.b32.xlu0 %v685, 34
        %v1070 = vpop.permute.xlu0 %1069
        %1071 = vrot.lane.b32.xlu0 %v686, 34
        %v1072 = vpop.permute.xlu0 %1071
        %vm1073 = vcmp.lt.s32.totalorder %v404, 34
        %v1074 = vsel %vm1073, %v1070, %v1072
        %v1075 = vsel %vm1073, %v1072, %v1070
        %1076 = vrot.lane.b32.xlu0 %v695, 34
        %v1077 = vpop.permute.xlu0 %1076
        %1078 = vrot.lane.b32.xlu0 %v704, 34
        %v1079 = vpop.permute.xlu0 %1078
        %v1080 = vsel %vm1073, %v1077, %v1079
        %v1081 = vsel %vm1073, %v1079, %v1077
        %s1082 = sld [smem:[#allocation7 + $0x8]]
        %s1083 = sld [smem:[#allocation7 + $0x39]]
        %v1084 = vstv %s1082
        %v1085 = vmul.f32 %v1084, %v1075
        %v1086 = vmul.f32 %v1084, %v1074
        %v1087 = vstv %s1083
        %v1088 = vmul.f32 %v1087, %v1081
        %v1089 = vmul.f32 %v1087, %v1080
        %v1090 = vadd.f32 %v1085, %v1088
        %v1091 = vadd.f32 %v1086, %v1089
        %vm1092 = vmand %vm1047, %vm779
        %v1095 = vcombine.low %v1090, %v1091
        %v1097 = vunpack.c.l.s4 1966171168
        %v1098 = vunpack.c.0.s8 %v1097
        %v1099 = vlaneseq
        %v1100 = vshrl.u32 %v1099, 7
        %v1101 = vsub.s32 %v1098, %v1100
        %v1102 = vrot.slane %v1095, %v1101
        %v1104 = vunpack.c.l.s4 1966171168
        %v1105 = vunpack.c.0.s8 %v1104
        %v1106 = vlaneseq
        %v1107 = vshrl.u32 %v1106, 7
        %v1108 = vsub.s32 %v1105, %v1107
        %v1109 = vrot.slane %v1102, %v1108
        %v1111 = vsel %vm1092, %v1109, 0.0
        %v1112 = vadd.f32 %v1068, %v1111
        %1113 = vrot.lane.b32.xlu0 %v685, 33
        %v1114 = vpop.permute.xlu0 %1113
        %1115 = vrot.lane.b32.xlu0 %v686, 33
        %v1116 = vpop.permute.xlu0 %1115
        %vm1117 = vcmp.lt.s32.totalorder %v404, 33
        %v1118 = vsel %vm1117, %v1114, %v1116
        %v1119 = vsel %vm1117, %v1116, %v1114
        %1120 = vrot.lane.b32.xlu0 %v695, 33
        %v1121 = vpop.permute.xlu0 %1120
        %1122 = vrot.lane.b32.xlu0 %v704, 33
        %v1123 = vpop.permute.xlu0 %1122
        %v1124 = vsel %vm1117, %v1121, %v1123
        %v1125 = vsel %vm1117, %v1123, %v1121
        %s1126 = sld [smem:[#allocation7 + $0x9]]
        %s1127 = sld [smem:[#allocation7 + $0x3a]]
        %v1128 = vstv %s1126
        %v1129 = vmul.f32 %v1128, %v1119
        %v1130 = vmul.f32 %v1128, %v1118
        %v1131 = vstv %s1127
        %v1132 = vmul.f32 %v1131, %v1125
        %v1133 = vmul.f32 %v1131, %v1124
        %v1134 = vadd.f32 %v1129, %v1132
        %v1135 = vadd.f32 %v1130, %v1133
        %vm1136 = vmand %vm1047, %vm824
        %v1139 = vcombine.low %v1134, %v1135
        %v1141 = vunpack.c.l.s4 1966171168
        %v1142 = vunpack.c.0.s8 %v1141
        %v1143 = vlaneseq
        %v1144 = vshrl.u32 %v1143, 7
        %v1145 = vsub.s32 %v1142, %v1144
        %v1146 = vrot.slane %v1139, %v1145
        %v1148 = vunpack.c.l.s4 1966171168
        %v1149 = vunpack.c.0.s8 %v1148
        %v1150 = vlaneseq
        %v1151 = vshrl.u32 %v1150, 7
        %v1152 = vsub.s32 %v1149, %v1151
        %v1153 = vrot.slane %v1146, %v1152
        %v1155 = vsel %vm1136, %v1153, 0.0
        %v1156 = vadd.f32 %v1112, %v1155
        %1157 = vrot.lane.b32.xlu0 %v685, 32
        %v1158 = vpop.permute.xlu0 %1157
        %1159 = vrot.lane.b32.xlu0 %v686, 32
        %v1160 = vpop.permute.xlu0 %1159
        %vm1161 = vcmp.lt.s32.totalorder %v404, 32
        %v1162 = vsel %vm1161, %v1158, %v1160
        %v1163 = vsel %vm1161, %v1160, %v1158
        %1164 = vrot.lane.b32.xlu0 %v695, 32
        %v1165 = vpop.permute.xlu0 %1164
        %1166 = vrot.lane.b32.xlu0 %v704, 32
        %v1167 = vpop.permute.xlu0 %1166
        %v1168 = vsel %vm1161, %v1165, %v1167
        %v1169 = vsel %vm1161, %v1167, %v1165
        %s1170 = sld [smem:[#allocation7 + $0xa]]
        %s1171 = sld [smem:[#allocation7 + $0x3b]]
        %v1172 = vstv %s1170
        %v1173 = vmul.f32 %v1172, %v1163
        %v1174 = vmul.f32 %v1172, %v1162
        %v1175 = vstv %s1171
        %v1176 = vmul.f32 %v1175, %v1169
        %v1177 = vmul.f32 %v1175, %v1168
        %v1178 = vadd.f32 %v1173, %v1176
        %v1179 = vadd.f32 %v1174, %v1177
        %v1182 = vcombine.low %v1178, %v1179
        %v1184 = vunpack.c.l.s4 1966171168
        %v1185 = vunpack.c.0.s8 %v1184
        %v1186 = vlaneseq
        %v1187 = vshrl.u32 %v1186, 7
        %v1188 = vsub.s32 %v1185, %v1187
        %v1189 = vrot.slane %v1182, %v1188
        %v1191 = vunpack.c.l.s4 1966171168
        %v1192 = vunpack.c.0.s8 %v1191
        %v1193 = vlaneseq
        %v1194 = vshrl.u32 %v1193, 7
        %v1195 = vsub.s32 %v1192, %v1194
        %v1196 = vrot.slane %v1189, %v1195
        %v1198 = vsel %vm1047, %v1196, 0.0
        %v1199 = vadd.f32 %v1156, %v1198
        %1200 = vrot.lane.b32.xlu0 %v685, 31
        %v1201 = vpop.permute.xlu0 %1200
        %1202 = vrot.lane.b32.xlu0 %v686, 31
        %v1203 = vpop.permute.xlu0 %1202
        %vm1204 = vcmp.lt.s32.totalorder %v404, 31
        %v1205 = vsel %vm1204, %v1201, %v1203
        %v1206 = vsel %vm1204, %v1203, %v1201
        %1207 = vrot.lane.b32.xlu0 %v695, 31
        %v1208 = vpop.permute.xlu0 %1207
        %1209 = vrot.lane.b32.xlu0 %v704, 31
        %v1210 = vpop.permute.xlu0 %1209
        %v1211 = vsel %vm1204, %v1208, %v1210
        %v1212 = vsel %vm1204, %v1210, %v1208
        %s1213 = sld [smem:[#allocation7 + $0xb]]
        %s1214 = sld [smem:[#allocation7 + $0x3c]]
        %v1215 = vstv %s1213
        %v1216 = vmul.f32 %v1215, %v1206
        %v1217 = vmul.f32 %v1215, %v1205
        %v1218 = vstv %s1214
        %v1219 = vmul.f32 %v1218, %v1212
        %v1220 = vmul.f32 %v1218, %v1211
        %v1221 = vadd.f32 %v1216, %v1219
        %v1222 = vadd.f32 %v1217, %v1220
        %vm1223 = vmand %vm1047, %vm912
        %v1226 = vcombine.low %v1221, %v1222
        %v1228 = vunpack.c.l.s4 1966171168
        %v1229 = vunpack.c.0.s8 %v1228
        %v1230 = vlaneseq
        %v1231 = vshrl.u32 %v1230, 7
        %v1232 = vsub.s32 %v1229, %v1231
        %v1233 = vrot.slane %v1226, %v1232
        %v1235 = vunpack.c.l.s4 1966171168
        %v1236 = vunpack.c.0.s8 %v1235
        %v1237 = vlaneseq
        %v1238 = vshrl.u32 %v1237, 7
        %v1239 = vsub.s32 %v1236, %v1238
        %v1240 = vrot.slane %v1233, %v1239
        %v1242 = vsel %vm1223, %v1240, 0.0
        %v1243 = vadd.f32 %v1199, %v1242
        %1244 = vrot.lane.b32.xlu0 %v685, 30
        %v1245 = vpop.permute.xlu0 %1244
        %1246 = vrot.lane.b32.xlu0 %v686, 30
        %v1247 = vpop.permute.xlu0 %1246
        %vm1248 = vcmp.lt.s32.totalorder %v404, 30
        %v1249 = vsel %vm1248, %v1245, %v1247
        %v1250 = vsel %vm1248, %v1247, %v1245
        %1251 = vrot.lane.b32.xlu0 %v695, 30
        %v1252 = vpop.permute.xlu0 %1251
        %1253 = vrot.lane.b32.xlu0 %v704, 30
        %v1254 = vpop.permute.xlu0 %1253
        %v1255 = vsel %vm1248, %v1252, %v1254
        %v1256 = vsel %vm1248, %v1254, %v1252
        %s1257 = sld [smem:[#allocation7 + $0xc]]
        %s1258 = sld [smem:[#allocation7 + $0x3d]]
        %v1259 = vstv %s1257
        %v1260 = vmul.f32 %v1259, %v1250
        %v1261 = vmul.f32 %v1259, %v1249
        %v1262 = vstv %s1258
        %v1263 = vmul.f32 %v1262, %v1256
        %v1264 = vmul.f32 %v1262, %v1255
        %v1265 = vadd.f32 %v1260, %v1263
        %v1266 = vadd.f32 %v1261, %v1264
        %vm1267 = vmand %vm1047, %vm957
        %v1270 = vcombine.low %v1265, %v1266
        %v1272 = vunpack.c.l.s4 1966171168
        %v1273 = vunpack.c.0.s8 %v1272
        %v1274 = vlaneseq
        %v1275 = vshrl.u32 %v1274, 7
        %v1276 = vsub.s32 %v1273, %v1275
        %v1277 = vrot.slane %v1270, %v1276
        %v1279 = vunpack.c.l.s4 1966171168
        %v1280 = vunpack.c.0.s8 %v1279
        %v1281 = vlaneseq
        %v1282 = vshrl.u32 %v1281, 7
        %v1283 = vsub.s32 %v1280, %v1282
        %v1284 = vrot.slane %v1277, %v1283
        %v1286 = vsel %vm1267, %v1284, 0.0
        %v1287 = vadd.f32 %v1243, %v1286
        %1288 = vrot.lane.b32.xlu0 %v685, 29
        %v1289 = vpop.permute.xlu0 %1288
        %1290 = vrot.lane.b32.xlu0 %v686, 29
        %v1291 = vpop.permute.xlu0 %1290
        %vm1292 = vcmp.lt.s32.totalorder %v404, 29
        %v1293 = vsel %vm1292, %v1289, %v1291
        %v1294 = vsel %vm1292, %v1291, %v1289
        %1295 = vrot.lane.b32.xlu0 %v695, 29
        %v1296 = vpop.permute.xlu0 %1295
        %1297 = vrot.lane.b32.xlu0 %v704, 29
        %v1298 = vpop.permute.xlu0 %1297
        %v1299 = vsel %vm1292, %v1296, %v1298
        %v1300 = vsel %vm1292, %v1298, %v1296
        %s1301 = sld [smem:[#allocation7 + $0xd]]
        %s1302 = sld [smem:[#allocation7 + $0x3e]]
        %v1303 = vstv %s1301
        %v1304 = vmul.f32 %v1303, %v1294
        %v1305 = vmul.f32 %v1303, %v1293
        %v1306 = vstv %s1302
        %v1307 = vmul.f32 %v1306, %v1300
        %v1308 = vmul.f32 %v1306, %v1299
        %v1309 = vadd.f32 %v1304, %v1307
        %v1310 = vadd.f32 %v1305, %v1308
        %vm1311 = vmand %vm1047, %vm1002
        %v1314 = vcombine.low %v1309, %v1310
        %v1316 = vunpack.c.l.s4 1966171168
        %v1317 = vunpack.c.0.s8 %v1316
        %v1318 = vlaneseq
        %v1319 = vshrl.u32 %v1318, 7
        %v1320 = vsub.s32 %v1317, %v1319
        %v1321 = vrot.slane %v1314, %v1320
        %v1323 = vunpack.c.l.s4 1966171168
        %v1324 = vunpack.c.0.s8 %v1323
        %v1325 = vlaneseq
        %v1326 = vshrl.u32 %v1325, 7
        %v1327 = vsub.s32 %v1324, %v1326
        %v1328 = vrot.slane %v1321, %v1327
        %v1330 = vsel %vm1311, %v1328, 0.0
        %v1331 = vadd.f32 %v1287, %v1330
        %1332 = vrot.lane.b32.xlu0 %v685, 19
        %v1333 = vpop.permute.xlu0 %1332
        %1334 = vrot.lane.b32.xlu0 %v686, 19
        %v1335 = vpop.permute.xlu0 %1334
        %vm1336 = vcmp.lt.s32.totalorder %v404, 19
        %v1337 = vsel %vm1336, %v1333, %v1335
        %v1338 = vsel %vm1336, %v1335, %v1333
        %1339 = vrot.lane.b32.xlu0 %v695, 19
        %v1340 = vpop.permute.xlu0 %1339
        %1341 = vrot.lane.b32.xlu0 %v704, 19
        %v1342 = vpop.permute.xlu0 %1341
        %v1343 = vsel %vm1336, %v1340, %v1342
        %v1344 = vsel %vm1336, %v1342, %v1340
        %s1345 = sld [smem:[#allocation7 + $0xe]]
        %s1346 = sld [smem:[#allocation7 + $0x3f]]
        %v1347 = vstv %s1345
        %v1348 = vmul.f32 %v1347, %v1338
        %v1349 = vmul.f32 %v1347, %v1337
        %v1350 = vstv %s1346
        %v1351 = vmul.f32 %v1350, %v1344
        %v1352 = vmul.f32 %v1350, %v1343
        %v1353 = vadd.f32 %v1348, %v1351
        %v1354 = vadd.f32 %v1349, %v1352
        %vm1355 = vcmp.ge.s32.totalorder %v705, 1
        %vm1356 = vmand %vm1355, %vm734
        %v1359 = vcombine.low %v1353, %v1354
        %v1361 = vunpack.c.l.s4 1966171168
        %v1362 = vunpack.c.0.s8 %v1361
        %v1363 = vlaneseq
        %v1364 = vshrl.u32 %v1363, 7
        %v1365 = vsub.s32 %v1362, %v1364
        %v1366 = vrot.slane %v1359, %v1365
        %v1368 = vunpack.c.l.s4 1966171168
        %v1369 = vunpack.c.0.s8 %v1368
        %v1370 = vlaneseq
        %v1371 = vshrl.u32 %v1370, 7
        %v1372 = vsub.s32 %v1369, %v1371
        %v1373 = vrot.slane %v1366, %v1372
        %v1375 = vsel %vm1356, %v1373, 0.0
        %v1376 = vadd.f32 %v1331, %v1375
        %1377 = vrot.lane.b32.xlu0 %v685, 18
        %v1378 = vpop.permute.xlu0 %1377
        %1379 = vrot.lane.b32.xlu0 %v686, 18
        %v1380 = vpop.permute.xlu0 %1379
        %vm1381 = vcmp.lt.s32.totalorder %v404, 18
        %v1382 = vsel %vm1381, %v1378, %v1380
        %v1383 = vsel %vm1381, %v1380, %v1378
        %1384 = vrot.lane.b32.xlu0 %v695, 18
        %v1385 = vpop.permute.xlu0 %1384
        %1386 = vrot.lane.b32.xlu0 %v704, 18
        %v1387 = vpop.permute.xlu0 %1386
        %v1388 = vsel %vm1381, %v1385, %v1387
        %v1389 = vsel %vm1381, %v1387, %v1385
        %s1390 = sld [smem:[#allocation7 + $0xf]]
        %s1391 = sld [smem:[#allocation7 + $0x40]]
        %v1392 = vstv %s1390
        %v1393 = vmul.f32 %v1392, %v1383
        %v1394 = vmul.f32 %v1392, %v1382
        %v1395 = vstv %s1391
        %v1396 = vmul.f32 %v1395, %v1389
        %v1397 = vmul.f32 %v1395, %v1388
        %v1398 = vadd.f32 %v1393, %v1396
        %v1399 = vadd.f32 %v1394, %v1397
        %vm1400 = vmand %vm1355, %vm779
        %v1403 = vcombine.low %v1398, %v1399
        %v1405 = vunpack.c.l.s4 1966171168
        %v1406 = vunpack.c.0.s8 %v1405
        %v1407 = vlaneseq
        %v1408 = vshrl.u32 %v1407, 7
        %v1409 = vsub.s32 %v1406, %v1408
        %v1410 = vrot.slane %v1403, %v1409
        %v1412 = vunpack.c.l.s4 1966171168
        %v1413 = vunpack.c.0.s8 %v1412
        %v1414 = vlaneseq
        %v1415 = vshrl.u32 %v1414, 7
        %v1416 = vsub.s32 %v1413, %v1415
        %v1417 = vrot.slane %v1410, %v1416
        %v1419 = vsel %vm1400, %v1417, 0.0
        %v1420 = vadd.f32 %v1376, %v1419
        %1421 = vrot.lane.b32.xlu0 %v685, 17
        %v1422 = vpop.permute.xlu0 %1421
        %1423 = vrot.lane.b32.xlu0 %v686, 17
        %v1424 = vpop.permute.xlu0 %1423
        %vm1425 = vcmp.lt.s32.totalorder %v404, 17
        %v1426 = vsel %vm1425, %v1422, %v1424
        %v1427 = vsel %vm1425, %v1424, %v1422
        %1428 = vrot.lane.b32.xlu0 %v695, 17
        %v1429 = vpop.permute.xlu0 %1428
        %1430 = vrot.lane.b32.xlu0 %v704, 17
        %v1431 = vpop.permute.xlu0 %1430
        %v1432 = vsel %vm1425, %v1429, %v1431
        %v1433 = vsel %vm1425, %v1431, %v1429
        %s1434 = sld [smem:[#allocation7 + $0x10]]
        %s1435 = sld [smem:[#allocation7 + $0x41]]
        %v1436 = vstv %s1434
        %v1437 = vmul.f32 %v1436, %v1427
        %v1438 = vmul.f32 %v1436, %v1426
        %v1439 = vstv %s1435
        %v1440 = vmul.f32 %v1439, %v1433
        %v1441 = vmul.f32 %v1439, %v1432
        %v1442 = vadd.f32 %v1437, %v1440
        %v1443 = vadd.f32 %v1438, %v1441
        %vm1444 = vmand %vm1355, %vm824
        %v1447 = vcombine.low %v1442, %v1443
        %v1449 = vunpack.c.l.s4 1966171168
        %v1450 = vunpack.c.0.s8 %v1449
        %v1451 = vlaneseq
        %v1452 = vshrl.u32 %v1451, 7
        %v1453 = vsub.s32 %v1450, %v1452
        %v1454 = vrot.slane %v1447, %v1453
        %v1456 = vunpack.c.l.s4 1966171168
        %v1457 = vunpack.c.0.s8 %v1456
        %v1458 = vlaneseq
        %v1459 = vshrl.u32 %v1458, 7
        %v1460 = vsub.s32 %v1457, %v1459
        %v1461 = vrot.slane %v1454, %v1460
        %v1463 = vsel %vm1444, %v1461, 0.0
        %v1464 = vadd.f32 %v1420, %v1463
        %1465 = vrot.lane.b32.xlu0 %v685, 16
        %v1466 = vpop.permute.xlu0 %1465
        %1467 = vrot.lane.b32.xlu0 %v686, 16
        %v1468 = vpop.permute.xlu0 %1467
        %vm1469 = vcmp.lt.s32.totalorder %v404, 16
        %v1470 = vsel %vm1469, %v1466, %v1468
        %v1471 = vsel %vm1469, %v1468, %v1466
        %1472 = vrot.lane.b32.xlu0 %v695, 16
        %v1473 = vpop.permute.xlu0 %1472
        %1474 = vrot.lane.b32.xlu0 %v704, 16
        %v1475 = vpop.permute.xlu0 %1474
        %v1476 = vsel %vm1469, %v1473, %v1475
        %v1477 = vsel %vm1469, %v1475, %v1473
        %s1478 = sld [smem:[#allocation7 + $0x11]]
        %s1479 = sld [smem:[#allocation7 + $0x42]]
        %v1480 = vstv %s1478
        %v1481 = vmul.f32 %v1480, %v1471
        %v1482 = vmul.f32 %v1480, %v1470
        %v1483 = vstv %s1479
        %v1484 = vmul.f32 %v1483, %v1477
        %v1485 = vmul.f32 %v1483, %v1476
        %v1486 = vadd.f32 %v1481, %v1484
        %v1487 = vadd.f32 %v1482, %v1485
        %v1490 = vcombine.low %v1486, %v1487
        %v1492 = vunpack.c.l.s4 1966171168
        %v1493 = vunpack.c.0.s8 %v1492
        %v1494 = vlaneseq
        %v1495 = vshrl.u32 %v1494, 7
        %v1496 = vsub.s32 %v1493, %v1495
        %v1497 = vrot.slane %v1490, %v1496
        %v1499 = vunpack.c.l.s4 1966171168
        %v1500 = vunpack.c.0.s8 %v1499
        %v1501 = vlaneseq
        %v1502 = vshrl.u32 %v1501, 7
        %v1503 = vsub.s32 %v1500, %v1502
        %v1504 = vrot.slane %v1497, %v1503
        %v1506 = vsel %vm1355, %v1504, 0.0
        %v1507 = vadd.f32 %v1464, %v1506
        %1508 = vrot.lane.b32.xlu0 %v685, 15
        %v1509 = vpop.permute.xlu0 %1508
        %1510 = vrot.lane.b32.xlu0 %v686, 15
        %v1511 = vpop.permute.xlu0 %1510
        %vm1512 = vcmp.lt.s32.totalorder %v404, 15
        %v1513 = vsel %vm1512, %v1509, %v1511
        %v1514 = vsel %vm1512, %v1511, %v1509
        %1515 = vrot.lane.b32.xlu0 %v695, 15
        %v1516 = vpop.permute.xlu0 %1515
        %1517 = vrot.lane.b32.xlu0 %v704, 15
        %v1518 = vpop.permute.xlu0 %1517
        %v1519 = vsel %vm1512, %v1516, %v1518
        %v1520 = vsel %vm1512, %v1518, %v1516
        %s1521 = sld [smem:[#allocation7 + $0x12]]
        %s1522 = sld [smem:[#allocation7 + $0x43]]
        %v1523 = vstv %s1521
        %v1524 = vmul.f32 %v1523, %v1514
        %v1525 = vmul.f32 %v1523, %v1513
        %v1526 = vstv %s1522
        %v1527 = vmul.f32 %v1526, %v1520
        %v1528 = vmul.f32 %v1526, %v1519
        %v1529 = vadd.f32 %v1524, %v1527
        %v1530 = vadd.f32 %v1525, %v1528
        %vm1531 = vmand %vm1355, %vm912
        %v1534 = vcombine.low %v1529, %v1530
        %v1536 = vunpack.c.l.s4 1966171168
        %v1537 = vunpack.c.0.s8 %v1536
        %v1538 = vlaneseq
        %v1539 = vshrl.u32 %v1538, 7
        %v1540 = vsub.s32 %v1537, %v1539
        %v1541 = vrot.slane %v1534, %v1540
        %v1543 = vunpack.c.l.s4 1966171168
        %v1544 = vunpack.c.0.s8 %v1543
        %v1545 = vlaneseq
        %v1546 = vshrl.u32 %v1545, 7
        %v1547 = vsub.s32 %v1544, %v1546
        %v1548 = vrot.slane %v1541, %v1547
        %v1550 = vsel %vm1531, %v1548, 0.0
        %v1551 = vadd.f32 %v1507, %v1550
        %1552 = vrot.lane.b32.xlu0 %v685, 14
        %v1553 = vpop.permute.xlu0 %1552
        %1554 = vrot.lane.b32.xlu0 %v686, 14
        %v1555 = vpop.permute.xlu0 %1554
        %vm1556 = vcmp.lt.s32.totalorder %v404, 14
        %v1557 = vsel %vm1556, %v1553, %v1555
        %v1558 = vsel %vm1556, %v1555, %v1553
        %1559 = vrot.lane.b32.xlu0 %v695, 14
        %v1560 = vpop.permute.xlu0 %1559
        %1561 = vrot.lane.b32.xlu0 %v704, 14
        %v1562 = vpop.permute.xlu0 %1561
        %v1563 = vsel %vm1556, %v1560, %v1562
        %v1564 = vsel %vm1556, %v1562, %v1560
        %s1565 = sld [smem:[#allocation7 + $0x13]]
        %s1566 = sld [smem:[#allocation7 + $0x44]]
        %v1567 = vstv %s1565
        %v1568 = vmul.f32 %v1567, %v1558
        %v1569 = vmul.f32 %v1567, %v1557
        %v1570 = vstv %s1566
        %v1571 = vmul.f32 %v1570, %v1564
        %v1572 = vmul.f32 %v1570, %v1563
        %v1573 = vadd.f32 %v1568, %v1571
        %v1574 = vadd.f32 %v1569, %v1572
        %vm1575 = vmand %vm1355, %vm957
        %v1578 = vcombine.low %v1573, %v1574
        %v1580 = vunpack.c.l.s4 1966171168
        %v1581 = vunpack.c.0.s8 %v1580
        %v1582 = vlaneseq
        %v1583 = vshrl.u32 %v1582, 7
        %v1584 = vsub.s32 %v1581, %v1583
        %v1585 = vrot.slane %v1578, %v1584
        %v1587 = vunpack.c.l.s4 1966171168
        %v1588 = vunpack.c.0.s8 %v1587
        %v1589 = vlaneseq
        %v1590 = vshrl.u32 %v1589, 7
        %v1591 = vsub.s32 %v1588, %v1590
        %v1592 = vrot.slane %v1585, %v1591
        %v1594 = vsel %vm1575, %v1592, 0.0
        %v1595 = vadd.f32 %v1551, %v1594
        %1596 = vrot.lane.b32.xlu0 %v685, 13
        %v1597 = vpop.permute.xlu0 %1596
        %1598 = vrot.lane.b32.xlu0 %v686, 13
        %v1599 = vpop.permute.xlu0 %1598
        %vm1600 = vcmp.lt.s32.totalorder %v404, 13
        %v1601 = vsel %vm1600, %v1597, %v1599
        %v1602 = vsel %vm1600, %v1599, %v1597
        %1603 = vrot.lane.b32.xlu0 %v695, 13
        %v1604 = vpop.permute.xlu0 %1603
        %1605 = vrot.lane.b32.xlu0 %v704, 13
        %v1606 = vpop.permute.xlu0 %1605
        %v1607 = vsel %vm1600, %v1604, %v1606
        %v1608 = vsel %vm1600, %v1606, %v1604
        %s1609 = sld [smem:[#allocation7 + $0x14]]
        %s1610 = sld [smem:[#allocation7 + $0x45]]
        %v1611 = vstv %s1609
        %v1612 = vmul.f32 %v1611, %v1602
        %v1613 = vmul.f32 %v1611, %v1601
        %v1614 = vstv %s1610
        %v1615 = vmul.f32 %v1614, %v1608
        %v1616 = vmul.f32 %v1614, %v1607
        %v1617 = vadd.f32 %v1612, %v1615
        %v1618 = vadd.f32 %v1613, %v1616
        %vm1619 = vmand %vm1355, %vm1002
        %v1622 = vcombine.low %v1617, %v1618
        %v1624 = vunpack.c.l.s4 1966171168
        %v1625 = vunpack.c.0.s8 %v1624
        %v1626 = vlaneseq
        %v1627 = vshrl.u32 %v1626, 7
        %v1628 = vsub.s32 %v1625, %v1627
        %v1629 = vrot.slane %v1622, %v1628
        %v1631 = vunpack.c.l.s4 1966171168
        %v1632 = vunpack.c.0.s8 %v1631
        %v1633 = vlaneseq
        %v1634 = vshrl.u32 %v1633, 7
        %v1635 = vsub.s32 %v1632, %v1634
        %v1636 = vrot.slane %v1629, %v1635
        %v1638 = vsel %vm1619, %v1636, 0.0
        %v1639 = vadd.f32 %v1595, %v1638
        %1640 = vrot.lane.b32.xlu0 %v685, 3
        %v1641 = vpop.permute.xlu0 %1640
        %1642 = vrot.lane.b32.xlu0 %v686, 3
        %v1643 = vpop.permute.xlu0 %1642
        %vm1644 = vcmp.lt.s32.totalorder %v404, 3
        %v1645 = vsel %vm1644, %v1641, %v1643
        %v1646 = vsel %vm1644, %v1643, %v1641
        %1647 = vrot.lane.b32.xlu0 %v695, 3
        %v1648 = vpop.permute.xlu0 %1647
        %1649 = vrot.lane.b32.xlu0 %v704, 3
        %v1650 = vpop.permute.xlu0 %1649
        %v1651 = vsel %vm1644, %v1648, %v1650
        %v1652 = vsel %vm1644, %v1650, %v1648
        %s1653 = sld [smem:[#allocation7 + $0x15]]
        %s1654 = sld [smem:[#allocation7 + $0x46]]
        %v1655 = vstv %s1653
        %v1656 = vmul.f32 %v1655, %v1646
        %v1657 = vmul.f32 %v1655, %v1645
        %v1658 = vstv %s1654
        %v1659 = vmul.f32 %v1658, %v1652
        %v1660 = vmul.f32 %v1658, %v1651
        %v1661 = vadd.f32 %v1656, %v1659
        %v1662 = vadd.f32 %v1657, %v1660
        %v1665 = vcombine.low %v1661, %v1662
        %v1667 = vunpack.c.l.s4 1966171168
        %v1668 = vunpack.c.0.s8 %v1667
        %v1669 = vlaneseq
        %v1670 = vshrl.u32 %v1669, 7
        %v1671 = vsub.s32 %v1668, %v1670
        %v1672 = vrot.slane %v1665, %v1671
        %v1674 = vunpack.c.l.s4 1966171168
        %v1675 = vunpack.c.0.s8 %v1674
        %v1676 = vlaneseq
        %v1677 = vshrl.u32 %v1676, 7
        %v1678 = vsub.s32 %v1675, %v1677
        %v1679 = vrot.slane %v1672, %v1678
        %v1681 = vsel %vm734, %v1679, 0.0
        %v1682 = vadd.f32 %v1639, %v1681
        %1683 = vrot.lane.b32.xlu0 %v685, 2
        %v1684 = vpop.permute.xlu0 %1683
        %1685 = vrot.lane.b32.xlu0 %v686, 2
        %v1686 = vpop.permute.xlu0 %1685
        %vm1687 = vcmp.lt.s32.totalorder %v404, 2
        %v1688 = vsel %vm1687, %v1684, %v1686
        %v1689 = vsel %vm1687, %v1686, %v1684
        %1690 = vrot.lane.b32.xlu0 %v695, 2
        %v1691 = vpop.permute.xlu0 %1690
        %1692 = vrot.lane.b32.xlu0 %v704, 2
        %v1693 = vpop.permute.xlu0 %1692
        %v1694 = vsel %vm1687, %v1691, %v1693
        %v1695 = vsel %vm1687, %v1693, %v1691
        %s1696 = sld [smem:[#allocation7 + $0x16]]
        %s1697 = sld [smem:[#allocation7 + $0x47]]
        %v1698 = vstv %s1696
        %v1699 = vmul.f32 %v1698, %v1689
        %v1700 = vmul.f32 %v1698, %v1688
        %v1701 = vstv %s1697
        %v1702 = vmul.f32 %v1701, %v1695
        %v1703 = vmul.f32 %v1701, %v1694
        %v1704 = vadd.f32 %v1699, %v1702
        %v1705 = vadd.f32 %v1700, %v1703
        %v1708 = vcombine.low %v1704, %v1705
        %v1710 = vunpack.c.l.s4 1966171168
        %v1711 = vunpack.c.0.s8 %v1710
        %v1712 = vlaneseq
        %v1713 = vshrl.u32 %v1712, 7
        %v1714 = vsub.s32 %v1711, %v1713
        %v1715 = vrot.slane %v1708, %v1714
        %v1717 = vunpack.c.l.s4 1966171168
        %v1718 = vunpack.c.0.s8 %v1717
        %v1719 = vlaneseq
        %v1720 = vshrl.u32 %v1719, 7
        %v1721 = vsub.s32 %v1718, %v1720
        %v1722 = vrot.slane %v1715, %v1721
        %v1724 = vsel %vm779, %v1722, 0.0
        %v1725 = vadd.f32 %v1682, %v1724
        %1726 = vrot.lane.b32.xlu0 %v685, 1
        %v1727 = vpop.permute.xlu0 %1726
        %1728 = vrot.lane.b32.xlu0 %v686, 1
        %v1729 = vpop.permute.xlu0 %1728
        %vm1730 = vcmp.lt.s32.totalorder %v404, 1
        %v1731 = vsel %vm1730, %v1727, %v1729
        %v1732 = vsel %vm1730, %v1729, %v1727
        %1733 = vrot.lane.b32.xlu0 %v695, 1
        %v1734 = vpop.permute.xlu0 %1733
        %1735 = vrot.lane.b32.xlu0 %v704, 1
        %v1736 = vpop.permute.xlu0 %1735
        %v1737 = vsel %vm1730, %v1734, %v1736
        %v1738 = vsel %vm1730, %v1736, %v1734
        %s1739 = sld [smem:[#allocation7 + $0x17]]
        %s1740 = sld [smem:[#allocation7 + $0x48]]
        %v1741 = vstv %s1739
        %v1742 = vmul.f32 %v1741, %v1732
        %v1743 = vmul.f32 %v1741, %v1731
        %v1744 = vstv %s1740
        %v1745 = vmul.f32 %v1744, %v1738
        %v1746 = vmul.f32 %v1744, %v1737
        %v1747 = vadd.f32 %v1742, %v1745
        %v1748 = vadd.f32 %v1743, %v1746
        %v1751 = vcombine.low %v1747, %v1748
        %v1753 = vunpack.c.l.s4 1966171168
        %v1754 = vunpack.c.0.s8 %v1753
        %v1755 = vlaneseq
        %v1756 = vshrl.u32 %v1755, 7
        %v1757 = vsub.s32 %v1754, %v1756
        %v1758 = vrot.slane %v1751, %v1757
        %v1760 = vunpack.c.l.s4 1966171168
        %v1761 = vunpack.c.0.s8 %v1760
        %v1762 = vlaneseq
        %v1763 = vshrl.u32 %v1762, 7
        %v1764 = vsub.s32 %v1761, %v1763
        %v1765 = vrot.slane %v1758, %v1764
        %v1767 = vsel %vm824, %v1765, 0.0
        %v1768 = vadd.f32 %v1725, %v1767
        %s1769 = sld [smem:[#allocation7 + $0x18]]
        %s1770 = sld [smem:[#allocation7 + $0x49]]
        %v1771 = vstv %s1769
        %v1772 = vmul.f32 %v1771, %v685
        %v1773 = vmul.f32 %v1771, %v686
        %v1774 = vstv %s1770
        %v1775 = vmul.f32 %v1774, %v695
        %v1776 = vmul.f32 %v1774, %v704
        %v1777 = vadd.f32 %v1772, %v1775
        %v1778 = vadd.f32 %v1773, %v1776
        %v1781 = vcombine.low %v1777, %v1778
        %v1783 = vunpack.c.l.s4 1966171168
        %v1784 = vunpack.c.0.s8 %v1783
        %v1785 = vlaneseq
        %v1786 = vshrl.u32 %v1785, 7
        %v1787 = vsub.s32 %v1784, %v1786
        %v1788 = vrot.slane %v1781, %v1787
        %v1790 = vunpack.c.l.s4 1966171168
        %v1791 = vunpack.c.0.s8 %v1790
        %v1792 = vlaneseq
        %v1793 = vshrl.u32 %v1792, 7
        %v1794 = vsub.s32 %v1791, %v1793
        %v1795 = vrot.slane %v1788, %v1794
        %v1797 = vadd.f32 %v1768, %v1795
        %1798 = vrot.lane.b32.xlu0 %v685, 127
        %v1799 = vpop.permute.xlu0 %1798
        %1800 = vrot.lane.b32.xlu0 %v686, 127
        %v1801 = vpop.permute.xlu0 %1800
        %vm1802 = vcmp.lt.s32.totalorder %v404, 127
        %v1803 = vsel %vm1802, %v1799, %v1801
        %v1804 = vsel %vm1802, %v1801, %v1799
        %1805 = vrot.lane.b32.xlu0 %v695, 127
        %v1806 = vpop.permute.xlu0 %1805
        %1807 = vrot.lane.b32.xlu0 %v704, 127
        %v1808 = vpop.permute.xlu0 %1807
        %v1809 = vsel %vm1802, %v1806, %v1808
        %v1810 = vsel %vm1802, %v1808, %v1806
        %s1811 = sld [smem:[#allocation7 + $0x19]]
        %s1812 = sld [smem:[#allocation7 + $0x4a]]
        %v1813 = vstv %s1811
        %v1814 = vmul.f32 %v1813, %v1803
        %v1815 = vmul.f32 %v1813, %v1804
        %v1816 = vstv %s1812
        %v1817 = vmul.f32 %v1816, %v1809
        %v1818 = vmul.f32 %v1816, %v1810
        %v1819 = vadd.f32 %v1814, %v1817
        %v1820 = vadd.f32 %v1815, %v1818
        %v1823 = vcombine.low %v1819, %v1820
        %v1825 = vunpack.c.l.s4 1966171168
        %v1826 = vunpack.c.0.s8 %v1825
        %v1827 = vlaneseq
        %v1828 = vshrl.u32 %v1827, 7
        %v1829 = vsub.s32 %v1826, %v1828
        %v1830 = vrot.slane %v1823, %v1829
        %v1832 = vunpack.c.l.s4 1966171168
        %v1833 = vunpack.c.0.s8 %v1832
        %v1834 = vlaneseq
        %v1835 = vshrl.u32 %v1834, 7
        %v1836 = vsub.s32 %v1833, %v1835
        %v1837 = vrot.slane %v1830, %v1836
        %v1839 = vsel %vm912, %v1837, 0.0
        %v1840 = vadd.f32 %v1797, %v1839
        %1841 = vrot.lane.b32.xlu0 %v685, 126
        %v1842 = vpop.permute.xlu0 %1841
        %1843 = vrot.lane.b32.xlu0 %v686, 126
        %v1844 = vpop.permute.xlu0 %1843
        %vm1845 = vcmp.lt.s32.totalorder %v404, 126
        %v1846 = vsel %vm1845, %v1842, %v1844
        %v1847 = vsel %vm1845, %v1844, %v1842
        %1848 = vrot.lane.b32.xlu0 %v695, 126
        %v1849 = vpop.permute.xlu0 %1848
        %1850 = vrot.lane.b32.xlu0 %v704, 126
        %v1851 = vpop.permute.xlu0 %1850
        %v1852 = vsel %vm1845, %v1849, %v1851
        %v1853 = vsel %vm1845, %v1851, %v1849
        %s1854 = sld [smem:[#allocation7 + $0x1a]]
        %s1855 = sld [smem:[#allocation7 + $0x4b]]
        %v1856 = vstv %s1854
        %v1857 = vmul.f32 %v1856, %v1846
        %v1858 = vmul.f32 %v1856, %v1847
        %v1859 = vstv %s1855
        %v1860 = vmul.f32 %v1859, %v1852
        %v1861 = vmul.f32 %v1859, %v1853
        %v1862 = vadd.f32 %v1857, %v1860
        %v1863 = vadd.f32 %v1858, %v1861
        %v1866 = vcombine.low %v1862, %v1863
        %v1868 = vunpack.c.l.s4 1966171168
        %v1869 = vunpack.c.0.s8 %v1868
        %v1870 = vlaneseq
        %v1871 = vshrl.u32 %v1870, 7
        %v1872 = vsub.s32 %v1869, %v1871
        %v1873 = vrot.slane %v1866, %v1872
        %v1875 = vunpack.c.l.s4 1966171168
        %v1876 = vunpack.c.0.s8 %v1875
        %v1877 = vlaneseq
        %v1878 = vshrl.u32 %v1877, 7
        %v1879 = vsub.s32 %v1876, %v1878
        %v1880 = vrot.slane %v1873, %v1879
        %v1882 = vsel %vm957, %v1880, 0.0
        %v1883 = vadd.f32 %v1840, %v1882
        %1884 = vrot.lane.b32.xlu0 %v685, 125
        %v1885 = vpop.permute.xlu0 %1884
        %1886 = vrot.lane.b32.xlu0 %v686, 125
        %v1887 = vpop.permute.xlu0 %1886
        %vm1888 = vcmp.lt.s32.totalorder %v404, 125
        %v1889 = vsel %vm1888, %v1885, %v1887
        %v1890 = vsel %vm1888, %v1887, %v1885
        %1891 = vrot.lane.b32.xlu0 %v695, 125
        %v1892 = vpop.permute.xlu0 %1891
        %1893 = vrot.lane.b32.xlu0 %v704, 125
        %v1894 = vpop.permute.xlu0 %1893
        %v1895 = vsel %vm1888, %v1892, %v1894
        %v1896 = vsel %vm1888, %v1894, %v1892
        %s1897 = sld [smem:[#allocation7 + $0x1b]]
        %s1898 = sld [smem:[#allocation7 + $0x4c]]
        %v1899 = vstv %s1897
        %v1900 = vmul.f32 %v1899, %v1889
        %v1901 = vmul.f32 %v1899, %v1890
        %v1902 = vstv %s1898
        %v1903 = vmul.f32 %v1902, %v1895
        %v1904 = vmul.f32 %v1902, %v1896
        %v1905 = vadd.f32 %v1900, %v1903
        %v1906 = vadd.f32 %v1901, %v1904
        %v1909 = vcombine.low %v1905, %v1906
        %v1911 = vunpack.c.l.s4 1966171168
        %v1912 = vunpack.c.0.s8 %v1911
        %v1913 = vlaneseq
        %v1914 = vshrl.u32 %v1913, 7
        %v1915 = vsub.s32 %v1912, %v1914
        %v1916 = vrot.slane %v1909, %v1915
        %v1918 = vunpack.c.l.s4 1966171168
        %v1919 = vunpack.c.0.s8 %v1918
        %v1920 = vlaneseq
        %v1921 = vshrl.u32 %v1920, 7
        %v1922 = vsub.s32 %v1919, %v1921
        %v1923 = vrot.slane %v1916, %v1922
        %v1925 = vsel %vm1002, %v1923, 0.0
        %v1926 = vadd.f32 %v1883, %v1925
        %1927 = vrot.lane.b32.xlu0 %v685, 115
        %v1928 = vpop.permute.xlu0 %1927
        %1929 = vrot.lane.b32.xlu0 %v686, 115
        %v1930 = vpop.permute.xlu0 %1929
        %vm1931 = vcmp.lt.s32.totalorder %v404, 115
        %v1932 = vsel %vm1931, %v1928, %v1930
        %v1933 = vsel %vm1931, %v1930, %v1928
        %1934 = vrot.lane.b32.xlu0 %v695, 115
        %v1935 = vpop.permute.xlu0 %1934
        %1936 = vrot.lane.b32.xlu0 %v704, 115
        %v1937 = vpop.permute.xlu0 %1936
        %v1938 = vsel %vm1931, %v1935, %v1937
        %v1939 = vsel %vm1931, %v1937, %v1935
        %s1940 = sld [smem:[#allocation7 + $0x1c]]
        %s1941 = sld [smem:[#allocation7 + $0x4d]]
        %v1942 = vstv %s1940
        %v1943 = vmul.f32 %v1942, %v1932
        %v1944 = vmul.f32 %v1942, %v1933
        %v1945 = vstv %s1941
        %v1946 = vmul.f32 %v1945, %v1938
        %v1947 = vmul.f32 %v1945, %v1939
        %v1948 = vadd.f32 %v1943, %v1946
        %v1949 = vadd.f32 %v1944, %v1947
        %vm1950 = vcmp.lt.s32.totalorder %v705, 15
        %vm1951 = vmand %vm1950, %vm734
        %v1954 = vcombine.low %v1948, %v1949
        %v1956 = vunpack.c.l.s4 1966171168
        %v1957 = vunpack.c.0.s8 %v1956
        %v1958 = vlaneseq
        %v1959 = vshrl.u32 %v1958, 7
        %v1960 = vsub.s32 %v1957, %v1959
        %v1961 = vrot.slane %v1954, %v1960
        %v1963 = vunpack.c.l.s4 1966171168
        %v1964 = vunpack.c.0.s8 %v1963
        %v1965 = vlaneseq
        %v1966 = vshrl.u32 %v1965, 7
        %v1967 = vsub.s32 %v1964, %v1966
        %v1968 = vrot.slane %v1961, %v1967
        %v1970 = vsel %vm1951, %v1968, 0.0
        %v1971 = vadd.f32 %v1926, %v1970
        %1972 = vrot.lane.b32.xlu0 %v685, 114
        %v1973 = vpop.permute.xlu0 %1972
        %1974 = vrot.lane.b32.xlu0 %v686, 114
        %v1975 = vpop.permute.xlu0 %1974
        %vm1976 = vcmp.lt.s32.totalorder %v404, 114
        %v1977 = vsel %vm1976, %v1973, %v1975
        %v1978 = vsel %vm1976, %v1975, %v1973
        %1979 = vrot.lane.b32.xlu0 %v695, 114
        %v1980 = vpop.permute.xlu0 %1979
        %1981 = vrot.lane.b32.xlu0 %v704, 114
        %v1982 = vpop.permute.xlu0 %1981
        %v1983 = vsel %vm1976, %v1980, %v1982
        %v1984 = vsel %vm1976, %v1982, %v1980
        %s1985 = sld [smem:[#allocation7 + $0x1d]]
        %s1986 = sld [smem:[#allocation7 + $0x4e]]
        %v1987 = vstv %s1985
        %v1988 = vmul.f32 %v1987, %v1977
        %v1989 = vmul.f32 %v1987, %v1978
        %v1990 = vstv %s1986
        %v1991 = vmul.f32 %v1990, %v1983
        %v1992 = vmul.f32 %v1990, %v1984
        %v1993 = vadd.f32 %v1988, %v1991
        %v1994 = vadd.f32 %v1989, %v1992
        %vm1995 = vmand %vm1950, %vm779
        %v1998 = vcombine.low %v1993, %v1994
        %v2000 = vunpack.c.l.s4 1966171168
        %v2001 = vunpack.c.0.s8 %v2000
        %v2002 = vlaneseq
        %v2003 = vshrl.u32 %v2002, 7
        %v2004 = vsub.s32 %v2001, %v2003
        %v2005 = vrot.slane %v1998, %v2004
        %v2007 = vunpack.c.l.s4 1966171168
        %v2008 = vunpack.c.0.s8 %v2007
        %v2009 = vlaneseq
        %v2010 = vshrl.u32 %v2009, 7
        %v2011 = vsub.s32 %v2008, %v2010
        %v2012 = vrot.slane %v2005, %v2011
        %v2014 = vsel %vm1995, %v2012, 0.0
        %v2015 = vadd.f32 %v1971, %v2014
        %2016 = vrot.lane.b32.xlu0 %v685, 113
        %v2017 = vpop.permute.xlu0 %2016
        %2018 = vrot.lane.b32.xlu0 %v686, 113
        %v2019 = vpop.permute.xlu0 %2018
        %vm2020 = vcmp.lt.s32.totalorder %v404, 113
        %v2021 = vsel %vm2020, %v2017, %v2019
        %v2022 = vsel %vm2020, %v2019, %v2017
        %2023 = vrot.lane.b32.xlu0 %v695, 113
        %v2024 = vpop.permute.xlu0 %2023
        %2025 = vrot.lane.b32.xlu0 %v704, 113
        %v2026 = vpop.permute.xlu0 %2025
        %v2027 = vsel %vm2020, %v2024, %v2026
        %v2028 = vsel %vm2020, %v2026, %v2024
        %s2029 = sld [smem:[#allocation7 + $0x1e]]
        %s2030 = sld [smem:[#allocation7 + $0x4f]]
        %v2031 = vstv %s2029
        %v2032 = vmul.f32 %v2031, %v2021
        %v2033 = vmul.f32 %v2031, %v2022
        %v2034 = vstv %s2030
        %v2035 = vmul.f32 %v2034, %v2027
        %v2036 = vmul.f32 %v2034, %v2028
        %v2037 = vadd.f32 %v2032, %v2035
        %v2038 = vadd.f32 %v2033, %v2036
        %vm2039 = vmand %vm1950, %vm824
        %v2042 = vcombine.low %v2037, %v2038
        %v2044 = vunpack.c.l.s4 1966171168
        %v2045 = vunpack.c.0.s8 %v2044
        %v2046 = vlaneseq
        %v2047 = vshrl.u32 %v2046, 7
        %v2048 = vsub.s32 %v2045, %v2047
        %v2049 = vrot.slane %v2042, %v2048
        %v2051 = vunpack.c.l.s4 1966171168
        %v2052 = vunpack.c.0.s8 %v2051
        %v2053 = vlaneseq
        %v2054 = vshrl.u32 %v2053, 7
        %v2055 = vsub.s32 %v2052, %v2054
        %v2056 = vrot.slane %v2049, %v2055
        %v2058 = vsel %vm2039, %v2056, 0.0
        %v2059 = vadd.f32 %v2015, %v2058
        %2060 = vrot.lane.b32.xlu0 %v685, 112
        %v2061 = vpop.permute.xlu0 %2060
        %2062 = vrot.lane.b32.xlu0 %v686, 112
        %v2063 = vpop.permute.xlu0 %2062
        %vm2064 = vcmp.lt.s32.totalorder %v404, 112
        %v2065 = vsel %vm2064, %v2061, %v2063
        %v2066 = vsel %vm2064, %v2063, %v2061
        %2067 = vrot.lane.b32.xlu0 %v695, 112
        %v2068 = vpop.permute.xlu0 %2067
        %2069 = vrot.lane.b32.xlu0 %v704, 112
        %v2070 = vpop.permute.xlu0 %2069
        %v2071 = vsel %vm2064, %v2068, %v2070
        %v2072 = vsel %vm2064, %v2070, %v2068
        %s2073 = sld [smem:[#allocation7 + $0x1f]]
        %s2074 = sld [smem:[#allocation7 + $0x50]]
        %v2075 = vstv %s2073
        %v2076 = vmul.f32 %v2075, %v2065
        %v2077 = vmul.f32 %v2075, %v2066
        %v2078 = vstv %s2074
        %v2079 = vmul.f32 %v2078, %v2071
        %v2080 = vmul.f32 %v2078, %v2072
        %v2081 = vadd.f32 %v2076, %v2079
        %v2082 = vadd.f32 %v2077, %v2080
        %v2085 = vcombine.low %v2081, %v2082
        %v2087 = vunpack.c.l.s4 1966171168
        %v2088 = vunpack.c.0.s8 %v2087
        %v2089 = vlaneseq
        %v2090 = vshrl.u32 %v2089, 7
        %v2091 = vsub.s32 %v2088, %v2090
        %v2092 = vrot.slane %v2085, %v2091
        %v2094 = vunpack.c.l.s4 1966171168
        %v2095 = vunpack.c.0.s8 %v2094
        %v2096 = vlaneseq
        %v2097 = vshrl.u32 %v2096, 7
        %v2098 = vsub.s32 %v2095, %v2097
        %v2099 = vrot.slane %v2092, %v2098
        %v2101 = vsel %vm1950, %v2099, 0.0
        %v2102 = vadd.f32 %v2059, %v2101
        %2103 = vrot.lane.b32.xlu0 %v685, 111
        %v2104 = vpop.permute.xlu0 %2103
        %2105 = vrot.lane.b32.xlu0 %v686, 111
        %v2106 = vpop.permute.xlu0 %2105
        %vm2107 = vcmp.lt.s32.totalorder %v404, 111
        %v2108 = vsel %vm2107, %v2104, %v2106
        %v2109 = vsel %vm2107, %v2106, %v2104
        %2110 = vrot.lane.b32.xlu0 %v695, 111
        %v2111 = vpop.permute.xlu0 %2110
        %2112 = vrot.lane.b32.xlu0 %v704, 111
        %v2113 = vpop.permute.xlu0 %2112
        %v2114 = vsel %vm2107, %v2111, %v2113
        %v2115 = vsel %vm2107, %v2113, %v2111
        %s2116 = sld [smem:[#allocation7 + $0x20]]
        %s2117 = sld [smem:[#allocation7 + $0x51]]
        %v2118 = vstv %s2116
        %v2119 = vmul.f32 %v2118, %v2108
        %v2120 = vmul.f32 %v2118, %v2109
        %v2121 = vstv %s2117
        %v2122 = vmul.f32 %v2121, %v2114
        %v2123 = vmul.f32 %v2121, %v2115
        %v2124 = vadd.f32 %v2119, %v2122
        %v2125 = vadd.f32 %v2120, %v2123
        %vm2126 = vmand %vm1950, %vm912
        %v2129 = vcombine.low %v2124, %v2125
        %v2131 = vunpack.c.l.s4 1966171168
        %v2132 = vunpack.c.0.s8 %v2131
        %v2133 = vlaneseq
        %v2134 = vshrl.u32 %v2133, 7
        %v2135 = vsub.s32 %v2132, %v2134
        %v2136 = vrot.slane %v2129, %v2135
        %v2138 = vunpack.c.l.s4 1966171168
        %v2139 = vunpack.c.0.s8 %v2138
        %v2140 = vlaneseq
        %v2141 = vshrl.u32 %v2140, 7
        %v2142 = vsub.s32 %v2139, %v2141
        %v2143 = vrot.slane %v2136, %v2142
        %v2145 = vsel %vm2126, %v2143, 0.0
        %v2146 = vadd.f32 %v2102, %v2145
        %2147 = vrot.lane.b32.xlu0 %v685, 110
        %v2148 = vpop.permute.xlu0 %2147
        %2149 = vrot.lane.b32.xlu0 %v686, 110
        %v2150 = vpop.permute.xlu0 %2149
        %vm2151 = vcmp.lt.s32.totalorder %v404, 110
        %v2152 = vsel %vm2151, %v2148, %v2150
        %v2153 = vsel %vm2151, %v2150, %v2148
        %2154 = vrot.lane.b32.xlu0 %v695, 110
        %v2155 = vpop.permute.xlu0 %2154
        %2156 = vrot.lane.b32.xlu0 %v704, 110
        %v2157 = vpop.permute.xlu0 %2156
        %v2158 = vsel %vm2151, %v2155, %v2157
        %v2159 = vsel %vm2151, %v2157, %v2155
        %s2160 = sld [smem:[#allocation7 + $0x21]]
        %s2161 = sld [smem:[#allocation7 + $0x52]]
        %v2162 = vstv %s2160
        %v2163 = vmul.f32 %v2162, %v2152
        %v2164 = vmul.f32 %v2162, %v2153
        %v2165 = vstv %s2161
        %v2166 = vmul.f32 %v2165, %v2158
        %v2167 = vmul.f32 %v2165, %v2159
        %v2168 = vadd.f32 %v2163, %v2166
        %v2169 = vadd.f32 %v2164, %v2167
        %vm2170 = vmand %vm1950, %vm957
        %v2173 = vcombine.low %v2168, %v2169
        %v2175 = vunpack.c.l.s4 1966171168
        %v2176 = vunpack.c.0.s8 %v2175
        %v2177 = vlaneseq
        %v2178 = vshrl.u32 %v2177, 7
        %v2179 = vsub.s32 %v2176, %v2178
        %v2180 = vrot.slane %v2173, %v2179
        %v2182 = vunpack.c.l.s4 1966171168
        %v2183 = vunpack.c.0.s8 %v2182
        %v2184 = vlaneseq
        %v2185 = vshrl.u32 %v2184, 7
        %v2186 = vsub.s32 %v2183, %v2185
        %v2187 = vrot.slane %v2180, %v2186
        %v2189 = vsel %vm2170, %v2187, 0.0
        %v2190 = vadd.f32 %v2146, %v2189
        %2191 = vrot.lane.b32.xlu0 %v685, 109
        %v2192 = vpop.permute.xlu0 %2191
        %2193 = vrot.lane.b32.xlu0 %v686, 109
        %v2194 = vpop.permute.xlu0 %2193
        %vm2195 = vcmp.lt.s32.totalorder %v404, 109
        %v2196 = vsel %vm2195, %v2192, %v2194
        %v2197 = vsel %vm2195, %v2194, %v2192
        %2198 = vrot.lane.b32.xlu0 %v695, 109
        %v2199 = vpop.permute.xlu0 %2198
        %2200 = vrot.lane.b32.xlu0 %v704, 109
        %v2201 = vpop.permute.xlu0 %2200
        %v2202 = vsel %vm2195, %v2199, %v2201
        %v2203 = vsel %vm2195, %v2201, %v2199
        %s2204 = sld [smem:[#allocation7 + $0x22]]
        %s2205 = sld [smem:[#allocation7 + $0x53]]
        %v2206 = vstv %s2204
        %v2207 = vmul.f32 %v2206, %v2196
        %v2208 = vmul.f32 %v2206, %v2197
        %v2209 = vstv %s2205
        %v2210 = vmul.f32 %v2209, %v2202
        %v2211 = vmul.f32 %v2209, %v2203
        %v2212 = vadd.f32 %v2207, %v2210
        %v2213 = vadd.f32 %v2208, %v2211
        %vm2214 = vmand %vm1950, %vm1002
        %v2217 = vcombine.low %v2212, %v2213
        %v2219 = vunpack.c.l.s4 1966171168
        %v2220 = vunpack.c.0.s8 %v2219
        %v2221 = vlaneseq
        %v2222 = vshrl.u32 %v2221, 7
        %v2223 = vsub.s32 %v2220, %v2222
        %v2224 = vrot.slane %v2217, %v2223
        %v2226 = vunpack.c.l.s4 1966171168
        %v2227 = vunpack.c.0.s8 %v2226
        %v2228 = vlaneseq
        %v2229 = vshrl.u32 %v2228, 7
        %v2230 = vsub.s32 %v2227, %v2229
        %v2231 = vrot.slane %v2224, %v2230
        %v2233 = vsel %vm2214, %v2231, 0.0
        %v2234 = vadd.f32 %v2190, %v2233
        %2235 = vrot.lane.b32.xlu0 %v685, 99
        %v2236 = vpop.permute.xlu0 %2235
        %2237 = vrot.lane.b32.xlu0 %v686, 99
        %v2238 = vpop.permute.xlu0 %2237
        %vm2239 = vcmp.lt.s32.totalorder %v404, 99
        %v2240 = vsel %vm2239, %v2236, %v2238
        %v2241 = vsel %vm2239, %v2238, %v2236
        %2242 = vrot.lane.b32.xlu0 %v695, 99
        %v2243 = vpop.permute.xlu0 %2242
        %2244 = vrot.lane.b32.xlu0 %v704, 99
        %v2245 = vpop.permute.xlu0 %2244
        %v2246 = vsel %vm2239, %v2243, %v2245
        %v2247 = vsel %vm2239, %v2245, %v2243
        %s2248 = sld [smem:[#allocation7 + $0x23]]
        %s2249 = sld [smem:[#allocation7 + $0x54]]
        %v2250 = vstv %s2248
        %v2251 = vmul.f32 %v2250, %v2240
        %v2252 = vmul.f32 %v2250, %v2241
        %v2253 = vstv %s2249
        %v2254 = vmul.f32 %v2253, %v2246
        %v2255 = vmul.f32 %v2253, %v2247
        %v2256 = vadd.f32 %v2251, %v2254
        %v2257 = vadd.f32 %v2252, %v2255
        %vm2258 = vcmp.lt.s32.totalorder %v705, 14
        %vm2259 = vmand %vm2258, %vm734
        %v2262 = vcombine.low %v2256, %v2257
        %v2264 = vunpack.c.l.s4 1966171168
        %v2265 = vunpack.c.0.s8 %v2264
        %v2266 = vlaneseq
        %v2267 = vshrl.u32 %v2266, 7
        %v2268 = vsub.s32 %v2265, %v2267
        %v2269 = vrot.slane %v2262, %v2268
        %v2271 = vunpack.c.l.s4 1966171168
        %v2272 = vunpack.c.0.s8 %v2271
        %v2273 = vlaneseq
        %v2274 = vshrl.u32 %v2273, 7
        %v2275 = vsub.s32 %v2272, %v2274
        %v2276 = vrot.slane %v2269, %v2275
        %v2278 = vsel %vm2259, %v2276, 0.0
        %v2279 = vadd.f32 %v2234, %v2278
        %2280 = vrot.lane.b32.xlu0 %v685, 98
        %v2281 = vpop.permute.xlu0 %2280
        %2282 = vrot.lane.b32.xlu0 %v686, 98
        %v2283 = vpop.permute.xlu0 %2282
        %vm2284 = vcmp.lt.s32.totalorder %v404, 98
        %v2285 = vsel %vm2284, %v2281, %v2283
        %v2286 = vsel %vm2284, %v2283, %v2281
        %2287 = vrot.lane.b32.xlu0 %v695, 98
        %v2288 = vpop.permute.xlu0 %2287
        %2289 = vrot.lane.b32.xlu0 %v704, 98
        %v2290 = vpop.permute.xlu0 %2289
        %v2291 = vsel %vm2284, %v2288, %v2290
        %v2292 = vsel %vm2284, %v2290, %v2288
        %s2293 = sld [smem:[#allocation7 + $0x24]]
        %s2294 = sld [smem:[#allocation7 + $0x55]]
        %v2295 = vstv %s2293
        %v2296 = vmul.f32 %v2295, %v2285
        %v2297 = vmul.f32 %v2295, %v2286
        %v2298 = vstv %s2294
        %v2299 = vmul.f32 %v2298, %v2291
        %v2300 = vmul.f32 %v2298, %v2292
        %v2301 = vadd.f32 %v2296, %v2299
        %v2302 = vadd.f32 %v2297, %v2300
        %vm2303 = vmand %vm2258, %vm779
        %v2306 = vcombine.low %v2301, %v2302
        %v2308 = vunpack.c.l.s4 1966171168
        %v2309 = vunpack.c.0.s8 %v2308
        %v2310 = vlaneseq
        %v2311 = vshrl.u32 %v2310, 7
        %v2312 = vsub.s32 %v2309, %v2311
        %v2313 = vrot.slane %v2306, %v2312
        %v2315 = vunpack.c.l.s4 1966171168
        %v2316 = vunpack.c.0.s8 %v2315
        %v2317 = vlaneseq
        %v2318 = vshrl.u32 %v2317, 7
        %v2319 = vsub.s32 %v2316, %v2318
        %v2320 = vrot.slane %v2313, %v2319
        %v2322 = vsel %vm2303, %v2320, 0.0
        %v2323 = vadd.f32 %v2279, %v2322
        %2324 = vrot.lane.b32.xlu0 %v685, 97
        %v2325 = vpop.permute.xlu0 %2324
        %2326 = vrot.lane.b32.xlu0 %v686, 97
        %v2327 = vpop.permute.xlu0 %2326
        %vm2328 = vcmp.lt.s32.totalorder %v404, 97
        %v2329 = vsel %vm2328, %v2325, %v2327
        %v2330 = vsel %vm2328, %v2327, %v2325
        %2331 = vrot.lane.b32.xlu0 %v695, 97
        %v2332 = vpop.permute.xlu0 %2331
        %2333 = vrot.lane.b32.xlu0 %v704, 97
        %v2334 = vpop.permute.xlu0 %2333
        %v2335 = vsel %vm2328, %v2332, %v2334
        %v2336 = vsel %vm2328, %v2334, %v2332
        %s2337 = sld [smem:[#allocation7 + $0x25]]
        %s2338 = sld [smem:[#allocation7 + $0x56]]
        %v2339 = vstv %s2337
        %v2340 = vmul.f32 %v2339, %v2329
        %v2341 = vmul.f32 %v2339, %v2330
        %v2342 = vstv %s2338
        %v2343 = vmul.f32 %v2342, %v2335
        %v2344 = vmul.f32 %v2342, %v2336
        %v2345 = vadd.f32 %v2340, %v2343
        %v2346 = vadd.f32 %v2341, %v2344
        %vm2347 = vmand %vm2258, %vm824
        %v2350 = vcombine.low %v2345, %v2346
        %v2352 = vunpack.c.l.s4 1966171168
        %v2353 = vunpack.c.0.s8 %v2352
        %v2354 = vlaneseq
        %v2355 = vshrl.u32 %v2354, 7
        %v2356 = vsub.s32 %v2353, %v2355
        %v2357 = vrot.slane %v2350, %v2356
        %v2359 = vunpack.c.l.s4 1966171168
        %v2360 = vunpack.c.0.s8 %v2359
        %v2361 = vlaneseq
        %v2362 = vshrl.u32 %v2361, 7
        %v2363 = vsub.s32 %v2360, %v2362
        %v2364 = vrot.slane %v2357, %v2363
        %v2366 = vsel %vm2347, %v2364, 0.0
        %v2367 = vadd.f32 %v2323, %v2366
        %2368 = vrot.lane.b32.xlu0 %v685, 96
        %v2369 = vpop.permute.xlu0 %2368
        %2370 = vrot.lane.b32.xlu0 %v686, 96
        %v2371 = vpop.permute.xlu0 %2370
        %vm2372 = vcmp.lt.s32.totalorder %v404, 96
        %v2373 = vsel %vm2372, %v2369, %v2371
        %v2374 = vsel %vm2372, %v2371, %v2369
        %2375 = vrot.lane.b32.xlu0 %v695, 96
        %v2376 = vpop.permute.xlu0 %2375
        %2377 = vrot.lane.b32.xlu0 %v704, 96
        %v2378 = vpop.permute.xlu0 %2377
        %v2379 = vsel %vm2372, %v2376, %v2378
        %v2380 = vsel %vm2372, %v2378, %v2376
        %s2381 = sld [smem:[#allocation7 + $0x26]]
        %s2382 = sld [smem:[#allocation7 + $0x57]]
        %v2383 = vstv %s2381
        %v2384 = vmul.f32 %v2383, %v2373
        %v2385 = vmul.f32 %v2383, %v2374
        %v2386 = vstv %s2382
        %v2387 = vmul.f32 %v2386, %v2379
        %v2388 = vmul.f32 %v2386, %v2380
        %v2389 = vadd.f32 %v2384, %v2387
        %v2390 = vadd.f32 %v2385, %v2388
        %v2393 = vcombine.low %v2389, %v2390
        %v2395 = vunpack.c.l.s4 1966171168
        %v2396 = vunpack.c.0.s8 %v2395
        %v2397 = vlaneseq
        %v2398 = vshrl.u32 %v2397, 7
        %v2399 = vsub.s32 %v2396, %v2398
        %v2400 = vrot.slane %v2393, %v2399
        %v2402 = vunpack.c.l.s4 1966171168
        %v2403 = vunpack.c.0.s8 %v2402
        %v2404 = vlaneseq
        %v2405 = vshrl.u32 %v2404, 7
        %v2406 = vsub.s32 %v2403, %v2405
        %v2407 = vrot.slane %v2400, %v2406
        %v2409 = vsel %vm2258, %v2407, 0.0
        %v2410 = vadd.f32 %v2367, %v2409
        %2411 = vrot.lane.b32.xlu0 %v685, 95
        %v2412 = vpop.permute.xlu0 %2411
        %2413 = vrot.lane.b32.xlu0 %v686, 95
        %v2414 = vpop.permute.xlu0 %2413
        %vm2415 = vcmp.lt.s32.totalorder %v404, 95
        %v2416 = vsel %vm2415, %v2412, %v2414
        %v2417 = vsel %vm2415, %v2414, %v2412
        %2418 = vrot.lane.b32.xlu0 %v695, 95
        %v2419 = vpop.permute.xlu0 %2418
        %2420 = vrot.lane.b32.xlu0 %v704, 95
        %v2421 = vpop.permute.xlu0 %2420
        %v2422 = vsel %vm2415, %v2419, %v2421
        %v2423 = vsel %vm2415, %v2421, %v2419
        %s2424 = sld [smem:[#allocation7 + $0x27]]
        %s2425 = sld [smem:[#allocation7 + $0x58]]
        %v2426 = vstv %s2424
        %v2427 = vmul.f32 %v2426, %v2416
        %v2428 = vmul.f32 %v2426, %v2417
        %v2429 = vstv %s2425
        %v2430 = vmul.f32 %v2429, %v2422
        %v2431 = vmul.f32 %v2429, %v2423
        %v2432 = vadd.f32 %v2427, %v2430
        %v2433 = vadd.f32 %v2428, %v2431
        %vm2434 = vmand %vm2258, %vm912
        %v2437 = vcombine.low %v2432, %v2433
        %v2439 = vunpack.c.l.s4 1966171168
        %v2440 = vunpack.c.0.s8 %v2439
        %v2441 = vlaneseq
        %v2442 = vshrl.u32 %v2441, 7
        %v2443 = vsub.s32 %v2440, %v2442
        %v2444 = vrot.slane %v2437, %v2443
        %v2446 = vunpack.c.l.s4 1966171168
        %v2447 = vunpack.c.0.s8 %v2446
        %v2448 = vlaneseq
        %v2449 = vshrl.u32 %v2448, 7
        %v2450 = vsub.s32 %v2447, %v2449
        %v2451 = vrot.slane %v2444, %v2450
        %v2453 = vsel %vm2434, %v2451, 0.0
        %v2454 = vadd.f32 %v2410, %v2453
        %2455 = vrot.lane.b32.xlu0 %v685, 94
        %v2456 = vpop.permute.xlu0 %2455
        %2457 = vrot.lane.b32.xlu0 %v686, 94
        %v2458 = vpop.permute.xlu0 %2457
        %vm2459 = vcmp.lt.s32.totalorder %v404, 94
        %v2460 = vsel %vm2459, %v2456, %v2458
        %v2461 = vsel %vm2459, %v2458, %v2456
        %2462 = vrot.lane.b32.xlu0 %v695, 94
        %v2463 = vpop.permute.xlu0 %2462
        %2464 = vrot.lane.b32.xlu0 %v704, 94
        %v2465 = vpop.permute.xlu0 %2464
        %v2466 = vsel %vm2459, %v2463, %v2465
        %v2467 = vsel %vm2459, %v2465, %v2463
        %s2468 = sld [smem:[#allocation7 + $0x28]]
        %s2469 = sld [smem:[#allocation7 + $0x59]]
        %v2470 = vstv %s2468
        %v2471 = vmul.f32 %v2470, %v2460
        %v2472 = vmul.f32 %v2470, %v2461
        %v2473 = vstv %s2469
        %v2474 = vmul.f32 %v2473, %v2466
        %v2475 = vmul.f32 %v2473, %v2467
        %v2476 = vadd.f32 %v2471, %v2474
        %v2477 = vadd.f32 %v2472, %v2475
        %vm2478 = vmand %vm2258, %vm957
        %v2481 = vcombine.low %v2476, %v2477
        %v2483 = vunpack.c.l.s4 1966171168
        %v2484 = vunpack.c.0.s8 %v2483
        %v2485 = vlaneseq
        %v2486 = vshrl.u32 %v2485, 7
        %v2487 = vsub.s32 %v2484, %v2486
        %v2488 = vrot.slane %v2481, %v2487
        %v2490 = vunpack.c.l.s4 1966171168
        %v2491 = vunpack.c.0.s8 %v2490
        %v2492 = vlaneseq
        %v2493 = vshrl.u32 %v2492, 7
        %v2494 = vsub.s32 %v2491, %v2493
        %v2495 = vrot.slane %v2488, %v2494
        %v2497 = vsel %vm2478, %v2495, 0.0
        %v2498 = vadd.f32 %v2454, %v2497
        %2499 = vrot.lane.b32.xlu0 %v685, 93
        %v2500 = vpop.permute.xlu0 %2499
        %2501 = vrot.lane.b32.xlu0 %v686, 93
        %v2502 = vpop.permute.xlu0 %2501
        %vm2503 = vcmp.lt.s32.totalorder %v404, 93
        %v2504 = vsel %vm2503, %v2500, %v2502
        %v2505 = vsel %vm2503, %v2502, %v2500
        %2506 = vrot.lane.b32.xlu0 %v695, 93
        %v2507 = vpop.permute.xlu0 %2506
        %2508 = vrot.lane.b32.xlu0 %v704, 93
        %v2509 = vpop.permute.xlu0 %2508
        %v2510 = vsel %vm2503, %v2507, %v2509
        %v2511 = vsel %vm2503, %v2509, %v2507
        %s2512 = sld [smem:[#allocation7 + $0x29]]
        %s2513 = sld [smem:[#allocation7 + $0x5a]]
        %v2514 = vstv %s2512
        %v2515 = vmul.f32 %v2514, %v2504
        %v2516 = vmul.f32 %v2514, %v2505
        %v2517 = vstv %s2513
        %v2518 = vmul.f32 %v2517, %v2510
        %v2519 = vmul.f32 %v2517, %v2511
        %v2520 = vadd.f32 %v2515, %v2518
        %v2521 = vadd.f32 %v2516, %v2519
        %vm2522 = vmand %vm2258, %vm1002
        %v2525 = vcombine.low %v2520, %v2521
        %v2527 = vunpack.c.l.s4 1966171168
        %v2528 = vunpack.c.0.s8 %v2527
        %v2529 = vlaneseq
        %v2530 = vshrl.u32 %v2529, 7
        %v2531 = vsub.s32 %v2528, %v2530
        %v2532 = vrot.slane %v2525, %v2531
        %v2534 = vunpack.c.l.s4 1966171168
        %v2535 = vunpack.c.0.s8 %v2534
        %v2536 = vlaneseq
        %v2537 = vshrl.u32 %v2536, 7
        %v2538 = vsub.s32 %v2535, %v2537
        %v2539 = vrot.slane %v2532, %v2538
        %v2541 = vsel %vm2522, %v2539, 0.0
        %v2542 = vadd.f32 %v2498, %v2541
        %2543 = vrot.lane.b32.xlu0 %v685, 83
        %v2544 = vpop.permute.xlu0 %2543
        %2545 = vrot.lane.b32.xlu0 %v686, 83
        %v2546 = vpop.permute.xlu0 %2545
        %vm2547 = vcmp.lt.s32.totalorder %v404, 83
        %v2548 = vsel %vm2547, %v2544, %v2546
        %v2549 = vsel %vm2547, %v2546, %v2544
        %2550 = vrot.lane.b32.xlu0 %v695, 83
        %v2551 = vpop.permute.xlu0 %2550
        %2552 = vrot.lane.b32.xlu0 %v704, 83
        %v2553 = vpop.permute.xlu0 %2552
        %v2554 = vsel %vm2547, %v2551, %v2553
        %v2555 = vsel %vm2547, %v2553, %v2551
        %s2556 = sld [smem:[#allocation7 + $0x2a]]
        %s2557 = sld [smem:[#allocation7 + $0x5b]]
        %v2558 = vstv %s2556
        %v2559 = vmul.f32 %v2558, %v2548
        %v2560 = vmul.f32 %v2558, %v2549
        %v2561 = vstv %s2557
        %v2562 = vmul.f32 %v2561, %v2554
        %v2563 = vmul.f32 %v2561, %v2555
        %v2564 = vadd.f32 %v2559, %v2562
        %v2565 = vadd.f32 %v2560, %v2563
        %vm2566 = vcmp.lt.s32.totalorder %v705, 13
        %vm2567 = vmand %vm2566, %vm734
        %v2570 = vcombine.low %v2564, %v2565
        %v2572 = vunpack.c.l.s4 1966171168
        %v2573 = vunpack.c.0.s8 %v2572
        %v2574 = vlaneseq
        %v2575 = vshrl.u32 %v2574, 7
        %v2576 = vsub.s32 %v2573, %v2575
        %v2577 = vrot.slane %v2570, %v2576
        %v2579 = vunpack.c.l.s4 1966171168
        %v2580 = vunpack.c.0.s8 %v2579
        %v2581 = vlaneseq
        %v2582 = vshrl.u32 %v2581, 7
        %v2583 = vsub.s32 %v2580, %v2582
        %v2584 = vrot.slane %v2577, %v2583
        %v2586 = vsel %vm2567, %v2584, 0.0
        %v2587 = vadd.f32 %v2542, %v2586
        %2588 = vrot.lane.b32.xlu0 %v685, 82
        %v2589 = vpop.permute.xlu0 %2588
        %2590 = vrot.lane.b32.xlu0 %v686, 82
        %v2591 = vpop.permute.xlu0 %2590
        %vm2592 = vcmp.lt.s32.totalorder %v404, 82
        %v2593 = vsel %vm2592, %v2589, %v2591
        %v2594 = vsel %vm2592, %v2591, %v2589
        %2595 = vrot.lane.b32.xlu0 %v695, 82
        %v2596 = vpop.permute.xlu0 %2595
        %2597 = vrot.lane.b32.xlu0 %v704, 82
        %v2598 = vpop.permute.xlu0 %2597
        %v2599 = vsel %vm2592, %v2596, %v2598
        %v2600 = vsel %vm2592, %v2598, %v2596
        %s2601 = sld [smem:[#allocation7 + $0x2b]]
        %s2602 = sld [smem:[#allocation7 + $0x5c]]
        %v2603 = vstv %s2601
        %v2604 = vmul.f32 %v2603, %v2593
        %v2605 = vmul.f32 %v2603, %v2594
        %v2606 = vstv %s2602
        %v2607 = vmul.f32 %v2606, %v2599
        %v2608 = vmul.f32 %v2606, %v2600
        %v2609 = vadd.f32 %v2604, %v2607
        %v2610 = vadd.f32 %v2605, %v2608
        %vm2611 = vmand %vm2566, %vm779
        %v2614 = vcombine.low %v2609, %v2610
        %v2616 = vunpack.c.l.s4 1966171168
        %v2617 = vunpack.c.0.s8 %v2616
        %v2618 = vlaneseq
        %v2619 = vshrl.u32 %v2618, 7
        %v2620 = vsub.s32 %v2617, %v2619
        %v2621 = vrot.slane %v2614, %v2620
        %v2623 = vunpack.c.l.s4 1966171168
        %v2624 = vunpack.c.0.s8 %v2623
        %v2625 = vlaneseq
        %v2626 = vshrl.u32 %v2625, 7
        %v2627 = vsub.s32 %v2624, %v2626
        %v2628 = vrot.slane %v2621, %v2627
        %v2630 = vsel %vm2611, %v2628, 0.0
        %v2631 = vadd.f32 %v2587, %v2630
        %2632 = vrot.lane.b32.xlu0 %v685, 81
        %v2633 = vpop.permute.xlu0 %2632
        %2634 = vrot.lane.b32.xlu0 %v686, 81
        %v2635 = vpop.permute.xlu0 %2634
        %vm2636 = vcmp.lt.s32.totalorder %v404, 81
        %v2637 = vsel %vm2636, %v2633, %v2635
        %v2638 = vsel %vm2636, %v2635, %v2633
        %2639 = vrot.lane.b32.xlu0 %v695, 81
        %v2640 = vpop.permute.xlu0 %2639
        %2641 = vrot.lane.b32.xlu0 %v704, 81
        %v2642 = vpop.permute.xlu0 %2641
        %v2643 = vsel %vm2636, %v2640, %v2642
        %v2644 = vsel %vm2636, %v2642, %v2640
        %s2645 = sld [smem:[#allocation7 + $0x2c]]
        %s2646 = sld [smem:[#allocation7 + $0x5d]]
        %v2647 = vstv %s2645
        %v2648 = vmul.f32 %v2647, %v2637
        %v2649 = vmul.f32 %v2647, %v2638
        %v2650 = vstv %s2646
        %v2651 = vmul.f32 %v2650, %v2643
        %v2652 = vmul.f32 %v2650, %v2644
        %v2653 = vadd.f32 %v2648, %v2651
        %v2654 = vadd.f32 %v2649, %v2652
        %vm2655 = vmand %vm2566, %vm824
        %v2658 = vcombine.low %v2653, %v2654
        %v2660 = vunpack.c.l.s4 1966171168
        %v2661 = vunpack.c.0.s8 %v2660
        %v2662 = vlaneseq
        %v2663 = vshrl.u32 %v2662, 7
        %v2664 = vsub.s32 %v2661, %v2663
        %v2665 = vrot.slane %v2658, %v2664
        %v2667 = vunpack.c.l.s4 1966171168
        %v2668 = vunpack.c.0.s8 %v2667
        %v2669 = vlaneseq
        %v2670 = vshrl.u32 %v2669, 7
        %v2671 = vsub.s32 %v2668, %v2670
        %v2672 = vrot.slane %v2665, %v2671
        %v2674 = vsel %vm2655, %v2672, 0.0
        %v2675 = vadd.f32 %v2631, %v2674
        %2676 = vrot.lane.b32.xlu0 %v685, 80
        %v2677 = vpop.permute.xlu0 %2676
        %2678 = vrot.lane.b32.xlu0 %v686, 80
        %v2679 = vpop.permute.xlu0 %2678
        %vm2680 = vcmp.lt.s32.totalorder %v404, 80
        %v2681 = vsel %vm2680, %v2677, %v2679
        %v2682 = vsel %vm2680, %v2679, %v2677
        %2683 = vrot.lane.b32.xlu0 %v695, 80
        %v2684 = vpop.permute.xlu0 %2683
        %2685 = vrot.lane.b32.xlu0 %v704, 80
        %v2686 = vpop.permute.xlu0 %2685
        %v2687 = vsel %vm2680, %v2684, %v2686
        %v2688 = vsel %vm2680, %v2686, %v2684
        %s2689 = sld [smem:[#allocation7 + $0x2d]]
        %s2690 = sld [smem:[#allocation7 + $0x5e]]
        %v2691 = vstv %s2689
        %v2692 = vmul.f32 %v2691, %v2681
        %v2693 = vmul.f32 %v2691, %v2682
        %v2694 = vstv %s2690
        %v2695 = vmul.f32 %v2694, %v2687
        %v2696 = vmul.f32 %v2694, %v2688
        %v2697 = vadd.f32 %v2692, %v2695
        %v2698 = vadd.f32 %v2693, %v2696
        %v2701 = vcombine.low %v2697, %v2698
        %v2703 = vunpack.c.l.s4 1966171168
        %v2704 = vunpack.c.0.s8 %v2703
        %v2705 = vlaneseq
        %v2706 = vshrl.u32 %v2705, 7
        %v2707 = vsub.s32 %v2704, %v2706
        %v2708 = vrot.slane %v2701, %v2707
        %v2710 = vunpack.c.l.s4 1966171168
        %v2711 = vunpack.c.0.s8 %v2710
        %v2712 = vlaneseq
        %v2713 = vshrl.u32 %v2712, 7
        %v2714 = vsub.s32 %v2711, %v2713
        %v2715 = vrot.slane %v2708, %v2714
        %v2717 = vsel %vm2566, %v2715, 0.0
        %v2718 = vadd.f32 %v2675, %v2717
        %2719 = vrot.lane.b32.xlu0 %v685, 79
        %v2720 = vpop.permute.xlu0 %2719
        %2721 = vrot.lane.b32.xlu0 %v686, 79
        %v2722 = vpop.permute.xlu0 %2721
        %vm2723 = vcmp.lt.s32.totalorder %v404, 79
        %v2724 = vsel %vm2723, %v2720, %v2722
        %v2725 = vsel %vm2723, %v2722, %v2720
        %2726 = vrot.lane.b32.xlu0 %v695, 79
        %v2727 = vpop.permute.xlu0 %2726
        %2728 = vrot.lane.b32.xlu0 %v704, 79
        %v2729 = vpop.permute.xlu0 %2728
        %v2730 = vsel %vm2723, %v2727, %v2729
        %v2731 = vsel %vm2723, %v2729, %v2727
        %s2732 = sld [smem:[#allocation7 + $0x2e]]
        %s2733 = sld [smem:[#allocation7 + $0x5f]]
        %v2734 = vstv %s2732
        %v2735 = vmul.f32 %v2734, %v2724
        %v2736 = vmul.f32 %v2734, %v2725
        %v2737 = vstv %s2733
        %v2738 = vmul.f32 %v2737, %v2730
        %v2739 = vmul.f32 %v2737, %v2731
        %v2740 = vadd.f32 %v2735, %v2738
        %v2741 = vadd.f32 %v2736, %v2739
        %vm2742 = vmand %vm2566, %vm912
        %v2745 = vcombine.low %v2740, %v2741
        %v2747 = vunpack.c.l.s4 1966171168
        %v2748 = vunpack.c.0.s8 %v2747
        %v2749 = vlaneseq
        %v2750 = vshrl.u32 %v2749, 7
        %v2751 = vsub.s32 %v2748, %v2750
        %v2752 = vrot.slane %v2745, %v2751
        %v2754 = vunpack.c.l.s4 1966171168
        %v2755 = vunpack.c.0.s8 %v2754
        %v2756 = vlaneseq
        %v2757 = vshrl.u32 %v2756, 7
        %v2758 = vsub.s32 %v2755, %v2757
        %v2759 = vrot.slane %v2752, %v2758
        %v2761 = vsel %vm2742, %v2759, 0.0
        %v2762 = vadd.f32 %v2718, %v2761
        %2763 = vrot.lane.b32.xlu0 %v685, 78
        %v2764 = vpop.permute.xlu0 %2763
        %2765 = vrot.lane.b32.xlu0 %v686, 78
        %v2766 = vpop.permute.xlu0 %2765
        %vm2767 = vcmp.lt.s32.totalorder %v404, 78
        %v2768 = vsel %vm2767, %v2764, %v2766
        %v2769 = vsel %vm2767, %v2766, %v2764
        %2770 = vrot.lane.b32.xlu0 %v695, 78
        %v2771 = vpop.permute.xlu0 %2770
        %2772 = vrot.lane.b32.xlu0 %v704, 78
        %v2773 = vpop.permute.xlu0 %2772
        %v2774 = vsel %vm2767, %v2771, %v2773
        %v2775 = vsel %vm2767, %v2773, %v2771
        %s2776 = sld [smem:[#allocation7 + $0x2f]]
        %s2777 = sld [smem:[#allocation7 + $0x60]]
        %v2778 = vstv %s2776
        %v2779 = vmul.f32 %v2778, %v2768
        %v2780 = vmul.f32 %v2778, %v2769
        %v2781 = vstv %s2777
        %v2782 = vmul.f32 %v2781, %v2774
        %v2783 = vmul.f32 %v2781, %v2775
        %v2784 = vadd.f32 %v2779, %v2782
        %v2785 = vadd.f32 %v2780, %v2783
        %vm2786 = vmand %vm2566, %vm957
        %v2789 = vcombine.low %v2784, %v2785
        %v2791 = vunpack.c.l.s4 1966171168
        %v2792 = vunpack.c.0.s8 %v2791
        %v2793 = vlaneseq
        %v2794 = vshrl.u32 %v2793, 7
        %v2795 = vsub.s32 %v2792, %v2794
        %v2796 = vrot.slane %v2789, %v2795
        %v2798 = vunpack.c.l.s4 1966171168
        %v2799 = vunpack.c.0.s8 %v2798
        %v2800 = vlaneseq
        %v2801 = vshrl.u32 %v2800, 7
        %v2802 = vsub.s32 %v2799, %v2801
        %v2803 = vrot.slane %v2796, %v2802
        %v2805 = vsel %vm2786, %v2803, 0.0
        %v2806 = vadd.f32 %v2762, %v2805
        %2807 = vrot.lane.b32.xlu0 %v685, 77
        %v2808 = vpop.permute.xlu0 %2807
        %2809 = vrot.lane.b32.xlu0 %v686, 77
        %v2810 = vpop.permute.xlu0 %2809
        %vm2811 = vcmp.lt.s32.totalorder %v404, 77
        %v2812 = vsel %vm2811, %v2808, %v2810
        %v2813 = vsel %vm2811, %v2810, %v2808
        %2814 = vrot.lane.b32.xlu0 %v695, 77
        %v2815 = vpop.permute.xlu0 %2814
        %2816 = vrot.lane.b32.xlu0 %v704, 77
        %v2817 = vpop.permute.xlu0 %2816
        %v2818 = vsel %vm2811, %v2815, %v2817
        %v2819 = vsel %vm2811, %v2817, %v2815
        %s2820 = sld [smem:[#allocation7 + $0x30]]
        %s2821 = sld [smem:[#allocation7 + $0x61]]
        %v2822 = vstv %s2820
        %v2823 = vmul.f32 %v2822, %v2812
        %v2824 = vmul.f32 %v2822, %v2813
        %v2825 = vstv %s2821
        %v2826 = vmul.f32 %v2825, %v2818
        %v2827 = vmul.f32 %v2825, %v2819
        %v2828 = vadd.f32 %v2823, %v2826
        %v2829 = vadd.f32 %v2824, %v2827
        %vm2830 = vmand %vm2566, %vm1002
        %v2833 = vcombine.low %v2828, %v2829
        %v2835 = vunpack.c.l.s4 1966171168
        %v2836 = vunpack.c.0.s8 %v2835
        %v2837 = vlaneseq
        %v2838 = vshrl.u32 %v2837, 7
        %v2839 = vsub.s32 %v2836, %v2838
        %v2840 = vrot.slane %v2833, %v2839
        %v2842 = vunpack.c.l.s4 1966171168
        %v2843 = vunpack.c.0.s8 %v2842
        %v2844 = vlaneseq
        %v2845 = vshrl.u32 %v2844, 7
        %v2846 = vsub.s32 %v2843, %v2845
        %v2847 = vrot.slane %v2840, %v2846
        %v2849 = vsel %vm2830, %v2847, 0.0
        %v2850 = vadd.f32 %v2806, %v2849
        %v2851 = vxor.u32 %v2850, 2147483648
        %v2852 = vmul.f32 %v2851, 1.442695
        %v2853 = vpow.pop %v2852
        %v2854 = vadd.f32 %v2853, 1.0
        %v2855 = vrcp.pop %v2854
        %v2856 = vmul.f32 1.0, %v2855
        %v2858 = vlaneseq
        %v2859 = vshrl.u32 %v2858, 7
        %v2860 = vsub.s32 0, %v2859
        %v2861 = vrot.slane %v2856, %v2860
        %v2862 = vlaneseq
        %v2863 = vshrl.u32 %v2862, 7
        %v2864 = vsub.s32 1, %v2863
        %v2865 = vrot.slane %v2856, %v2864
        %v2868 = vmul.f32 %v658, %v2861
        %v2869 = vmul.f32 %v659, %v2865
        %v2870 = vmul.f32 %v660, %v2861
        %v2871 = vmul.f32 %v661, %v2865
        %v2872 = vmul.f32 %v662, %v2861
        %v2873 = vmul.f32 %v663, %v2865
        %v2874 = vmul.f32 %v664, %v2861
        %v2875 = vmul.f32 %v665, %v2865
        %2876 = vst [vmem:[%s365] sm:$0xff] %v2868
        %2877 = vst [vmem:[%s365 + $0x8] sm:$0xff] %v2869
        %2878 = vst [vmem:[%s365 + $0x10] sm:$0xff] %v2870
        %2879 = vst [vmem:[%s365 + $0x18] sm:$0xff] %v2871
        %2880 = vst [vmem:[%s365 + $0x20] sm:$0xff] %v2872
        %2881 = vst [vmem:[%s365 + $0x28] sm:$0xff] %v2873
        %2882 = vst [vmem:[%s365 + $0x30] sm:$0xff] %v2874
        %2883 = vst [vmem:[%s365 + $0x38] sm:$0xff] %v2875
        %s2884 = sand.u32 %s230, 1
        %s2885 = scalar_lea.sflag [#allocation5], %s2884
        %s2886 = sand.u32 %s230, 1
        %s2887 = smul.addr %s2886, 64
        %s2888 = scalar_lea.vmem [#allocation8], %s2887
        // Predicated region
        $region65: #{tpu_custom_call.1} parent=55 // pred_check
          %p2889 = pneg %p240
        $region66: #{tpu_custom_call.1} parent=55 // pred_check_branch
          %2891 = sbr.rel (%p2889) target = $region68
        $region67: #{tpu_custom_call.1} parent=55 // pred_region
          %s2893 = ssub.s32 1024, 1024
          %2894 = vsyncadd %s2885, %s2893
          %s2895 = smul.addr %s28, 8
          %s2896 = smul.addr %s2895, 128
          %s2897 = scalar_lea.hbm %s9, %s2896
          %s2898 = sshll.u32 %s2888, 4
          %s2899 = int_to_ptr.vmem [resolvable:$true] %s2898
          %2904 = dma.vmem_to_hbm [thread:$0]  %s2899, 1024, %s2897, %s2885, 256, 256, 16
        $region68: #{tpu_custom_call.1} parent=55 // pred_fallthru
          _
      $region56: #{tpu_custom_call.1} parent=5 // pred_fallthru
        _
      %p2905 = scmp.le.s32.totalorder 2, %s23
      // Predicated region
      $region69: #{tpu_custom_call.1} parent=5 // pred_check
        %p2906 = pneg %p2905
      $region70: #{tpu_custom_call.1} parent=5 // pred_check_branch
        %2908 = sbr.rel (%p2906) target = $region72
      $region71: #{tpu_custom_call.1} parent=5 // pred_region
        %s2909 = ssub.s32 %s23, 2
        // Predicated region
        $region73: #{tpu_custom_call.1} parent=71 // pred_check
          %p2910 = pneg %p246
        $region74: #{tpu_custom_call.1} parent=71 // pred_check_branch
          %2912 = sbr.rel (%p2910) target = $region76
        $region75: #{tpu_custom_call.1} parent=71 // pred_region
          %s2913 = sand.u32 %s231, 1
          %s2914 = scalar_lea.sflag [#allocation5], %s2913
          %s2915 = sand.u32 %s231, 1
          %s2916 = smul.addr %s2915, 64
          %s2917 = scalar_lea.vmem [#allocation8], %s2916
          %2918 = dma.done %s2914, 1024
        $region76: #{tpu_custom_call.1} parent=71 // pred_fallthru
          _
      $region72: #{tpu_custom_call.1} parent=5 // pred_fallthru
        _
    $region6: #{tpu_custom_call.1} parent=1 // loop_footer
      %s27 = sadd.s32 1, %s23
    $region7: #{tpu_custom_call.1} parent=1 // loop_footer_branch
      %22 = sbr.rel target = $region3
    $region8: #{tpu_custom_call.1} parent=1 // loop_exit
      _
    %2919 = vsyncpa [#allocation4], 1
    %s2920 = scalar_lea.sflag [#allocation4], 1
    %2921 = vsyncpa %s2920, 1
    %2922 = vsyncpa [#allocation5], 1
    %s2923 = scalar_lea.sflag [#allocation5], 1
    %2924 = vsyncpa %s2923, 1
    %2925 = vsyncpa [#allocation6], 1
    %s2926 = scalar_lea.sflag [#allocation6], 1
    %2927 = vsyncpa %s2926, 1

</llo_original>
